<compile_context>
chip_gen: v6e
topology: v6e:2x2x1
jax: 0.10.0
libtpu: 0.0.40
codegen_flags: <defaults>
</compile_context>

<pallas_src>
import math
import functools

import jax
import jax.numpy as jnp
from jax.experimental import pallas as pl
from jax.experimental.pallas import tpu as pltpu


# --------------------------------------------------------------------------
# Model constants (toy surrogate dims)
# --------------------------------------------------------------------------

CLIP_DIM = 32        # image_embeds feature dim
CROSS_DIM = 32       # encoder_hidden_states feature dim
NUM_IP_TOKENS = 4    # extra context tokens produced by image_proj_model
HIDDEN = 32          # unet inner channel width
LATENT_C = 4         # latent channels


# --------------------------------------------------------------------------
# Fused Pallas kernel (one grid step == one batch element)
# --------------------------------------------------------------------------

def _ln(x, g, b, eps=1e-5):
    mu = jnp.mean(x, axis=-1, keepdims=True)
    var = jnp.mean(jnp.square(x - mu), axis=-1, keepdims=True)
    return (x - mu) * jax.lax.rsqrt(var + eps) * g + b


def _fused_ip_adapter_kernel(
    lat_ref, temb_ref, ehs_ref, img_ref,
    proj_w_ref, proj_b_ref, pln_g_ref, pln_b_ref,
    tw1_ref, tb1_ref, tw2_ref, tb2_ref,
    cin_w_ref, cin_b_ref,
    ln_g_ref, ln_b_ref,
    wq_ref, bq_ref, wkv_ref, bkv_ref, wo_ref, bo_ref,
    cout_wt_ref, cout_b_ref,
    out_ref,
    *, scale, seq, n_ip, ctx_pad):
    f32 = jnp.float32
    d = CROSS_DIM

    # ---- image_proj_model: ip_tokens = LayerNorm(reshape(Linear(image_embeds))) ----
    img = img_ref[0].astype(f32)                                              # (1, CLIP)
    ip_flat = jnp.dot(img, proj_w_ref[...],
                      preferred_element_type=f32) + proj_b_ref[...]           # (1, T*D), 128-lane
    ip = jnp.concatenate(
        [ip_flat[:, t * d:(t + 1) * d] for t in range(n_ip)], axis=0)         # (T, D)
    ip = _ln(ip, pln_g_ref[...], pln_b_ref[...])

    # ---- concat [text ; ip_tokens], zero-pad context to sublane-aligned length ----
    ehs = ehs_ref[0].astype(f32)                                              # (SEQ, D)
    pieces = [ehs, ip]
    pad = ctx_pad - seq - n_ip
    if pad > 0:
        pieces.append(jnp.zeros((pad, d), f32))
    ctx = jnp.concatenate(pieces, axis=0)                                     # (ctx_pad, D)

    # ---- time-embedding MLP (SiLU) ----
    t = temb_ref[0].astype(f32)                                               # (1, HIDDEN)
    t1 = jnp.dot(t, tw1_ref[...], preferred_element_type=f32) + tb1_ref[...]
    t1 = t1 * jax.nn.sigmoid(t1)
    temb = jnp.dot(t1, tw2_ref[...], preferred_element_type=f32) + tb2_ref[...]

    # ---- conv_in (1x1) with fused bias + time-embedding add ----
    x = lat_ref[0].astype(f32)                                                # (HW, C)
    h = jnp.dot(x, cin_w_ref[...], preferred_element_type=f32)
    h = h + cin_b_ref[...] + temb                                             # fused epilogue adds

    # ---- cross-attention over the concatenated context ----
    hn = _ln(h, ln_g_ref[...], ln_b_ref[...])
    q = jnp.dot(hn, wq_ref[...], preferred_element_type=f32) + bq_ref[...]    # (HW, HIDDEN)
    kv = jnp.dot(ctx, wkv_ref[...], preferred_element_type=f32) + bkv_ref[...]  # fused K/V
    k = kv[:, :HIDDEN]
    v = kv[:, HIDDEN:]

    # scores: contract last dims -> no explicit K transpose materialized
    s = jax.lax.dot_general(q, k, (((1,), (1,)), ((), ())),
                            preferred_element_type=f32) * scale               # (HW, ctx_pad)
    valid = jax.lax.broadcasted_iota(jnp.int32, s.shape, 1) < (seq + n_ip)
    s = jnp.where(valid, s, -1e30)
    m = jnp.max(s, axis=-1, keepdims=True)
    p = jnp.exp(s - m)
    denom = jnp.sum(p, axis=-1, keepdims=True)
    p = p * pl.reciprocal(denom, approx=True)                                 # EUP slot (free-ish)
    attn = jnp.dot(p, v, preferred_element_type=f32)                          # (HW, HIDDEN)
    attn = jnp.dot(attn, wo_ref[...], preferred_element_type=f32) + bo_ref[...]
    h = h + attn                                                              # fused residual add

    # ---- conv_out (1x1), channel-major so the final store is lane-dense (256) ----
    out_cm = jax.lax.dot_general(cout_wt_ref[...], h, (((1,), (1,)), ((), ())),
                                 preferred_element_type=f32)                  # (C, HW)
    out_ref[0] = (out_cm + cout_b_ref[...]).astype(out_ref.dtype)


# --------------------------------------------------------------------------
# Wrapper
# --------------------------------------------------------------------------

def timestep_embedding(t, dim):
    half = dim // 2
    freqs = jnp.exp(-math.log(10000.0) * jnp.arange(half, dtype=jnp.float32) / half)
    args = t.astype(jnp.float32)[:, None] * freqs[None, :]
    return jnp.concatenate([jnp.cos(args), jnp.sin(args)], axis=-1)


def ip_adapter_forward(params, noisy_latents, timesteps, encoder_hidden_states, image_embeds):
    """noisy_latents: (B, C, H, W) NCHW, timesteps: (B,), ehs: (B, S, CROSS_DIM),
    image_embeds: (B, CLIP_DIM).  Returns noise_pred: (B, C, H, W)."""
    B, C, H, W = noisy_latents.shape
    S = encoder_hidden_states.shape[1]
    HW = H * W
    ctx_pad = -(-(S + NUM_IP_TOKENS) // 8) * 8      # pad context length to sublane multiple

    # Layout prep at the boundary (tiny, one-off):
    #   * latents fed token-major so conv_in is a plain (HW, C) @ (C, HIDDEN) matmul
    #   * prediction comes back channel-major (B, C, HW) -> free reshape to NCHW
    lat_tok = jnp.transpose(noisy_latents, (0, 2, 3, 1)).reshape(B, HW, C)
    temb0 = timestep_embedding(timesteps, HIDDEN).reshape(B, 1, HIDDEN)
    img = image_embeds.reshape(B, 1, CLIP_DIM)

    # Weight packing: fused K/V projection; conv_out weight pre-transposed so the
    # final matmul contracts on the last dims and writes a (C, HW) lane-dense slab.
    wkv = jnp.concatenate([params["wk"], params["wv"]], axis=1)      # (D, 2*HIDDEN)
    bkv = jnp.concatenate([params["bk"], params["bv"]], axis=0)      # (2*HIDDEN,)
    cout_wt = params["cout_w"].T                                     # (C, HIDDEN)

    row = lambda v: v.reshape(1, -1)
    weights = [
        params["proj_w"], row(params["proj_b"]),
        row(params["proj_ln_g"]), row(params["proj_ln_b"]),
        params["t_w1"], row(params["t_b1"]), params["t_w2"], row(params["t_b2"]),
        params["cin_w"], row(params["cin_b"]),
        row(params["ln_g"]), row(params["ln_b"]),
        params["wq"], row(params["bq"]), wkv, row(bkv),
        params["wo"], row(params["bo"]),
        cout_wt, params["cout_b"].reshape(C, 1),
    ]

    def full_spec(a):
        zeros = (0,) * a.ndim
        return pl.BlockSpec(a.shape, lambda b: zeros)

    kern = functools.partial(
        _fused_ip_adapter_kernel,
        scale=1.0 / math.sqrt(HIDDEN), seq=S, n_ip=NUM_IP_TOKENS, ctx_pad=ctx_pad)

    out_cm = pl.pallas_call(
        kern,
        out_shape=jax.ShapeDtypeStruct((B, C, HW), noisy_latents.dtype),
        grid=(B,),
        in_specs=[
            pl.BlockSpec((1, HW, C), lambda b: (b, 0, 0)),
            pl.BlockSpec((1, 1, HIDDEN), lambda b: (b, 0, 0)),
            pl.BlockSpec((1, S, CROSS_DIM), lambda b: (b, 0, 0)),
            pl.BlockSpec((1, 1, CLIP_DIM), lambda b: (b, 0, 0)),
        ] + [full_spec(w) for w in weights],
        out_specs=pl.BlockSpec((1, C, HW), lambda b: (b, 0, 0)),
        compiler_params=pltpu.CompilerParams(
            dimension_semantics=("parallel",)),
    )(lat_tok, temb0, encoder_hidden_states, img, *weights)

    return out_cm.reshape(B, C, H, W)                                # already NCHW order


# --------------------------------------------------------------------------
# Parameters (deterministic synthetic)
# --------------------------------------------------------------------------

def init_params(key):
    def w(key, shape):
        return jax.random.normal(key, shape, jnp.float32) * 0.02

    ks = jax.random.split(key, 12)
    return {
        "proj_w": w(ks[0], (CLIP_DIM, NUM_IP_TOKENS * CROSS_DIM)),
        "proj_b": jnp.zeros((NUM_IP_TOKENS * CROSS_DIM,), jnp.float32),
        "proj_ln_g": jnp.ones((CROSS_DIM,), jnp.float32),
        "proj_ln_b": jnp.zeros((CROSS_DIM,), jnp.float32),
        "t_w1": w(ks[1], (HIDDEN, HIDDEN)), "t_b1": jnp.zeros((HIDDEN,), jnp.float32),
        "t_w2": w(ks[2], (HIDDEN, HIDDEN)), "t_b2": jnp.zeros((HIDDEN,), jnp.float32),
        "cin_w": w(ks[3], (LATENT_C, HIDDEN)), "cin_b": jnp.zeros((HIDDEN,), jnp.float32),
        "cout_w": w(ks[4], (HIDDEN, LATENT_C)), "cout_b": jnp.zeros((LATENT_C,), jnp.float32),
        "ln_g": jnp.ones((HIDDEN,), jnp.float32), "ln_b": jnp.zeros((HIDDEN,), jnp.float32),
        "wq": w(ks[5], (HIDDEN, HIDDEN)), "bq": jnp.zeros((HIDDEN,), jnp.float32),
        "wk": w(ks[6], (CROSS_DIM, HIDDEN)), "bk": jnp.zeros((HIDDEN,), jnp.float32),
        "wv": w(ks[7], (CROSS_DIM, HIDDEN)), "bv": jnp.zeros((HIDDEN,), jnp.float32),
        "wo": w(ks[8], (HIDDEN, HIDDEN)), "bo": jnp.zeros((HIDDEN,), jnp.float32),
    }


# --------------------------------------------------------------------------
# Pure-JAX reference (for a loose sanity check)
# --------------------------------------------------------------------------

def ip_adapter_reference(params, noisy_latents, timesteps, encoder_hidden_states, image_embeds):
    B, C, H, W = noisy_latents.shape

    def ln(x, g, b):
        mu = x.mean(-1, keepdims=True)
        var = ((x - mu) ** 2).mean(-1, keepdims=True)
        return (x - mu) / jnp.sqrt(var + 1e-5) * g + b

    ip = image_embeds @ params["proj_w"] + params["proj_b"]
    ip = ln(ip.reshape(B, NUM_IP_TOKENS, CROSS_DIM), params["proj_ln_g"], params["proj_ln_b"])
    ehs = jnp.concatenate([encoder_hidden_states, ip], axis=1)

    temb = timestep_embedding(timesteps, HIDDEN)
    t1 = temb @ params["t_w1"] + params["t_b1"]
    t1 = t1 * jax.nn.sigmoid(t1)
    temb = t1 @ params["t_w2"] + params["t_b2"]

    x = jnp.transpose(noisy_latents, (0, 2, 3, 1)).reshape(B, H * W, C)
    h = x @ params["cin_w"] + params["cin_b"] + temb[:, None, :]
    hn = ln(h, params["ln_g"], params["ln_b"])
    q = hn @ params["wq"] + params["bq"]
    k = ehs @ params["wk"] + params["bk"]
    v = ehs @ params["wv"] + params["bv"]
    s = jnp.einsum("bqd,bkd->bqk", q, k) / math.sqrt(HIDDEN)
    p = jax.nn.softmax(s, axis=-1)
    attn = jnp.einsum("bqk,bkd->bqd", p, v) @ params["wo"] + params["bo"]
    h = h + attn
    out = h @ params["cout_w"] + params["cout_b"]
    return jnp.transpose(out.reshape(B, H, W, C), (0, 3, 1, 2))


# --------------------------------------------------------------------------
# Main
# --------------------------------------------------------------------------

if __name__ == "__main__":
    key = jax.random.PRNGKey(0)
    k_par, k_lat, k_ehs, k_img, k_t = jax.random.split(key, 5)

    params = init_params(k_par)

    B, H, W, SEQ = 2, 16, 16, 8
    noisy_latents = jax.random.normal(k_lat, (B, LATENT_C, H, W), jnp.float32)
    timesteps = jax.random.randint(k_t, (B,), 0, 1000).astype(jnp.int32)
    encoder_hidden_states = jax.random.normal(k_ehs, (B, SEQ, CROSS_DIM), jnp.float32)
    image_embeds = jax.random.normal(k_img, (B, CLIP_DIM), jnp.float32)

    fwd = jax.jit(ip_adapter_forward)
    noise_pred = fwd(params, noisy_latents, timesteps, encoder_hidden_states, image_embeds)
    jax.block_until_ready(noise_pred)

    assert noise_pred.shape == (B, LATENT_C, H, W)
    assert noise_pred.dtype == jnp.float32

    ref = ip_adapter_reference(params, noisy_latents, timesteps,
                               encoder_hidden_states, image_embeds)
    err = float(jnp.max(jnp.abs(noise_pred - ref)))
    assert err < 1e-3, f"max abs err vs reference: {err}"

    print("KERNEL_OK")
</pallas_src>

<mosaic_0001>
module attributes {stable_mosaic.version = 11 : i64} {
  func.func @_fused_ip_adapter_kernel(%arg0: i32, %arg1: memref<1x256x4xf32, #tpu.memory_space<vmem>>, %arg2: memref<1x1x32xf32, #tpu.memory_space<vmem>>, %arg3: memref<1x8x32xf32, #tpu.memory_space<vmem>>, %arg4: memref<1x1x32xf32, #tpu.memory_space<vmem>>, %arg5: memref<32x128xf32, #tpu.memory_space<vmem>>, %arg6: memref<1x128xf32, #tpu.memory_space<vmem>>, %arg7: memref<1x32xf32, #tpu.memory_space<vmem>>, %arg8: memref<1x32xf32, #tpu.memory_space<vmem>>, %arg9: memref<32x32xf32, #tpu.memory_space<vmem>>, %arg10: memref<1x32xf32, #tpu.memory_space<vmem>>, %arg11: memref<32x32xf32, #tpu.memory_space<vmem>>, %arg12: memref<1x32xf32, #tpu.memory_space<vmem>>, %arg13: memref<4x32xf32, #tpu.memory_space<vmem>>, %arg14: memref<1x32xf32, #tpu.memory_space<vmem>>, %arg15: memref<1x32xf32, #tpu.memory_space<vmem>>, %arg16: memref<1x32xf32, #tpu.memory_space<vmem>>, %arg17: memref<32x32xf32, #tpu.memory_space<vmem>>, %arg18: memref<1x32xf32, #tpu.memory_space<vmem>>, %arg19: memref<32x64xf32, #tpu.memory_space<vmem>>, %arg20: memref<1x64xf32, #tpu.memory_space<vmem>>, %arg21: memref<32x32xf32, #tpu.memory_space<vmem>>, %arg22: memref<1x32xf32, #tpu.memory_space<vmem>>, %arg23: memref<4x32xf32, #tpu.memory_space<vmem>>, %arg24: memref<4x1xf32, #tpu.memory_space<vmem>>, %arg25: memref<1x4x256xf32, #tpu.memory_space<vmem>>) attributes {dimension_semantics = [#tpu.dimension_semantics<parallel>], iteration_bounds = array<i64: 2>, scalar_prefetch = 0 : i64, scratch_operands = 0 : i64, tpu.core_type = #tpu.core_type<tc>, window_params = [{transform_indices = @transform_0, window_bounds = array<i64: 1, 256, 4>}, {transform_indices = @transform_1, window_bounds = array<i64: 1, 1, 32>}, {transform_indices = @transform_2, window_bounds = array<i64: 1, 8, 32>}, {transform_indices = @transform_3, window_bounds = array<i64: 1, 1, 32>}, {pipeline_mode = #tpu.pipeline_mode<synchronous>, transform_indices = @transform_4, window_bounds = array<i64: 32, 128>}, {pipeline_mode = #tpu.pipeline_mode<synchronous>, transform_indices = @transform_5, window_bounds = array<i64: 1, 128>}, {pipeline_mode = #tpu.pipeline_mode<synchronous>, transform_indices = @transform_6, window_bounds = array<i64: 1, 32>}, {pipeline_mode = #tpu.pipeline_mode<synchronous>, transform_indices = @transform_7, window_bounds = array<i64: 1, 32>}, {pipeline_mode = #tpu.pipeline_mode<synchronous>, transform_indices = @transform_8, window_bounds = array<i64: 32, 32>}, {pipeline_mode = #tpu.pipeline_mode<synchronous>, transform_indices = @transform_9, window_bounds = array<i64: 1, 32>}, {pipeline_mode = #tpu.pipeline_mode<synchronous>, transform_indices = @transform_10, window_bounds = array<i64: 32, 32>}, {pipeline_mode = #tpu.pipeline_mode<synchronous>, transform_indices = @transform_11, window_bounds = array<i64: 1, 32>}, {pipeline_mode = #tpu.pipeline_mode<synchronous>, transform_indices = @transform_12, window_bounds = array<i64: 4, 32>}, {pipeline_mode = #tpu.pipeline_mode<synchronous>, transform_indices = @transform_13, window_bounds = array<i64: 1, 32>}, {pipeline_mode = #tpu.pipeline_mode<synchronous>, transform_indices = @transform_14, window_bounds = array<i64: 1, 32>}, {pipeline_mode = #tpu.pipeline_mode<synchronous>, transform_indices = @transform_15, window_bounds = array<i64: 1, 32>}, {pipeline_mode = #tpu.pipeline_mode<synchronous>, transform_indices = @transform_16, window_bounds = array<i64: 32, 32>}, {pipeline_mode = #tpu.pipeline_mode<synchronous>, transform_indices = @transform_17, window_bounds = array<i64: 1, 32>}, {pipeline_mode = #tpu.pipeline_mode<synchronous>, transform_indices = @transform_18, window_bounds = array<i64: 32, 64>}, {pipeline_mode = #tpu.pipeline_mode<synchronous>, transform_indices = @transform_19, window_bounds = array<i64: 1, 64>}, {pipeline_mode = #tpu.pipeline_mode<synchronous>, transform_indices = @transform_20, window_bounds = array<i64: 32, 32>}, {pipeline_mode = #tpu.pipeline_mode<synchronous>, transform_indices = @transform_21, window_bounds = array<i64: 1, 32>}, {pipeline_mode = #tpu.pipeline_mode<synchronous>, transform_indices = @transform_22, window_bounds = array<i64: 4, 32>}, {pipeline_mode = #tpu.pipeline_mode<synchronous>, transform_indices = @transform_23, window_bounds = array<i64: 4, 1>}, {transform_indices = @transform_24, window_bounds = array<i64: 1, 4, 256>}]} {
    %c0 = arith.constant 0 : index
    %c0_0 = arith.constant 0 : index
    %c0_1 = arith.constant 0 : index
    %0 = vector.load %arg4[%c0, %c0_0, %c0_1] : memref<1x1x32xf32, #tpu.memory_space<vmem>>, vector<1x1x32xf32>
    %1 = vector.shape_cast %0 : vector<1x1x32xf32> to vector<1x32xf32>
    %c0_2 = arith.constant 0 : index
    %c0_3 = arith.constant 0 : index
    %2 = vector.load %arg5[%c0_2, %c0_3] : memref<32x128xf32, #tpu.memory_space<vmem>>, vector<32x128xf32>
    %cst = arith.constant dense<0.000000e+00> : vector<1x128xf32>
    %3 = tpu.matmul %1, %2, %cst {dimension_numbers = #tpu.dot_dimension_numbers<[1], [0], [0], [1], [0, 0, 1, 1], [], []>} : vector<1x32xf32>, vector<32x128xf32>, vector<1x128xf32> -> vector<1x128xf32>
    %c0_4 = arith.constant 0 : index
    %c0_5 = arith.constant 0 : index
    %4 = vector.load %arg6[%c0_4, %c0_5] : memref<1x128xf32, #tpu.memory_space<vmem>>, vector<1x128xf32>
    %5 = arith.addf %3, %4 : vector<1x128xf32>
    %6 = vector.extract_strided_slice %5 {offsets = [0, 0], sizes = [1, 32], strides = [1, 1]} : vector<1x128xf32> to vector<1x32xf32>
    %7 = vector.extract_strided_slice %5 {offsets = [0, 32], sizes = [1, 32], strides = [1, 1]} : vector<1x128xf32> to vector<1x32xf32>
    %8 = vector.extract_strided_slice %5 {offsets = [0, 64], sizes = [1, 32], strides = [1, 1]} : vector<1x128xf32> to vector<1x32xf32>
    %9 = vector.extract_strided_slice %5 {offsets = [0, 96], sizes = [1, 32], strides = [1, 1]} : vector<1x128xf32> to vector<1x32xf32>
    %10 = tpu.concatenate %6, %7, %8, %9 in 0 : vector<1x32xf32>, vector<1x32xf32>, vector<1x32xf32>, vector<1x32xf32> -> vector<4x32xf32>
    %c0_6 = arith.constant 0 : index
    %c0_7 = arith.constant 0 : index
    %11 = vector.load %arg7[%c0_6, %c0_7] : memref<1x32xf32, #tpu.memory_space<vmem>>, vector<1x32xf32>
    %c0_8 = arith.constant 0 : index
    %c0_9 = arith.constant 0 : index
    %12 = vector.load %arg8[%c0_8, %c0_9] : memref<1x32xf32, #tpu.memory_space<vmem>>, vector<1x32xf32>
    %cst_10 = arith.constant dense<0.000000e+00> : vector<4xf32>
    %13 = vector.multi_reduction <add>, %10, %cst_10 [1] : vector<4x32xf32> to vector<4xf32>
    %14 = vector.shape_cast %13 : vector<4xf32> to vector<4x1xf32>
    %cst_11 = arith.constant 3.200000e+01 : f32
    %15 = vector.broadcast %cst_11 : f32 to vector<4x1xf32>
    %16 = arith.divf %14, %15 : vector<4x1xf32>
    %17 = vector.broadcast %16 : vector<4x1xf32> to vector<4x32xf32>
    %18 = arith.subf %10, %17 : vector<4x32xf32>
    %19 = arith.mulf %18, %18 : vector<4x32xf32>
    %cst_12 = arith.constant dense<0.000000e+00> : vector<4xf32>
    %20 = vector.multi_reduction <add>, %19, %cst_12 [1] : vector<4x32xf32> to vector<4xf32>
    %21 = vector.shape_cast %20 : vector<4xf32> to vector<4x1xf32>
    %cst_13 = arith.constant 3.200000e+01 : f32
    %22 = vector.broadcast %cst_13 : f32 to vector<4x1xf32>
    %23 = arith.divf %21, %22 : vector<4x1xf32>
    %24 = vector.broadcast %16 : vector<4x1xf32> to vector<4x32xf32>
    %25 = arith.subf %10, %24 : vector<4x32xf32>
    %cst_14 = arith.constant 9.99999974E-6 : f32
    %26 = vector.broadcast %cst_14 : f32 to vector<4x1xf32>
    %27 = arith.addf %23, %26 : vector<4x1xf32>
    %28 = math.rsqrt %27 : vector<4x1xf32>
    %29 = vector.broadcast %28 : vector<4x1xf32> to vector<4x32xf32>
    %30 = arith.mulf %25, %29 : vector<4x32xf32>
    %31 = vector.broadcast %11 : vector<1x32xf32> to vector<4x32xf32>
    %32 = arith.mulf %30, %31 : vector<4x32xf32>
    %33 = vector.broadcast %12 : vector<1x32xf32> to vector<4x32xf32>
    %34 = arith.addf %32, %33 : vector<4x32xf32>
    %c0_15 = arith.constant 0 : index
    %c0_16 = arith.constant 0 : index
    %c0_17 = arith.constant 0 : index
    %35 = vector.load %arg3[%c0_15, %c0_16, %c0_17] : memref<1x8x32xf32, #tpu.memory_space<vmem>>, vector<1x8x32xf32>
    %36 = vector.shape_cast %35 : vector<1x8x32xf32> to vector<8x32xf32>
    %cst_18 = arith.constant 0.000000e+00 : f32
    %37 = vector.broadcast %cst_18 : f32 to vector<4x32xf32>
    %38 = tpu.concatenate %36, %34, %37 in 0 : vector<8x32xf32>, vector<4x32xf32>, vector<4x32xf32> -> vector<16x32xf32>
    %c0_19 = arith.constant 0 : index
    %c0_20 = arith.constant 0 : index
    %c0_21 = arith.constant 0 : index
    %39 = vector.load %arg2[%c0_19, %c0_20, %c0_21] : memref<1x1x32xf32, #tpu.memory_space<vmem>>, vector<1x1x32xf32>
    %40 = vector.shape_cast %39 : vector<1x1x32xf32> to vector<1x32xf32>
    %c0_22 = arith.constant 0 : index
    %c0_23 = arith.constant 0 : index
    %41 = vector.load %arg9[%c0_22, %c0_23] : memref<32x32xf32, #tpu.memory_space<vmem>>, vector<32x32xf32>
    %cst_24 = arith.constant dense<0.000000e+00> : vector<1x32xf32>
    %42 = tpu.matmul %40, %41, %cst_24 {dimension_numbers = #tpu.dot_dimension_numbers<[1], [0], [0], [1], [0, 0, 1, 1], [], []>} : vector<1x32xf32>, vector<32x32xf32>, vector<1x32xf32> -> vector<1x32xf32>
    %c0_25 = arith.constant 0 : index
    %c0_26 = arith.constant 0 : index
    %43 = vector.load %arg10[%c0_25, %c0_26] : memref<1x32xf32, #tpu.memory_space<vmem>>, vector<1x32xf32>
    %44 = arith.addf %42, %43 : vector<1x32xf32>
    %45 = arith.negf %44 : vector<1x32xf32>
    %46 = math.exp %45 : vector<1x32xf32>
    %cst_27 = arith.constant 1.000000e+00 : f32
    %47 = vector.broadcast %cst_27 : f32 to vector<1x32xf32>
    %48 = arith.addf %47, %46 : vector<1x32xf32>
    %49 = arith.divf %47, %48 : vector<1x32xf32>
    %50 = arith.mulf %44, %49 : vector<1x32xf32>
    %c0_28 = arith.constant 0 : index
    %c0_29 = arith.constant 0 : index
    %51 = vector.load %arg11[%c0_28, %c0_29] : memref<32x32xf32, #tpu.memory_space<vmem>>, vector<32x32xf32>
    %cst_30 = arith.constant dense<0.000000e+00> : vector<1x32xf32>
    %52 = tpu.matmul %50, %51, %cst_30 {dimension_numbers = #tpu.dot_dimension_numbers<[1], [0], [0], [1], [0, 0, 1, 1], [], []>} : vector<1x32xf32>, vector<32x32xf32>, vector<1x32xf32> -> vector<1x32xf32>
    %c0_31 = arith.constant 0 : index
    %c0_32 = arith.constant 0 : index
    %53 = vector.load %arg12[%c0_31, %c0_32] : memref<1x32xf32, #tpu.memory_space<vmem>>, vector<1x32xf32>
    %54 = arith.addf %52, %53 : vector<1x32xf32>
    %c0_33 = arith.constant 0 : index
    %c0_34 = arith.constant 0 : index
    %c0_35 = arith.constant 0 : index
    %55 = vector.load %arg1[%c0_33, %c0_34, %c0_35] : memref<1x256x4xf32, #tpu.memory_space<vmem>>, vector<1x256x4xf32>
    %56 = vector.shape_cast %55 : vector<1x256x4xf32> to vector<256x4xf32>
    %c0_36 = arith.constant 0 : index
    %c0_37 = arith.constant 0 : index
    %57 = vector.load %arg13[%c0_36, %c0_37] : memref<4x32xf32, #tpu.memory_space<vmem>>, vector<4x32xf32>
    %cst_38 = arith.constant dense<0.000000e+00> : vector<256x32xf32>
    %58 = tpu.matmul %56, %57, %cst_38 {dimension_numbers = #tpu.dot_dimension_numbers<[1], [0], [0], [1], [0, 0, 1, 1], [], []>} : vector<256x4xf32>, vector<4x32xf32>, vector<256x32xf32> -> vector<256x32xf32>
    %c0_39 = arith.constant 0 : index
    %c0_40 = arith.constant 0 : index
    %59 = vector.load %arg14[%c0_39, %c0_40] : memref<1x32xf32, #tpu.memory_space<vmem>>, vector<1x32xf32>
    %60 = vector.broadcast %59 : vector<1x32xf32> to vector<256x32xf32>
    %61 = arith.addf %58, %60 : vector<256x32xf32>
    %62 = vector.broadcast %54 : vector<1x32xf32> to vector<256x32xf32>
    %63 = arith.addf %61, %62 : vector<256x32xf32>
    %c0_41 = arith.constant 0 : index
    %c0_42 = arith.constant 0 : index
    %64 = vector.load %arg15[%c0_41, %c0_42] : memref<1x32xf32, #tpu.memory_space<vmem>>, vector<1x32xf32>
    %c0_43 = arith.constant 0 : index
    %c0_44 = arith.constant 0 : index
    %65 = vector.load %arg16[%c0_43, %c0_44] : memref<1x32xf32, #tpu.memory_space<vmem>>, vector<1x32xf32>
    %cst_45 = arith.constant dense<0.000000e+00> : vector<256xf32>
    %66 = vector.multi_reduction <add>, %63, %cst_45 [1] : vector<256x32xf32> to vector<256xf32>
    %67 = vector.shape_cast %66 : vector<256xf32> to vector<256x1xf32>
    %cst_46 = arith.constant 3.200000e+01 : f32
    %68 = vector.broadcast %cst_46 : f32 to vector<256x1xf32>
    %69 = arith.divf %67, %68 : vector<256x1xf32>
    %70 = vector.broadcast %69 : vector<256x1xf32> to vector<256x32xf32>
    %71 = arith.subf %63, %70 : vector<256x32xf32>
    %72 = arith.mulf %71, %71 : vector<256x32xf32>
    %cst_47 = arith.constant dense<0.000000e+00> : vector<256xf32>
    %73 = vector.multi_reduction <add>, %72, %cst_47 [1] : vector<256x32xf32> to vector<256xf32>
    %74 = vector.shape_cast %73 : vector<256xf32> to vector<256x1xf32>
    %cst_48 = arith.constant 3.200000e+01 : f32
    %75 = vector.broadcast %cst_48 : f32 to vector<256x1xf32>
    %76 = arith.divf %74, %75 : vector<256x1xf32>
    %77 = vector.broadcast %69 : vector<256x1xf32> to vector<256x32xf32>
    %78 = arith.subf %63, %77 : vector<256x32xf32>
    %cst_49 = arith.constant 9.99999974E-6 : f32
    %79 = vector.broadcast %cst_49 : f32 to vector<256x1xf32>
    %80 = arith.addf %76, %79 : vector<256x1xf32>
    %81 = math.rsqrt %80 : vector<256x1xf32>
    %82 = vector.broadcast %81 : vector<256x1xf32> to vector<256x32xf32>
    %83 = arith.mulf %78, %82 : vector<256x32xf32>
    %84 = vector.broadcast %64 : vector<1x32xf32> to vector<256x32xf32>
    %85 = arith.mulf %83, %84 : vector<256x32xf32>
    %86 = vector.broadcast %65 : vector<1x32xf32> to vector<256x32xf32>
    %87 = arith.addf %85, %86 : vector<256x32xf32>
    %c0_50 = arith.constant 0 : index
    %c0_51 = arith.constant 0 : index
    %88 = vector.load %arg17[%c0_50, %c0_51] : memref<32x32xf32, #tpu.memory_space<vmem>>, vector<32x32xf32>
    %cst_52 = arith.constant dense<0.000000e+00> : vector<256x32xf32>
    %89 = tpu.matmul %87, %88, %cst_52 {dimension_numbers = #tpu.dot_dimension_numbers<[1], [0], [0], [1], [0, 0, 1, 1], [], []>} : vector<256x32xf32>, vector<32x32xf32>, vector<256x32xf32> -> vector<256x32xf32>
    %c0_53 = arith.constant 0 : index
    %c0_54 = arith.constant 0 : index
    %90 = vector.load %arg18[%c0_53, %c0_54] : memref<1x32xf32, #tpu.memory_space<vmem>>, vector<1x32xf32>
    %91 = vector.broadcast %90 : vector<1x32xf32> to vector<256x32xf32>
    %92 = arith.addf %89, %91 : vector<256x32xf32>
    %c0_55 = arith.constant 0 : index
    %c0_56 = arith.constant 0 : index
    %93 = vector.load %arg19[%c0_55, %c0_56] : memref<32x64xf32, #tpu.memory_space<vmem>>, vector<32x64xf32>
    %cst_57 = arith.constant dense<0.000000e+00> : vector<16x64xf32>
    %94 = tpu.matmul %38, %93, %cst_57 {dimension_numbers = #tpu.dot_dimension_numbers<[1], [0], [0], [1], [0, 0, 1, 1], [], []>} : vector<16x32xf32>, vector<32x64xf32>, vector<16x64xf32> -> vector<16x64xf32>
    %c0_58 = arith.constant 0 : index
    %c0_59 = arith.constant 0 : index
    %95 = vector.load %arg20[%c0_58, %c0_59] : memref<1x64xf32, #tpu.memory_space<vmem>>, vector<1x64xf32>
    %96 = vector.broadcast %95 : vector<1x64xf32> to vector<16x64xf32>
    %97 = arith.addf %94, %96 : vector<16x64xf32>
    %98 = vector.extract_strided_slice %97 {offsets = [0, 0], sizes = [16, 32], strides = [1, 1]} : vector<16x64xf32> to vector<16x32xf32>
    %99 = vector.extract_strided_slice %97 {offsets = [0, 32], sizes = [16, 32], strides = [1, 1]} : vector<16x64xf32> to vector<16x32xf32>
    %cst_60 = arith.constant dense<0.000000e+00> : vector<256x16xf32>
    %100 = tpu.matmul %92, %98, %cst_60 {dimension_numbers = #tpu.dot_dimension_numbers<[1], [1], [0], [0], [0, 0, 1, 0], [], []>} : vector<256x32xf32>, vector<16x32xf32>, vector<256x16xf32> -> vector<256x16xf32>
    %cst_61 = arith.constant 0.176776692 : f32
    %101 = vector.broadcast %cst_61 : f32 to vector<256x16xf32>
    %102 = arith.mulf %100, %101 : vector<256x16xf32>
    %103 = tpu.iota {dimensions = array<i32: 1>} : vector<256x16xi32>
    %c12_i32 = arith.constant 12 : i32
    %104 = vector.broadcast %c12_i32 : i32 to vector<256x16xi32>
    %105 = arith.cmpi slt, %103, %104 : vector<256x16xi32>
    %cst_62 = arith.constant -1.000000e+30 : f32
    %106 = vector.broadcast %cst_62 : f32 to vector<256x16xf32>
    %107 = arith.select %105, %102, %106 : vector<256x16xi1>, vector<256x16xf32>
    %cst_63 = arith.constant dense<0xFF800000> : vector<256xf32>
    %108 = vector.multi_reduction <maximumf>, %107, %cst_63 [1] : vector<256x16xf32> to vector<256xf32>
    %109 = vector.shape_cast %108 : vector<256xf32> to vector<256x1xf32>
    %110 = vector.broadcast %109 : vector<256x1xf32> to vector<256x16xf32>
    %111 = arith.subf %107, %110 : vector<256x16xf32>
    %112 = math.exp %111 : vector<256x16xf32>
    %cst_64 = arith.constant dense<0.000000e+00> : vector<256xf32>
    %113 = vector.multi_reduction <add>, %112, %cst_64 [1] : vector<256x16xf32> to vector<256xf32>
    %114 = vector.shape_cast %113 : vector<256xf32> to vector<256x1xf32>
    %115 = tpu.reciprocal %114 {approx = true} : vector<256x1xf32> -> vector<256x1xf32>
    %116 = vector.broadcast %115 : vector<256x1xf32> to vector<256x16xf32>
    %117 = arith.mulf %112, %116 : vector<256x16xf32>
    %cst_65 = arith.constant dense<0.000000e+00> : vector<256x32xf32>
    %118 = tpu.matmul %117, %99, %cst_65 {dimension_numbers = #tpu.dot_dimension_numbers<[1], [0], [0], [1], [0, 0, 1, 1], [], []>} : vector<256x16xf32>, vector<16x32xf32>, vector<256x32xf32> -> vector<256x32xf32>
    %c0_66 = arith.constant 0 : index
    %c0_67 = arith.constant 0 : index
    %119 = vector.load %arg21[%c0_66, %c0_67] : memref<32x32xf32, #tpu.memory_space<vmem>>, vector<32x32xf32>
    %cst_68 = arith.constant dense<0.000000e+00> : vector<256x32xf32>
    %120 = tpu.matmul %118, %119, %cst_68 {dimension_numbers = #tpu.dot_dimension_numbers<[1], [0], [0], [1], [0, 0, 1, 1], [], []>} : vector<256x32xf32>, vector<32x32xf32>, vector<256x32xf32> -> vector<256x32xf32>
    %c0_69 = arith.constant 0 : index
    %c0_70 = arith.constant 0 : index
    %121 = vector.load %arg22[%c0_69, %c0_70] : memref<1x32xf32, #tpu.memory_space<vmem>>, vector<1x32xf32>
    %122 = vector.broadcast %121 : vector<1x32xf32> to vector<256x32xf32>
    %123 = arith.addf %120, %122 : vector<256x32xf32>
    %124 = arith.addf %63, %123 : vector<256x32xf32>
    %c0_71 = arith.constant 0 : index
    %c0_72 = arith.constant 0 : index
    %125 = vector.load %arg23[%c0_71, %c0_72] : memref<4x32xf32, #tpu.memory_space<vmem>>, vector<4x32xf32>
    %cst_73 = arith.constant dense<0.000000e+00> : vector<4x256xf32>
    %126 = tpu.matmul %125, %124, %cst_73 {dimension_numbers = #tpu.dot_dimension_numbers<[1], [1], [0], [0], [0, 0, 1, 0], [], []>} : vector<4x32xf32>, vector<256x32xf32>, vector<4x256xf32> -> vector<4x256xf32>
    %c0_74 = arith.constant 0 : index
    %c0_75 = arith.constant 0 : index
    %127 = vector.load %arg24[%c0_74, %c0_75] : memref<4x1xf32, #tpu.memory_space<vmem>>, vector<4x1xf32>
    %128 = vector.broadcast %127 : vector<4x1xf32> to vector<4x256xf32>
    %129 = arith.addf %126, %128 : vector<4x256xf32>
    %c0_76 = arith.constant 0 : index
    %c0_77 = arith.constant 0 : index
    %c0_78 = arith.constant 0 : index
    %130 = vector.load %arg25[%c0_76, %c0_77, %c0_78] : memref<1x4x256xf32, #tpu.memory_space<vmem>>, vector<1x4x256xf32>
    %131 = vector.shape_cast %130 : vector<1x4x256xf32> to vector<4x256xf32>
    %132 = vector.shape_cast %129 : vector<4x256xf32> to vector<1x4x256xf32>
    tpu.vector_store %arg25[%c0_76, %c0_77, %c0_78], %132 {strides = array<i32>} : memref<1x4x256xf32, #tpu.memory_space<vmem>>, vector<1x4x256xf32>,
    return
  }
  func.func @transform_0(%arg0: i32) -> (i32, i32, i32) {
    %c0_i32 = arith.constant 0 : i32
    %c0_i32_0 = arith.constant 0 : i32
    %c0_i32_1 = arith.constant 0 : i32
    return %arg0, %c0_i32, %c0_i32_0 : i32, i32, i32
  }
  func.func @transform_1(%arg0: i32) -> (i32, i32, i32) {
    %c0_i32 = arith.constant 0 : i32
    %c0_i32_0 = arith.constant 0 : i32
    %c0_i32_1 = arith.constant 0 : i32
    return %arg0, %c0_i32, %c0_i32_0 : i32, i32, i32
  }
  func.func @transform_2(%arg0: i32) -> (i32, i32, i32) {
    %c0_i32 = arith.constant 0 : i32
    %c0_i32_0 = arith.constant 0 : i32
    %c0_i32_1 = arith.constant 0 : i32
    return %arg0, %c0_i32, %c0_i32_0 : i32, i32, i32
  }
  func.func @transform_3(%arg0: i32) -> (i32, i32, i32) {
    %c0_i32 = arith.constant 0 : i32
    %c0_i32_0 = arith.constant 0 : i32
    %c0_i32_1 = arith.constant 0 : i32
    return %arg0, %c0_i32, %c0_i32_0 : i32, i32, i32
  }
  func.func @transform_4(%arg0: i32) -> (i32, i32) {
    %c0_i32 = arith.constant 0 : i32
    %c0_i32_0 = arith.constant 0 : i32
    %c0_i32_1 = arith.constant 0 : i32
    return %c0_i32, %c0_i32_0 : i32, i32
  }
  func.func @transform_5(%arg0: i32) -> (i32, i32) {
    %c0_i32 = arith.constant 0 : i32
    %c0_i32_0 = arith.constant 0 : i32
    %c0_i32_1 = arith.constant 0 : i32
    return %c0_i32, %c0_i32_0 : i32, i32
  }
  func.func @transform_6(%arg0: i32) -> (i32, i32) {
    %c0_i32 = arith.constant 0 : i32
    %c0_i32_0 = arith.constant 0 : i32
    %c0_i32_1 = arith.constant 0 : i32
    return %c0_i32, %c0_i32_0 : i32, i32
  }
  func.func @transform_7(%arg0: i32) -> (i32, i32) {
    %c0_i32 = arith.constant 0 : i32
    %c0_i32_0 = arith.constant 0 : i32
    %c0_i32_1 = arith.constant 0 : i32
    return %c0_i32, %c0_i32_0 : i32, i32
  }
  func.func @transform_8(%arg0: i32) -> (i32, i32) {
    %c0_i32 = arith.constant 0 : i32
    %c0_i32_0 = arith.constant 0 : i32
    %c0_i32_1 = arith.constant 0 : i32
    return %c0_i32, %c0_i32_0 : i32, i32
  }
  func.func @transform_9(%arg0: i32) -> (i32, i32) {
    %c0_i32 = arith.constant 0 : i32
    %c0_i32_0 = arith.constant 0 : i32
    %c0_i32_1 = arith.constant 0 : i32
    return %c0_i32, %c0_i32_0 : i32, i32
  }
  func.func @transform_10(%arg0: i32) -> (i32, i32) {
    %c0_i32 = arith.constant 0 : i32
    %c0_i32_0 = arith.constant 0 : i32
    %c0_i32_1 = arith.constant 0 : i32
    return %c0_i32, %c0_i32_0 : i32, i32
  }
  func.func @transform_11(%arg0: i32) -> (i32, i32) {
    %c0_i32 = arith.constant 0 : i32
    %c0_i32_0 = arith.constant 0 : i32
    %c0_i32_1 = arith.constant 0 : i32
    return %c0_i32, %c0_i32_0 : i32, i32
  }
  func.func @transform_12(%arg0: i32) -> (i32, i32) {
    %c0_i32 = arith.constant 0 : i32
    %c0_i32_0 = arith.constant 0 : i32
    %c0_i32_1 = arith.constant 0 : i32
    return %c0_i32, %c0_i32_0 : i32, i32
  }
  func.func @transform_13(%arg0: i32) -> (i32, i32) {
    %c0_i32 = arith.constant 0 : i32
    %c0_i32_0 = arith.constant 0 : i32
    %c0_i32_1 = arith.constant 0 : i32
    return %c0_i32, %c0_i32_0 : i32, i32
  }
  func.func @transform_14(%arg0: i32) -> (i32, i32) {
    %c0_i32 = arith.constant 0 : i32
    %c0_i32_0 = arith.constant 0 : i32
    %c0_i32_1 = arith.constant 0 : i32
    return %c0_i32, %c0_i32_0 : i32, i32
  }
  func.func @transform_15(%arg0: i32) -> (i32, i32) {
    %c0_i32 = arith.constant 0 : i32
    %c0_i32_0 = arith.constant 0 : i32
    %c0_i32_1 = arith.constant 0 : i32
    return %c0_i32, %c0_i32_0 : i32, i32
  }
  func.func @transform_16(%arg0: i32) -> (i32, i32) {
    %c0_i32 = arith.constant 0 : i32
    %c0_i32_0 = arith.constant 0 : i32
    %c0_i32_1 = arith.constant 0 : i32
    return %c0_i32, %c0_i32_0 : i32, i32
  }
  func.func @transform_17(%arg0: i32) -> (i32, i32) {
    %c0_i32 = arith.constant 0 : i32
    %c0_i32_0 = arith.constant 0 : i32
    %c0_i32_1 = arith.constant 0 : i32
    return %c0_i32, %c0_i32_0 : i32, i32
  }
  func.func @transform_18(%arg0: i32) -> (i32, i32) {
    %c0_i32 = arith.constant 0 : i32
    %c0_i32_0 = arith.constant 0 : i32
    %c0_i32_1 = arith.constant 0 : i32
    return %c0_i32, %c0_i32_0 : i32, i32
  }
  func.func @transform_19(%arg0: i32) -> (i32, i32) {
    %c0_i32 = arith.constant 0 : i32
    %c0_i32_0 = arith.constant 0 : i32
    %c0_i32_1 = arith.constant 0 : i32
    return %c0_i32, %c0_i32_0 : i32, i32
  }
  func.func @transform_20(%arg0: i32) -> (i32, i32) {
    %c0_i32 = arith.constant 0 : i32
    %c0_i32_0 = arith.constant 0 : i32
    %c0_i32_1 = arith.constant 0 : i32
    return %c0_i32, %c0_i32_0 : i32, i32
  }
  func.func @transform_21(%arg0: i32) -> (i32, i32) {
    %c0_i32 = arith.constant 0 : i32
    %c0_i32_0 = arith.constant 0 : i32
    %c0_i32_1 = arith.constant 0 : i32
    return %c0_i32, %c0_i32_0 : i32, i32
  }
  func.func @transform_22(%arg0: i32) -> (i32, i32) {
    %c0_i32 = arith.constant 0 : i32
    %c0_i32_0 = arith.constant 0 : i32
    %c0_i32_1 = arith.constant 0 : i32
    return %c0_i32, %c0_i32_0 : i32, i32
  }
  func.func @transform_23(%arg0: i32) -> (i32, i32) {
    %c0_i32 = arith.constant 0 : i32
    %c0_i32_0 = arith.constant 0 : i32
    %c0_i32_1 = arith.constant 0 : i32
    return %c0_i32, %c0_i32_0 : i32, i32
  }
  func.func @transform_24(%arg0: i32) -> (i32, i32, i32) {
    %c0_i32 = arith.constant 0 : i32
    %c0_i32_0 = arith.constant 0 : i32
    %c0_i32_1 = arith.constant 0 : i32
    return %arg0, %c0_i32, %c0_i32_0 : i32, i32, i32
  }
}

</mosaic_0001>

<llo_original>
// kernel: ip_adapter_forward.1
$region0: #{ip_adapter_forward.1}
  #allocation0 [shape = 'u32[]', space=smem, size = 0x4, offset = 0x4, fixed_abs, tag = 'smem constant byte address 0x4 - core index']
  #allocation1 [shape = 'u32[144,128]{1,0:T(1,128)}', space=vmem, size = 0x12000, scoped, tag = 'internal scratch']
  %s0 = inlined_call_operand.vmem [shape: f32[2,256,4], index: 0, kind: input, shape index: {}]
  %s1 = inlined_call_operand.vmem [shape: f32[2,1,32], index: 1, kind: input, shape index: {}]
  %s2 = inlined_call_operand.vmem [shape: f32[2,8,32], index: 2, kind: input, shape index: {}]
  %s3 = inlined_call_operand.vmem [shape: f32[2,1,32], index: 3, kind: input, shape index: {}]
  %s4 = inlined_call_operand.vmem [shape: f32[32,128], index: 4, kind: input, shape index: {}]
  %s5 = inlined_call_operand.vmem [shape: f32[1,128], index: 5, kind: input, shape index: {}]
  %s6 = inlined_call_operand.vmem [shape: f32[1,32], index: 6, kind: input, shape index: {}]
  %s7 = inlined_call_operand.vmem [shape: f32[1,32], index: 7, kind: input, shape index: {}]
  %s8 = inlined_call_operand.vmem [shape: f32[32,32], index: 8, kind: input, shape index: {}]
  %s9 = inlined_call_operand.vmem [shape: f32[1,32], index: 9, kind: input, shape index: {}]
  %s10 = inlined_call_operand.vmem [shape: f32[32,32], index: 10, kind: input, shape index: {}]
  %s11 = inlined_call_operand.vmem [shape: f32[1,32], index: 11, kind: input, shape index: {}]
  %s12 = inlined_call_operand.vmem [shape: f32[4,32], index: 12, kind: input, shape index: {}]
  %s13 = inlined_call_operand.vmem [shape: f32[1,32], index: 13, kind: input, shape index: {}]
  %s14 = inlined_call_operand.vmem [shape: f32[1,32], index: 14, kind: input, shape index: {}]
  %s15 = inlined_call_operand.vmem [shape: f32[1,32], index: 15, kind: input, shape index: {}]
  %s16 = inlined_call_operand.vmem [shape: f32[32,32], index: 16, kind: input, shape index: {}]
  %s17 = inlined_call_operand.vmem [shape: f32[1,32], index: 17, kind: input, shape index: {}]
  %s18 = inlined_call_operand.vmem [shape: f32[32,64], index: 18, kind: input, shape index: {}]
  %s19 = inlined_call_operand.vmem [shape: f32[1,64], index: 19, kind: input, shape index: {}]
  %s20 = inlined_call_operand.vmem [shape: f32[32,32], index: 20, kind: input, shape index: {}]
  %s21 = inlined_call_operand.vmem [shape: f32[1,32], index: 21, kind: input, shape index: {}]
  %s22 = inlined_call_operand.vmem [shape: f32[4,32], index: 22, kind: input, shape index: {}]
  %s23 = inlined_call_operand.vmem [shape: f32[4,1], index: 23, kind: input, shape index: {}]
  %s24 = inlined_call_operand.vmem [shape: f32[2,4,256], index: 24, kind: output, shape index: {}]
  %s25 = sld [smem:[#allocation0]]
  $region129: #{ip_adapter_forward.1} parent=0
    _
  %s27 = ssub.s32 1, %s25
  %s28 = scalar_select 0, %s27, %s25
  loop: start=0, step=1, limit=4
  $region2: #{ip_adapter_forward.1} parent=0 // loop_pre_header
    _
  $region3: #{ip_adapter_forward.1} parent=0 // loop_header
    %s30 = sphi 0, %s34
    %p31 = scmp.ge.s32.totalorder %s30, 4
    %s40 = sphi 0, %s42
    %s43 = sphi 0, %s40
    %s44 = sphi 0, %s43
    %s60 = sphi 0, %s44
    %s66 = sphi 0, %s68
    %s69 = sphi 0, %s66
    %s70 = sphi 0, %s69
    %s86 = sphi 0, %s70
    %s92 = sphi 0, %s94
    %s95 = sphi 0, %s92
    %s96 = sphi 0, %s95
    %s112 = sphi 0, %s96
    %s118 = sphi 0, %s120
    %s121 = sphi 0, %s118
    %s122 = sphi 0, %s121
    %s138 = sphi 0, %s122
    %s142 = sphi 0, %s142
    %s144 = sphi 0, %s142
    %s145 = sphi 0, %s144
    %s159 = sphi 0, %s145
    %s163 = sphi 0, %s163
    %s165 = sphi 0, %s163
    %s166 = sphi 0, %s165
    %s180 = sphi 0, %s166
    %s184 = sphi 0, %s184
    %s186 = sphi 0, %s184
    %s187 = sphi 0, %s186
    %s201 = sphi 0, %s187
    %s205 = sphi 0, %s205
    %s207 = sphi 0, %s205
    %s208 = sphi 0, %s207
    %s222 = sphi 0, %s208
    %s226 = sphi 0, %s226
    %s228 = sphi 0, %s226
    %s229 = sphi 0, %s228
    %s243 = sphi 0, %s229
    %s247 = sphi 0, %s247
    %s249 = sphi 0, %s247
    %s250 = sphi 0, %s249
    %s264 = sphi 0, %s250
    %s268 = sphi 0, %s268
    %s270 = sphi 0, %s268
    %s271 = sphi 0, %s270
    %s285 = sphi 0, %s271
    %s289 = sphi 0, %s289
    %s291 = sphi 0, %s289
    %s292 = sphi 0, %s291
    %s306 = sphi 0, %s292
    %s310 = sphi 0, %s310
    %s312 = sphi 0, %s310
    %s313 = sphi 0, %s312
    %s327 = sphi 0, %s313
    %s331 = sphi 0, %s331
    %s333 = sphi 0, %s331
    %s334 = sphi 0, %s333
    %s348 = sphi 0, %s334
    %s352 = sphi 0, %s352
    %s354 = sphi 0, %s352
    %s355 = sphi 0, %s354
    %s369 = sphi 0, %s355
    %s373 = sphi 0, %s373
    %s375 = sphi 0, %s373
    %s376 = sphi 0, %s375
    %s390 = sphi 0, %s376
    %s394 = sphi 0, %s394
    %s396 = sphi 0, %s394
    %s397 = sphi 0, %s396
    %s411 = sphi 0, %s397
    %s415 = sphi 0, %s415
    %s417 = sphi 0, %s415
    %s418 = sphi 0, %s417
    %s432 = sphi 0, %s418
    %s436 = sphi 0, %s436
    %s438 = sphi 0, %s436
    %s439 = sphi 0, %s438
    %s453 = sphi 0, %s439
    %s457 = sphi 0, %s457
    %s459 = sphi 0, %s457
    %s460 = sphi 0, %s459
    %s474 = sphi 0, %s460
    %s478 = sphi 0, %s478
    %s480 = sphi 0, %s478
    %s481 = sphi 0, %s480
    %s495 = sphi 0, %s481
    %s499 = sphi 0, %s499
    %s501 = sphi 0, %s499
    %s502 = sphi 0, %s501
    %s516 = sphi 0, %s502
    %s520 = sphi 0, %s520
    %s522 = sphi 0, %s520
    %s523 = sphi 0, %s522
    %s537 = sphi 0, %s523
    %s541 = sphi 0, %s541
    %s543 = sphi 0, %s541
    %s544 = sphi 0, %s543
    %s558 = sphi 0, %s544
    %s564 = sphi 0, %s566
    %s567 = sphi 0, %s564
    %s568 = sphi 0, %s567
    %s584 = sphi 0, %s568
  $region4: #{ip_adapter_forward.1} parent=0 // loop_header_branch
    %33 = sbr.rel (%p31) target = $region8
  $region5: #{ip_adapter_forward.1} parent=0 // loop_body
    %s35 = ssub.s32 %s30, 1
    %s36 = ssub.s32 %s30, 2
    %s37 = sadd.s32 %s30, 1
    %s38 = ssub.s32 %s30, %s37
    %p39 = scmp.eq.s32.totalorder %s38, 0
    %s41 = sadd.s32 %s40, 1
    %s42 = scalar_select %p39, %s40, %s41
    %p45 = pneg %p39
    %p46 = scmp.eq.s32.totalorder %s30, 1
    %p47 = por %p45, %p46
    %p48 = scmp.ne.s32.totalorder %s40, %s43
    %p49 = scmp.eq.s32.totalorder %s30, 0
    %p50 = por %p48, %p49
    %p51 = scmp.ne.s32.totalorder %s40, %s43
    %p52 = scmp.eq.s32.totalorder %s35, 1
    %p53 = por %p51, %p52
    %p54 = scmp.ne.s32.totalorder %s43, %s44
    %p55 = scmp.eq.s32.totalorder %s35, 0
    %p56 = por %p54, %p55
    %p57 = scmp.ne.s32.totalorder %s43, %s44
    %p58 = scmp.eq.s32.totalorder %s36, 1
    %p59 = por %p57, %p58
    %p61 = scmp.ne.s32.totalorder %s44, %s60
    %p62 = scmp.eq.s32.totalorder %s36, 0
    %p63 = por %p61, %p62
    %s64 = ssub.s32 %s30, %s37
    %p65 = scmp.eq.s32.totalorder %s64, 0
    %s67 = sadd.s32 %s66, 1
    %s68 = scalar_select %p65, %s66, %s67
    %p71 = pneg %p65
    %p72 = scmp.eq.s32.totalorder %s30, 1
    %p73 = por %p71, %p72
    %p74 = scmp.ne.s32.totalorder %s66, %s69
    %p75 = scmp.eq.s32.totalorder %s30, 0
    %p76 = por %p74, %p75
    %p77 = scmp.ne.s32.totalorder %s66, %s69
    %p78 = scmp.eq.s32.totalorder %s35, 1
    %p79 = por %p77, %p78
    %p80 = scmp.ne.s32.totalorder %s69, %s70
    %p81 = scmp.eq.s32.totalorder %s35, 0
    %p82 = por %p80, %p81
    %p83 = scmp.ne.s32.totalorder %s69, %s70
    %p84 = scmp.eq.s32.totalorder %s36, 1
    %p85 = por %p83, %p84
    %p87 = scmp.ne.s32.totalorder %s70, %s86
    %p88 = scmp.eq.s32.totalorder %s36, 0
    %p89 = por %p87, %p88
    %s90 = ssub.s32 %s30, %s37
    %p91 = scmp.eq.s32.totalorder %s90, 0
    %s93 = sadd.s32 %s92, 1
    %s94 = scalar_select %p91, %s92, %s93
    %p97 = pneg %p91
    %p98 = scmp.eq.s32.totalorder %s30, 1
    %p99 = por %p97, %p98
    %p100 = scmp.ne.s32.totalorder %s92, %s95
    %p101 = scmp.eq.s32.totalorder %s30, 0
    %p102 = por %p100, %p101
    %p103 = scmp.ne.s32.totalorder %s92, %s95
    %p104 = scmp.eq.s32.totalorder %s35, 1
    %p105 = por %p103, %p104
    %p106 = scmp.ne.s32.totalorder %s95, %s96
    %p107 = scmp.eq.s32.totalorder %s35, 0
    %p108 = por %p106, %p107
    %p109 = scmp.ne.s32.totalorder %s95, %s96
    %p110 = scmp.eq.s32.totalorder %s36, 1
    %p111 = por %p109, %p110
    %p113 = scmp.ne.s32.totalorder %s96, %s112
    %p114 = scmp.eq.s32.totalorder %s36, 0
    %p115 = por %p113, %p114
    %s116 = ssub.s32 %s30, %s37
    %p117 = scmp.eq.s32.totalorder %s116, 0
    %s119 = sadd.s32 %s118, 1
    %s120 = scalar_select %p117, %s118, %s119
    %p123 = pneg %p117
    %p124 = scmp.eq.s32.totalorder %s30, 1
    %p125 = por %p123, %p124
    %p126 = scmp.ne.s32.totalorder %s118, %s121
    %p127 = scmp.eq.s32.totalorder %s30, 0
    %p128 = por %p126, %p127
    %p129 = scmp.ne.s32.totalorder %s118, %s121
    %p130 = scmp.eq.s32.totalorder %s35, 1
    %p131 = por %p129, %p130
    %p132 = scmp.ne.s32.totalorder %s121, %s122
    %p133 = scmp.eq.s32.totalorder %s35, 0
    %p134 = por %p132, %p133
    %p135 = scmp.ne.s32.totalorder %s121, %s122
    %p136 = scmp.eq.s32.totalorder %s36, 1
    %p137 = por %p135, %p136
    %p139 = scmp.ne.s32.totalorder %s122, %s138
    %p140 = scmp.eq.s32.totalorder %s36, 0
    %p141 = por %p139, %p140
    %s143 = sadd.s32 %s142, 1
    %p146 = scmp.eq.s32.totalorder %s30, 1
    %p147 = scmp.ne.s32.totalorder %s142, %s144
    %p148 = scmp.eq.s32.totalorder %s30, 0
    %p149 = por %p147, %p148
    %p150 = scmp.ne.s32.totalorder %s142, %s144
    %p151 = scmp.eq.s32.totalorder %s35, 1
    %p152 = por %p150, %p151
    %p153 = scmp.ne.s32.totalorder %s144, %s145
    %p154 = scmp.eq.s32.totalorder %s35, 0
    %p155 = por %p153, %p154
    %p156 = scmp.ne.s32.totalorder %s144, %s145
    %p157 = scmp.eq.s32.totalorder %s36, 1
    %p158 = por %p156, %p157
    %p160 = scmp.ne.s32.totalorder %s145, %s159
    %p161 = scmp.eq.s32.totalorder %s36, 0
    %p162 = por %p160, %p161
    %s164 = sadd.s32 %s163, 1
    %p167 = scmp.eq.s32.totalorder %s30, 1
    %p168 = scmp.ne.s32.totalorder %s163, %s165
    %p169 = scmp.eq.s32.totalorder %s30, 0
    %p170 = por %p168, %p169
    %p171 = scmp.ne.s32.totalorder %s163, %s165
    %p172 = scmp.eq.s32.totalorder %s35, 1
    %p173 = por %p171, %p172
    %p174 = scmp.ne.s32.totalorder %s165, %s166
    %p175 = scmp.eq.s32.totalorder %s35, 0
    %p176 = por %p174, %p175
    %p177 = scmp.ne.s32.totalorder %s165, %s166
    %p178 = scmp.eq.s32.totalorder %s36, 1
    %p179 = por %p177, %p178
    %p181 = scmp.ne.s32.totalorder %s166, %s180
    %p182 = scmp.eq.s32.totalorder %s36, 0
    %p183 = por %p181, %p182
    %s185 = sadd.s32 %s184, 1
    %p188 = scmp.eq.s32.totalorder %s30, 1
    %p189 = scmp.ne.s32.totalorder %s184, %s186
    %p190 = scmp.eq.s32.totalorder %s30, 0
    %p191 = por %p189, %p190
    %p192 = scmp.ne.s32.totalorder %s184, %s186
    %p193 = scmp.eq.s32.totalorder %s35, 1
    %p194 = por %p192, %p193
    %p195 = scmp.ne.s32.totalorder %s186, %s187
    %p196 = scmp.eq.s32.totalorder %s35, 0
    %p197 = por %p195, %p196
    %p198 = scmp.ne.s32.totalorder %s186, %s187
    %p199 = scmp.eq.s32.totalorder %s36, 1
    %p200 = por %p198, %p199
    %p202 = scmp.ne.s32.totalorder %s187, %s201
    %p203 = scmp.eq.s32.totalorder %s36, 0
    %p204 = por %p202, %p203
    %s206 = sadd.s32 %s205, 1
    %p209 = scmp.eq.s32.totalorder %s30, 1
    %p210 = scmp.ne.s32.totalorder %s205, %s207
    %p211 = scmp.eq.s32.totalorder %s30, 0
    %p212 = por %p210, %p211
    %p213 = scmp.ne.s32.totalorder %s205, %s207
    %p214 = scmp.eq.s32.totalorder %s35, 1
    %p215 = por %p213, %p214
    %p216 = scmp.ne.s32.totalorder %s207, %s208
    %p217 = scmp.eq.s32.totalorder %s35, 0
    %p218 = por %p216, %p217
    %p219 = scmp.ne.s32.totalorder %s207, %s208
    %p220 = scmp.eq.s32.totalorder %s36, 1
    %p221 = por %p219, %p220
    %p223 = scmp.ne.s32.totalorder %s208, %s222
    %p224 = scmp.eq.s32.totalorder %s36, 0
    %p225 = por %p223, %p224
    %s227 = sadd.s32 %s226, 1
    %p230 = scmp.eq.s32.totalorder %s30, 1
    %p231 = scmp.ne.s32.totalorder %s226, %s228
    %p232 = scmp.eq.s32.totalorder %s30, 0
    %p233 = por %p231, %p232
    %p234 = scmp.ne.s32.totalorder %s226, %s228
    %p235 = scmp.eq.s32.totalorder %s35, 1
    %p236 = por %p234, %p235
    %p237 = scmp.ne.s32.totalorder %s228, %s229
    %p238 = scmp.eq.s32.totalorder %s35, 0
    %p239 = por %p237, %p238
    %p240 = scmp.ne.s32.totalorder %s228, %s229
    %p241 = scmp.eq.s32.totalorder %s36, 1
    %p242 = por %p240, %p241
    %p244 = scmp.ne.s32.totalorder %s229, %s243
    %p245 = scmp.eq.s32.totalorder %s36, 0
    %p246 = por %p244, %p245
    %s248 = sadd.s32 %s247, 1
    %p251 = scmp.eq.s32.totalorder %s30, 1
    %p252 = scmp.ne.s32.totalorder %s247, %s249
    %p253 = scmp.eq.s32.totalorder %s30, 0
    %p254 = por %p252, %p253
    %p255 = scmp.ne.s32.totalorder %s247, %s249
    %p256 = scmp.eq.s32.totalorder %s35, 1
    %p257 = por %p255, %p256
    %p258 = scmp.ne.s32.totalorder %s249, %s250
    %p259 = scmp.eq.s32.totalorder %s35, 0
    %p260 = por %p258, %p259
    %p261 = scmp.ne.s32.totalorder %s249, %s250
    %p262 = scmp.eq.s32.totalorder %s36, 1
    %p263 = por %p261, %p262
    %p265 = scmp.ne.s32.totalorder %s250, %s264
    %p266 = scmp.eq.s32.totalorder %s36, 0
    %p267 = por %p265, %p266
    %s269 = sadd.s32 %s268, 1
    %p272 = scmp.eq.s32.totalorder %s30, 1
    %p273 = scmp.ne.s32.totalorder %s268, %s270
    %p274 = scmp.eq.s32.totalorder %s30, 0
    %p275 = por %p273, %p274
    %p276 = scmp.ne.s32.totalorder %s268, %s270
    %p277 = scmp.eq.s32.totalorder %s35, 1
    %p278 = por %p276, %p277
    %p279 = scmp.ne.s32.totalorder %s270, %s271
    %p280 = scmp.eq.s32.totalorder %s35, 0
    %p281 = por %p279, %p280
    %p282 = scmp.ne.s32.totalorder %s270, %s271
    %p283 = scmp.eq.s32.totalorder %s36, 1
    %p284 = por %p282, %p283
    %p286 = scmp.ne.s32.totalorder %s271, %s285
    %p287 = scmp.eq.s32.totalorder %s36, 0
    %p288 = por %p286, %p287
    %s290 = sadd.s32 %s289, 1
    %p293 = scmp.eq.s32.totalorder %s30, 1
    %p294 = scmp.ne.s32.totalorder %s289, %s291
    %p295 = scmp.eq.s32.totalorder %s30, 0
    %p296 = por %p294, %p295
    %p297 = scmp.ne.s32.totalorder %s289, %s291
    %p298 = scmp.eq.s32.totalorder %s35, 1
    %p299 = por %p297, %p298
    %p300 = scmp.ne.s32.totalorder %s291, %s292
    %p301 = scmp.eq.s32.totalorder %s35, 0
    %p302 = por %p300, %p301
    %p303 = scmp.ne.s32.totalorder %s291, %s292
    %p304 = scmp.eq.s32.totalorder %s36, 1
    %p305 = por %p303, %p304
    %p307 = scmp.ne.s32.totalorder %s292, %s306
    %p308 = scmp.eq.s32.totalorder %s36, 0
    %p309 = por %p307, %p308
    %s311 = sadd.s32 %s310, 1
    %p314 = scmp.eq.s32.totalorder %s30, 1
    %p315 = scmp.ne.s32.totalorder %s310, %s312
    %p316 = scmp.eq.s32.totalorder %s30, 0
    %p317 = por %p315, %p316
    %p318 = scmp.ne.s32.totalorder %s310, %s312
    %p319 = scmp.eq.s32.totalorder %s35, 1
    %p320 = por %p318, %p319
    %p321 = scmp.ne.s32.totalorder %s312, %s313
    %p322 = scmp.eq.s32.totalorder %s35, 0
    %p323 = por %p321, %p322
    %p324 = scmp.ne.s32.totalorder %s312, %s313
    %p325 = scmp.eq.s32.totalorder %s36, 1
    %p326 = por %p324, %p325
    %p328 = scmp.ne.s32.totalorder %s313, %s327
    %p329 = scmp.eq.s32.totalorder %s36, 0
    %p330 = por %p328, %p329
    %s332 = sadd.s32 %s331, 1
    %p335 = scmp.eq.s32.totalorder %s30, 1
    %p336 = scmp.ne.s32.totalorder %s331, %s333
    %p337 = scmp.eq.s32.totalorder %s30, 0
    %p338 = por %p336, %p337
    %p339 = scmp.ne.s32.totalorder %s331, %s333
    %p340 = scmp.eq.s32.totalorder %s35, 1
    %p341 = por %p339, %p340
    %p342 = scmp.ne.s32.totalorder %s333, %s334
    %p343 = scmp.eq.s32.totalorder %s35, 0
    %p344 = por %p342, %p343
    %p345 = scmp.ne.s32.totalorder %s333, %s334
    %p346 = scmp.eq.s32.totalorder %s36, 1
    %p347 = por %p345, %p346
    %p349 = scmp.ne.s32.totalorder %s334, %s348
    %p350 = scmp.eq.s32.totalorder %s36, 0
    %p351 = por %p349, %p350
    %s353 = sadd.s32 %s352, 1
    %p356 = scmp.eq.s32.totalorder %s30, 1
    %p357 = scmp.ne.s32.totalorder %s352, %s354
    %p358 = scmp.eq.s32.totalorder %s30, 0
    %p359 = por %p357, %p358
    %p360 = scmp.ne.s32.totalorder %s352, %s354
    %p361 = scmp.eq.s32.totalorder %s35, 1
    %p362 = por %p360, %p361
    %p363 = scmp.ne.s32.totalorder %s354, %s355
    %p364 = scmp.eq.s32.totalorder %s35, 0
    %p365 = por %p363, %p364
    %p366 = scmp.ne.s32.totalorder %s354, %s355
    %p367 = scmp.eq.s32.totalorder %s36, 1
    %p368 = por %p366, %p367
    %p370 = scmp.ne.s32.totalorder %s355, %s369
    %p371 = scmp.eq.s32.totalorder %s36, 0
    %p372 = por %p370, %p371
    %s374 = sadd.s32 %s373, 1
    %p377 = scmp.eq.s32.totalorder %s30, 1
    %p378 = scmp.ne.s32.totalorder %s373, %s375
    %p379 = scmp.eq.s32.totalorder %s30, 0
    %p380 = por %p378, %p379
    %p381 = scmp.ne.s32.totalorder %s373, %s375
    %p382 = scmp.eq.s32.totalorder %s35, 1
    %p383 = por %p381, %p382
    %p384 = scmp.ne.s32.totalorder %s375, %s376
    %p385 = scmp.eq.s32.totalorder %s35, 0
    %p386 = por %p384, %p385
    %p387 = scmp.ne.s32.totalorder %s375, %s376
    %p388 = scmp.eq.s32.totalorder %s36, 1
    %p389 = por %p387, %p388
    %p391 = scmp.ne.s32.totalorder %s376, %s390
    %p392 = scmp.eq.s32.totalorder %s36, 0
    %p393 = por %p391, %p392
    %s395 = sadd.s32 %s394, 1
    %p398 = scmp.eq.s32.totalorder %s30, 1
    %p399 = scmp.ne.s32.totalorder %s394, %s396
    %p400 = scmp.eq.s32.totalorder %s30, 0
    %p401 = por %p399, %p400
    %p402 = scmp.ne.s32.totalorder %s394, %s396
    %p403 = scmp.eq.s32.totalorder %s35, 1
    %p404 = por %p402, %p403
    %p405 = scmp.ne.s32.totalorder %s396, %s397
    %p406 = scmp.eq.s32.totalorder %s35, 0
    %p407 = por %p405, %p406
    %p408 = scmp.ne.s32.totalorder %s396, %s397
    %p409 = scmp.eq.s32.totalorder %s36, 1
    %p410 = por %p408, %p409
    %p412 = scmp.ne.s32.totalorder %s397, %s411
    %p413 = scmp.eq.s32.totalorder %s36, 0
    %p414 = por %p412, %p413
    %s416 = sadd.s32 %s415, 1
    %p419 = scmp.eq.s32.totalorder %s30, 1
    %p420 = scmp.ne.s32.totalorder %s415, %s417
    %p421 = scmp.eq.s32.totalorder %s30, 0
    %p422 = por %p420, %p421
    %p423 = scmp.ne.s32.totalorder %s415, %s417
    %p424 = scmp.eq.s32.totalorder %s35, 1
    %p425 = por %p423, %p424
    %p426 = scmp.ne.s32.totalorder %s417, %s418
    %p427 = scmp.eq.s32.totalorder %s35, 0
    %p428 = por %p426, %p427
    %p429 = scmp.ne.s32.totalorder %s417, %s418
    %p430 = scmp.eq.s32.totalorder %s36, 1
    %p431 = por %p429, %p430
    %p433 = scmp.ne.s32.totalorder %s418, %s432
    %p434 = scmp.eq.s32.totalorder %s36, 0
    %p435 = por %p433, %p434
    %s437 = sadd.s32 %s436, 1
    %p440 = scmp.eq.s32.totalorder %s30, 1
    %p441 = scmp.ne.s32.totalorder %s436, %s438
    %p442 = scmp.eq.s32.totalorder %s30, 0
    %p443 = por %p441, %p442
    %p444 = scmp.ne.s32.totalorder %s436, %s438
    %p445 = scmp.eq.s32.totalorder %s35, 1
    %p446 = por %p444, %p445
    %p447 = scmp.ne.s32.totalorder %s438, %s439
    %p448 = scmp.eq.s32.totalorder %s35, 0
    %p449 = por %p447, %p448
    %p450 = scmp.ne.s32.totalorder %s438, %s439
    %p451 = scmp.eq.s32.totalorder %s36, 1
    %p452 = por %p450, %p451
    %p454 = scmp.ne.s32.totalorder %s439, %s453
    %p455 = scmp.eq.s32.totalorder %s36, 0
    %p456 = por %p454, %p455
    %s458 = sadd.s32 %s457, 1
    %p461 = scmp.eq.s32.totalorder %s30, 1
    %p462 = scmp.ne.s32.totalorder %s457, %s459
    %p463 = scmp.eq.s32.totalorder %s30, 0
    %p464 = por %p462, %p463
    %p465 = scmp.ne.s32.totalorder %s457, %s459
    %p466 = scmp.eq.s32.totalorder %s35, 1
    %p467 = por %p465, %p466
    %p468 = scmp.ne.s32.totalorder %s459, %s460
    %p469 = scmp.eq.s32.totalorder %s35, 0
    %p470 = por %p468, %p469
    %p471 = scmp.ne.s32.totalorder %s459, %s460
    %p472 = scmp.eq.s32.totalorder %s36, 1
    %p473 = por %p471, %p472
    %p475 = scmp.ne.s32.totalorder %s460, %s474
    %p476 = scmp.eq.s32.totalorder %s36, 0
    %p477 = por %p475, %p476
    %s479 = sadd.s32 %s478, 1
    %p482 = scmp.eq.s32.totalorder %s30, 1
    %p483 = scmp.ne.s32.totalorder %s478, %s480
    %p484 = scmp.eq.s32.totalorder %s30, 0
    %p485 = por %p483, %p484
    %p486 = scmp.ne.s32.totalorder %s478, %s480
    %p487 = scmp.eq.s32.totalorder %s35, 1
    %p488 = por %p486, %p487
    %p489 = scmp.ne.s32.totalorder %s480, %s481
    %p490 = scmp.eq.s32.totalorder %s35, 0
    %p491 = por %p489, %p490
    %p492 = scmp.ne.s32.totalorder %s480, %s481
    %p493 = scmp.eq.s32.totalorder %s36, 1
    %p494 = por %p492, %p493
    %p496 = scmp.ne.s32.totalorder %s481, %s495
    %p497 = scmp.eq.s32.totalorder %s36, 0
    %p498 = por %p496, %p497
    %s500 = sadd.s32 %s499, 1
    %p503 = scmp.eq.s32.totalorder %s30, 1
    %p504 = scmp.ne.s32.totalorder %s499, %s501
    %p505 = scmp.eq.s32.totalorder %s30, 0
    %p506 = por %p504, %p505
    %p507 = scmp.ne.s32.totalorder %s499, %s501
    %p508 = scmp.eq.s32.totalorder %s35, 1
    %p509 = por %p507, %p508
    %p510 = scmp.ne.s32.totalorder %s501, %s502
    %p511 = scmp.eq.s32.totalorder %s35, 0
    %p512 = por %p510, %p511
    %p513 = scmp.ne.s32.totalorder %s501, %s502
    %p514 = scmp.eq.s32.totalorder %s36, 1
    %p515 = por %p513, %p514
    %p517 = scmp.ne.s32.totalorder %s502, %s516
    %p518 = scmp.eq.s32.totalorder %s36, 0
    %p519 = por %p517, %p518
    %s521 = sadd.s32 %s520, 1
    %p524 = scmp.eq.s32.totalorder %s30, 1
    %p525 = scmp.ne.s32.totalorder %s520, %s522
    %p526 = scmp.eq.s32.totalorder %s30, 0
    %p527 = por %p525, %p526
    %p528 = scmp.ne.s32.totalorder %s520, %s522
    %p529 = scmp.eq.s32.totalorder %s35, 1
    %p530 = por %p528, %p529
    %p531 = scmp.ne.s32.totalorder %s522, %s523
    %p532 = scmp.eq.s32.totalorder %s35, 0
    %p533 = por %p531, %p532
    %p534 = scmp.ne.s32.totalorder %s522, %s523
    %p535 = scmp.eq.s32.totalorder %s36, 1
    %p536 = por %p534, %p535
    %p538 = scmp.ne.s32.totalorder %s523, %s537
    %p539 = scmp.eq.s32.totalorder %s36, 0
    %p540 = por %p538, %p539
    %s542 = sadd.s32 %s541, 1
    %p545 = scmp.eq.s32.totalorder %s30, 1
    %p546 = scmp.ne.s32.totalorder %s541, %s543
    %p547 = scmp.eq.s32.totalorder %s30, 0
    %p548 = por %p546, %p547
    %p549 = scmp.ne.s32.totalorder %s541, %s543
    %p550 = scmp.eq.s32.totalorder %s35, 1
    %p551 = por %p549, %p550
    %p552 = scmp.ne.s32.totalorder %s543, %s544
    %p553 = scmp.eq.s32.totalorder %s35, 0
    %p554 = por %p552, %p553
    %p555 = scmp.ne.s32.totalorder %s543, %s544
    %p556 = scmp.eq.s32.totalorder %s36, 1
    %p557 = por %p555, %p556
    %p559 = scmp.ne.s32.totalorder %s544, %s558
    %p560 = scmp.eq.s32.totalorder %s36, 0
    %p561 = por %p559, %p560
    %s562 = ssub.s32 %s30, %s37
    %p563 = scmp.eq.s32.totalorder %s562, 0
    %s565 = sadd.s32 %s564, 1
    %s566 = scalar_select %p563, %s564, %s565
    %p569 = pneg %p563
    %p570 = scmp.eq.s32.totalorder %s30, 1
    %p571 = por %p569, %p570
    %p572 = scmp.ne.s32.totalorder %s564, %s567
    %p573 = scmp.eq.s32.totalorder %s30, 0
    %p574 = por %p572, %p573
    %p575 = scmp.ne.s32.totalorder %s564, %s567
    %p576 = scmp.eq.s32.totalorder %s35, 1
    %p577 = por %p575, %p576
    %p578 = scmp.ne.s32.totalorder %s567, %s568
    %p579 = scmp.eq.s32.totalorder %s35, 0
    %p580 = por %p578, %p579
    %p581 = scmp.ne.s32.totalorder %s567, %s568
    %p582 = scmp.eq.s32.totalorder %s36, 1
    %p583 = por %p581, %p582
    %p585 = scmp.ne.s32.totalorder %s568, %s584
    %p586 = scmp.eq.s32.totalorder %s36, 0
    %p587 = por %p585, %p586
    %p588 = scmp.le.s32.totalorder 1, %s30
    %p589 = scmp.lt.s32.totalorder %s30, 3
    %p590 = pnand %p588, %p589
    %p591 = pneg %p590
    // Predicated region
    $region9: #{ip_adapter_forward.1} parent=5 // pred_check
      _
    $region10: #{ip_adapter_forward.1} parent=5 // pred_check_branch
      %593 = sbr.rel (%p590) target = $region12
    $region11: #{ip_adapter_forward.1} parent=5 // pred_region
      %s594 = ssub.s32 %s30, 1
      // Predicated region
      $region13: #{ip_adapter_forward.1} parent=11 // pred_check
        %p595 = pneg %p155
      $region14: #{ip_adapter_forward.1} parent=11 // pred_check_branch
        %597 = sbr.rel (%p595) target = $region16
      $region15: #{ip_adapter_forward.1} parent=11 // pred_region
        _
      $region16: #{ip_adapter_forward.1} parent=11 // pred_fallthru
        _
      // Predicated region
      $region17: #{ip_adapter_forward.1} parent=11 // pred_check
        %p598 = pneg %p176
      $region18: #{ip_adapter_forward.1} parent=11 // pred_check_branch
        %600 = sbr.rel (%p598) target = $region20
      $region19: #{ip_adapter_forward.1} parent=11 // pred_region
        _
      $region20: #{ip_adapter_forward.1} parent=11 // pred_fallthru
        _
      // Predicated region
      $region21: #{ip_adapter_forward.1} parent=11 // pred_check
        %p601 = pneg %p197
      $region22: #{ip_adapter_forward.1} parent=11 // pred_check_branch
        %603 = sbr.rel (%p601) target = $region24
      $region23: #{ip_adapter_forward.1} parent=11 // pred_region
        _
      $region24: #{ip_adapter_forward.1} parent=11 // pred_fallthru
        _
      // Predicated region
      $region25: #{ip_adapter_forward.1} parent=11 // pred_check
        %p604 = pneg %p218
      $region26: #{ip_adapter_forward.1} parent=11 // pred_check_branch
        %606 = sbr.rel (%p604) target = $region28
      $region27: #{ip_adapter_forward.1} parent=11 // pred_region
        _
      $region28: #{ip_adapter_forward.1} parent=11 // pred_fallthru
        _
      // Predicated region
      $region29: #{ip_adapter_forward.1} parent=11 // pred_check
        %p607 = pneg %p239
      $region30: #{ip_adapter_forward.1} parent=11 // pred_check_branch
        %609 = sbr.rel (%p607) target = $region32
      $region31: #{ip_adapter_forward.1} parent=11 // pred_region
        _
      $region32: #{ip_adapter_forward.1} parent=11 // pred_fallthru
        _
      // Predicated region
      $region33: #{ip_adapter_forward.1} parent=11 // pred_check
        %p610 = pneg %p260
      $region34: #{ip_adapter_forward.1} parent=11 // pred_check_branch
        %612 = sbr.rel (%p610) target = $region36
      $region35: #{ip_adapter_forward.1} parent=11 // pred_region
        _
      $region36: #{ip_adapter_forward.1} parent=11 // pred_fallthru
        _
      // Predicated region
      $region37: #{ip_adapter_forward.1} parent=11 // pred_check
        %p613 = pneg %p281
      $region38: #{ip_adapter_forward.1} parent=11 // pred_check_branch
        %615 = sbr.rel (%p613) target = $region40
      $region39: #{ip_adapter_forward.1} parent=11 // pred_region
        _
      $region40: #{ip_adapter_forward.1} parent=11 // pred_fallthru
        _
      // Predicated region
      $region41: #{ip_adapter_forward.1} parent=11 // pred_check
        %p616 = pneg %p302
      $region42: #{ip_adapter_forward.1} parent=11 // pred_check_branch
        %618 = sbr.rel (%p616) target = $region44
      $region43: #{ip_adapter_forward.1} parent=11 // pred_region
        _
      $region44: #{ip_adapter_forward.1} parent=11 // pred_fallthru
        _
      // Predicated region
      $region45: #{ip_adapter_forward.1} parent=11 // pred_check
        %p619 = pneg %p323
      $region46: #{ip_adapter_forward.1} parent=11 // pred_check_branch
        %621 = sbr.rel (%p619) target = $region48
      $region47: #{ip_adapter_forward.1} parent=11 // pred_region
        _
      $region48: #{ip_adapter_forward.1} parent=11 // pred_fallthru
        _
      // Predicated region
      $region49: #{ip_adapter_forward.1} parent=11 // pred_check
        %p622 = pneg %p344
      $region50: #{ip_adapter_forward.1} parent=11 // pred_check_branch
        %624 = sbr.rel (%p622) target = $region52
      $region51: #{ip_adapter_forward.1} parent=11 // pred_region
        _
      $region52: #{ip_adapter_forward.1} parent=11 // pred_fallthru
        _
      // Predicated region
      $region53: #{ip_adapter_forward.1} parent=11 // pred_check
        %p625 = pneg %p365
      $region54: #{ip_adapter_forward.1} parent=11 // pred_check_branch
        %627 = sbr.rel (%p625) target = $region56
      $region55: #{ip_adapter_forward.1} parent=11 // pred_region
        _
      $region56: #{ip_adapter_forward.1} parent=11 // pred_fallthru
        _
      // Predicated region
      $region57: #{ip_adapter_forward.1} parent=11 // pred_check
        %p628 = pneg %p386
      $region58: #{ip_adapter_forward.1} parent=11 // pred_check_branch
        %630 = sbr.rel (%p628) target = $region60
      $region59: #{ip_adapter_forward.1} parent=11 // pred_region
        _
      $region60: #{ip_adapter_forward.1} parent=11 // pred_fallthru
        _
      // Predicated region
      $region61: #{ip_adapter_forward.1} parent=11 // pred_check
        %p631 = pneg %p407
      $region62: #{ip_adapter_forward.1} parent=11 // pred_check_branch
        %633 = sbr.rel (%p631) target = $region64
      $region63: #{ip_adapter_forward.1} parent=11 // pred_region
        _
      $region64: #{ip_adapter_forward.1} parent=11 // pred_fallthru
        _
      // Predicated region
      $region65: #{ip_adapter_forward.1} parent=11 // pred_check
        %p634 = pneg %p428
      $region66: #{ip_adapter_forward.1} parent=11 // pred_check_branch
        %636 = sbr.rel (%p634) target = $region68
      $region67: #{ip_adapter_forward.1} parent=11 // pred_region
        _
      $region68: #{ip_adapter_forward.1} parent=11 // pred_fallthru
        _
      // Predicated region
      $region69: #{ip_adapter_forward.1} parent=11 // pred_check
        %p637 = pneg %p449
      $region70: #{ip_adapter_forward.1} parent=11 // pred_check_branch
        %639 = sbr.rel (%p637) target = $region72
      $region71: #{ip_adapter_forward.1} parent=11 // pred_region
        _
      $region72: #{ip_adapter_forward.1} parent=11 // pred_fallthru
        _
      // Predicated region
      $region73: #{ip_adapter_forward.1} parent=11 // pred_check
        %p640 = pneg %p470
      $region74: #{ip_adapter_forward.1} parent=11 // pred_check_branch
        %642 = sbr.rel (%p640) target = $region76
      $region75: #{ip_adapter_forward.1} parent=11 // pred_region
        _
      $region76: #{ip_adapter_forward.1} parent=11 // pred_fallthru
        _
      // Predicated region
      $region77: #{ip_adapter_forward.1} parent=11 // pred_check
        %p643 = pneg %p491
      $region78: #{ip_adapter_forward.1} parent=11 // pred_check_branch
        %645 = sbr.rel (%p643) target = $region80
      $region79: #{ip_adapter_forward.1} parent=11 // pred_region
        _
      $region80: #{ip_adapter_forward.1} parent=11 // pred_fallthru
        _
      // Predicated region
      $region81: #{ip_adapter_forward.1} parent=11 // pred_check
        %p646 = pneg %p512
      $region82: #{ip_adapter_forward.1} parent=11 // pred_check_branch
        %648 = sbr.rel (%p646) target = $region84
      $region83: #{ip_adapter_forward.1} parent=11 // pred_region
        _
      $region84: #{ip_adapter_forward.1} parent=11 // pred_fallthru
        _
      // Predicated region
      $region85: #{ip_adapter_forward.1} parent=11 // pred_check
        %p649 = pneg %p533
      $region86: #{ip_adapter_forward.1} parent=11 // pred_check_branch
        %651 = sbr.rel (%p649) target = $region88
      $region87: #{ip_adapter_forward.1} parent=11 // pred_region
        _
      $region88: #{ip_adapter_forward.1} parent=11 // pred_fallthru
        _
      // Predicated region
      $region89: #{ip_adapter_forward.1} parent=11 // pred_check
        %p652 = pneg %p554
      $region90: #{ip_adapter_forward.1} parent=11 // pred_check_branch
        %654 = sbr.rel (%p652) target = $region92
      $region91: #{ip_adapter_forward.1} parent=11 // pred_region
        _
      $region92: #{ip_adapter_forward.1} parent=11 // pred_fallthru
        _
    $region12: #{ip_adapter_forward.1} parent=5 // pred_fallthru
      _
    %p655 = scmp.lt.s32.totalorder %s30, 2
    // Predicated region
    $region93: #{ip_adapter_forward.1} parent=5 // pred_check
      %p656 = pneg %p655
    $region94: #{ip_adapter_forward.1} parent=5 // pred_check_branch
      %658 = sbr.rel (%p656) target = $region96
    $region95: #{ip_adapter_forward.1} parent=5 // pred_region
      // Predicated region
      $region97: #{ip_adapter_forward.1} parent=95 // pred_check
        %p659 = pneg %p50
      $region98: #{ip_adapter_forward.1} parent=95 // pred_check_branch
        %661 = sbr.rel (%p659) target = $region100
      $region99: #{ip_adapter_forward.1} parent=95 // pred_region
        %p662 = scmp.lt.s32.totalorder %s30, 1
        %s663 = scalar_select %p662, %s30, 1
        %s664 = smul.addr %s663, 32
        %s665 = smul.addr %s664, 8
        %s666 = scalar_lea.vmem %s0, %s665
      $region100: #{ip_adapter_forward.1} parent=95 // pred_fallthru
        _
      // Predicated region
      $region101: #{ip_adapter_forward.1} parent=95 // pred_check
        %p667 = pneg %p76
      $region102: #{ip_adapter_forward.1} parent=95 // pred_check_branch
        %669 = sbr.rel (%p667) target = $region104
      $region103: #{ip_adapter_forward.1} parent=95 // pred_region
        %p670 = scmp.lt.s32.totalorder %s30, 1
        %s671 = scalar_select %p670, %s30, 1
        %s672 = scalar_lea.vmem %s1, %s671
      $region104: #{ip_adapter_forward.1} parent=95 // pred_fallthru
        _
      // Predicated region
      $region105: #{ip_adapter_forward.1} parent=95 // pred_check
        %p673 = pneg %p102
      $region106: #{ip_adapter_forward.1} parent=95 // pred_check_branch
        %675 = sbr.rel (%p673) target = $region108
      $region107: #{ip_adapter_forward.1} parent=95 // pred_region
        %p676 = scmp.lt.s32.totalorder %s30, 1
        %s677 = scalar_select %p676, %s30, 1
        %s678 = smul.addr %s677, 8
        %s679 = scalar_lea.vmem %s2, %s678
      $region108: #{ip_adapter_forward.1} parent=95 // pred_fallthru
        _
      // Predicated region
      $region109: #{ip_adapter_forward.1} parent=95 // pred_check
        %p680 = pneg %p128
      $region110: #{ip_adapter_forward.1} parent=95 // pred_check_branch
        %682 = sbr.rel (%p680) target = $region112
      $region111: #{ip_adapter_forward.1} parent=95 // pred_region
        %p683 = scmp.lt.s32.totalorder %s30, 1
        %s684 = scalar_select %p683, %s30, 1
        %s685 = scalar_lea.vmem %s3, %s684
      $region112: #{ip_adapter_forward.1} parent=95 // pred_fallthru
        _
    $region96: #{ip_adapter_forward.1} parent=5 // pred_fallthru
      _
    %p686 = scmp.le.s32.totalorder 1, %s30
    %p687 = scmp.lt.s32.totalorder %s30, 3
    %p688 = pnand %p686, %p687
    %p689 = pneg %p688
    // Predicated region
    $region113: #{ip_adapter_forward.1} parent=5 // pred_check
      _
    $region114: #{ip_adapter_forward.1} parent=5 // pred_check_branch
      %691 = sbr.rel (%p688) target = $region116
    $region115: #{ip_adapter_forward.1} parent=5 // pred_region
      %s692 = ssub.s32 %s30, 1
      %p693 = scmp.lt.s32.totalorder %s35, 1
      %s694 = scalar_select %p693, %s35, 1
      %s695 = smul.addr %s694, 32
      %s696 = smul.addr %s695, 8
      %s697 = scalar_lea.vmem %s0, %s696
      %p698 = pneg %p56
      %p699 = pneg %p53
      %p700 = scmp.lt.s32.totalorder %s35, 1
      %s701 = scalar_select %p700, %s35, 1
      %s702 = scalar_lea.vmem %s1, %s701
      %p703 = pneg %p82
      %p704 = pneg %p79
      %p705 = scmp.lt.s32.totalorder %s35, 1
      %s706 = scalar_select %p705, %s35, 1
      %s707 = smul.addr %s706, 8
      %s708 = scalar_lea.vmem %s2, %s707
      %p709 = pneg %p108
      %p710 = pneg %p105
      %p711 = scmp.lt.s32.totalorder %s35, 1
      %s712 = scalar_select %p711, %s35, 1
      %s713 = scalar_lea.vmem %s3, %s712
      %p714 = pneg %p134
      %p715 = pneg %p131
      %p716 = pneg %p155
      %p717 = pneg %p152
      %p718 = pneg %p176
      %p719 = pneg %p173
      %p720 = pneg %p197
      %p721 = pneg %p194
      %p722 = pneg %p218
      %p723 = pneg %p215
      %p724 = pneg %p239
      %p725 = pneg %p236
      %p726 = pneg %p260
      %p727 = pneg %p257
      %p728 = pneg %p281
      %p729 = pneg %p278
      %p730 = pneg %p302
      %p731 = pneg %p299
      %p732 = pneg %p323
      %p733 = pneg %p320
      %p734 = pneg %p344
      %p735 = pneg %p341
      %p736 = pneg %p365
      %p737 = pneg %p362
      %p738 = pneg %p386
      %p739 = pneg %p383
      %p740 = pneg %p407
      %p741 = pneg %p404
      %p742 = pneg %p428
      %p743 = pneg %p425
      %p744 = pneg %p449
      %p745 = pneg %p446
      %p746 = pneg %p470
      %p747 = pneg %p467
      %p748 = pneg %p491
      %p749 = pneg %p488
      %p750 = pneg %p512
      %p751 = pneg %p509
      %p752 = pneg %p533
      %p753 = pneg %p530
      %p754 = pneg %p554
      %p755 = pneg %p551
      %p756 = pneg %p580
      %p757 = pneg %p577
      %p758 = scmp.lt.s32.totalorder %s35, 1
      %s759 = scalar_select %p758, %s35, 1
      %s760 = smul.addr %s759, 2
      %s761 = smul.addr %s760, 4
      %s762 = scalar_lea.vmem %s24, %s761
      %p763 = scmp.lt.s32.totalorder %s35, 1
      %s764 = scalar_select %p763, %s35, 1
      %s765 = smul.addr %s764, 32
      %s766 = smul.addr %s765, 8
      %s767 = scalar_lea.vmem %s0, %s766
      %p768 = scmp.lt.s32.totalorder %s35, 1
      %s769 = scalar_select %p768, %s35, 1
      %s770 = scalar_lea.vmem %s1, %s769
      %p771 = scmp.lt.s32.totalorder %s35, 1
      %s772 = scalar_select %p771, %s35, 1
      %s773 = smul.addr %s772, 8
      %s774 = scalar_lea.vmem %s2, %s773
      %p775 = scmp.lt.s32.totalorder %s35, 1
      %s776 = scalar_select %p775, %s35, 1
      %s777 = scalar_lea.vmem %s3, %s776
      %p778 = scmp.lt.s32.totalorder %s35, 1
      %s779 = scalar_select %p778, %s35, 1
      %s780 = smul.addr %s779, 2
      %s781 = smul.addr %s780, 4
      %s782 = scalar_lea.vmem %s24, %s781
      %v783 = vld [vmem:[%s777] sm:$0x1]
      %v784 = vld [vmem:[%s4] sm:$0xff]
      %v785 = vld [vmem:[%s4 + $0x8] sm:$0xff]
      %v786 = vld [vmem:[%s4 + $0x10] sm:$0xff]
      %v787 = vld [vmem:[%s4 + $0x18] sm:$0xff]
      %v788 = vld [vmem:[%s5] sm:$0x1]
      %vm789 = vcmask 261120
      %v791 = vsel %vm789, %v783, 0
      %793 = vmatprep.subr.mxu0 0.0
      %794 = vmatpush1.msra.mxu0 0.0
      %795 = vmatprep.subr.mxu0 0.0
      %796 = vmatpush1.msra.mxu0 0.0
      %797 = vmatprep.subr.mxu0 0.0
      %798 = vmatpush1.msra.mxu0 0.0
      %799 = vmatprep.subr.mxu0 0.0
      %800 = vmatpush1.msra.mxu0 0.0
      %801 = vmatprep.subr.mxu0 0.0
      %802 = vmatpush1.msra.mxu0 0.0
      %803 = vmatprep.subr.mxu0 0.0
      %804 = vmatpush1.msra.mxu0 0.0
      %805 = vmatprep.subr.mxu0 0.0
      %806 = vmatpush1.msra.mxu0 0.0
      %807 = vmatprep.subr.mxu0 0.0
      %808 = vmatpush1.msra.mxu0 0.0
      %809 = vmatprep.subr.mxu0 0.0
      %810 = vmatpush1.msra.mxu0 0.0
      %811 = vmatprep.subr.mxu0 0.0
      %812 = vmatpush1.msra.mxu0 0.0
      %813 = vmatprep.subr.mxu0 0.0
      %814 = vmatpush1.msra.mxu0 0.0
      %815 = vmatprep.subr.mxu0 0.0
      %816 = vmatpush1.msra.mxu0 0.0
      %817 = vmatprep.subr.mxu0 0.0
      %818 = vmatpush1.msra.mxu0 %v787
      %819 = vmatprep.subr.mxu0 0.0
      %820 = vmatpush1.msra.mxu0 %v786
      %821 = vmatprep.subr.mxu0 0.0
      %822 = vmatpush1.msra.mxu0 %v785
      %823 = vmatprep.subr.mxu0 0.0
      %824 = vmatpush1.msra.mxu0 %v784
      %825 = vmatprep.subr.mxu0 0.0
      %826 = vmatpush2.msra.mxu0 0.0
      %827 = vmatprep.subr.mxu0 0.0
      %828 = vmatpush2.msra.mxu0 0.0
      %829 = vmatprep.subr.mxu0 0.0
      %830 = vmatpush2.msra.mxu0 0.0
      %831 = vmatprep.subr.mxu0 0.0
      %832 = vmatpush2.msra.mxu0 0.0
      %833 = vmatprep.subr.mxu0 0.0
      %834 = vmatpush2.msra.mxu0 0.0
      %835 = vmatprep.subr.mxu0 0.0
      %836 = vmatpush2.msra.mxu0 0.0
      %837 = vmatprep.subr.mxu0 0.0
      %838 = vmatpush2.msra.mxu0 0.0
      %839 = vmatprep.subr.mxu0 0.0
      %840 = vmatpush2.msra.mxu0 0.0
      %841 = vmatprep.subr.mxu0 0.0
      %842 = vmatpush2.msra.mxu0 0.0
      %843 = vmatprep.subr.mxu0 0.0
      %844 = vmatpush2.msra.mxu0 0.0
      %845 = vmatprep.subr.mxu0 0.0
      %846 = vmatpush2.msra.mxu0 0.0
      %847 = vmatprep.subr.mxu0 0.0
      %848 = vmatpush2.msra.mxu0 0.0
      %849 = vmatprep.subr.mxu0 0.0
      %850 = vmatpush2.msra.mxu0 0.0
      %851 = vmatprep.subr.mxu0 0.0
      %852 = vmatpush2.msra.mxu0 0.0
      %853 = vmatprep.subr.mxu0 0.0
      %854 = vmatpush2.msra.mxu0 0.0
      %855 = vmatprep.subr.mxu0 0.0
      %856 = vmatpush2.msra.mxu0 0.0
      %857 = vmatprep.mubr.f32.mxu0 0.0
      %858 = vmatmul.mubr.f32.gmra.mxu0 %v791
      %v859 = vpop.f32.mrf.mxu0
      %v860 = vadd.f32 %v788, %v859
      %v861 = vpop.f32.mrf.mxu0
      %862 = vdwg.mxu0
      %v864 = vrot.slane %v860, 7
      %865 = vrot.lane.b32.xlu0 %v864, 96
      %v866 = vpop.permute.xlu0 %865
      %v868 = vrot.slane %v860, 6
      %869 = vrot.lane.b32.xlu0 %v868, 64
      %v870 = vpop.permute.xlu0 %869
      %v872 = vrot.slane %v860, 5
      %873 = vrot.lane.b32.xlu0 %v872, 32
      %v874 = vpop.permute.xlu0 %873
      %vm876 = vcmask 1040384
      %v877 = vsel %vm876, %v860, %v866
      %vm878 = vcmask 1041408
      %v879 = vsel %vm878, %v877, %v870
      %vm880 = vcmask 1042432
      %v881 = vsel %vm880, %v879, %v874
      %v882 = vld [vmem:[%s6] sm:$0x1]
      %v883 = vld [vmem:[%s7] sm:$0x1]
      %vm884 = vcmask 257024
      %v885 = vsel %vm884, %v881, 0.0
      %886 = vadd.xlane.f32.xlu0 %v885
      %v887 = vpop.xlane.xlu0 %886
      %v888 = vrcp.pop 32.0
      %v889 = vmul.f32 %v887, %v888
      %v890 = vsub.f32 %v881, %v889
      %v891 = vmul.f32 %v890, %v890
      %v892 = vsel %vm884, %v891, 0.0
      %893 = vadd.xlane.f32.xlu0 %v892
      %v894 = vpop.xlane.xlu0 %893
      %v895 = vmul.f32 %v894, %v888
      %v896 = vadd.f32 %v895, 1e-05
      %v897 = vrsqrt.pop %v896
      %v898 = vmul.f32 %v890, %v897
      %v900 = vlaneseq
      %v901 = vshrl.u32 %v900, 7
      %v902 = vsub.s32 0, %v901
      %v903 = vrot.slane %v882, %v902
      %v905 = vmul.f32 %v898, %v903
      %v907 = vlaneseq
      %v908 = vshrl.u32 %v907, 7
      %v909 = vsub.s32 0, %v908
      %v910 = vrot.slane %v883, %v909
      %v912 = vadd.f32 %v905, %v910
      %v913 = vld [vmem:[%s774] sm:$0xff]
      %vm914 = vcmask 1043456
      %v915 = vsel %vm914, %v912, 0.0
      %v916 = vld [vmem:[%s770] sm:$0x1]
      %v917 = vld [vmem:[%s8] sm:$0xff]
      %v918 = vld [vmem:[%s8 + $0x8] sm:$0xff]
      %v919 = vld [vmem:[%s8 + $0x10] sm:$0xff]
      %v920 = vld [vmem:[%s8 + $0x18] sm:$0xff]
      %v921 = vld [vmem:[%s9] sm:$0x1]
      %v923 = vsel %vm789, %v916, 0
      %925 = vmatprep.subr.mxu0 0.0
      %926 = vmatpush1.msra.mxu0 0.0
      %927 = vmatprep.subr.mxu0 0.0
      %928 = vmatpush1.msra.mxu0 0.0
      %929 = vmatprep.subr.mxu0 0.0
      %930 = vmatpush1.msra.mxu0 0.0
      %931 = vmatprep.subr.mxu0 0.0
      %932 = vmatpush1.msra.mxu0 0.0
      %933 = vmatprep.subr.mxu0 0.0
      %934 = vmatpush1.msra.mxu0 0.0
      %935 = vmatprep.subr.mxu0 0.0
      %936 = vmatpush1.msra.mxu0 0.0
      %937 = vmatprep.subr.mxu0 0.0
      %938 = vmatpush1.msra.mxu0 0.0
      %939 = vmatprep.subr.mxu0 0.0
      %940 = vmatpush1.msra.mxu0 0.0
      %941 = vmatprep.subr.mxu0 0.0
      %942 = vmatpush1.msra.mxu0 0.0
      %943 = vmatprep.subr.mxu0 0.0
      %944 = vmatpush1.msra.mxu0 0.0
      %945 = vmatprep.subr.mxu0 0.0
      %946 = vmatpush1.msra.mxu0 0.0
      %947 = vmatprep.subr.mxu0 0.0
      %948 = vmatpush1.msra.mxu0 0.0
      %949 = vmatprep.subr.mxu0 0.0
      %950 = vmatpush1.msra.mxu0 %v920
      %951 = vmatprep.subr.mxu0 0.0
      %952 = vmatpush1.msra.mxu0 %v919
      %953 = vmatprep.subr.mxu0 0.0
      %954 = vmatpush1.msra.mxu0 %v918
      %955 = vmatprep.subr.mxu0 0.0
      %956 = vmatpush1.msra.mxu0 %v917
      %957 = vmatprep.subr.mxu0 0.0
      %958 = vmatpush2.msra.mxu0 0.0
      %959 = vmatprep.subr.mxu0 0.0
      %960 = vmatpush2.msra.mxu0 0.0
      %961 = vmatprep.subr.mxu0 0.0
      %962 = vmatpush2.msra.mxu0 0.0
      %963 = vmatprep.subr.mxu0 0.0
      %964 = vmatpush2.msra.mxu0 0.0
      %965 = vmatprep.subr.mxu0 0.0
      %966 = vmatpush2.msra.mxu0 0.0
      %967 = vmatprep.subr.mxu0 0.0
      %968 = vmatpush2.msra.mxu0 0.0
      %969 = vmatprep.subr.mxu0 0.0
      %970 = vmatpush2.msra.mxu0 0.0
      %971 = vmatprep.subr.mxu0 0.0
      %972 = vmatpush2.msra.mxu0 0.0
      %973 = vmatprep.subr.mxu0 0.0
      %974 = vmatpush2.msra.mxu0 0.0
      %975 = vmatprep.subr.mxu0 0.0
      %976 = vmatpush2.msra.mxu0 0.0
      %977 = vmatprep.subr.mxu0 0.0
      %978 = vmatpush2.msra.mxu0 0.0
      %979 = vmatprep.subr.mxu0 0.0
      %980 = vmatpush2.msra.mxu0 0.0
      %981 = vmatprep.subr.mxu0 0.0
      %982 = vmatpush2.msra.mxu0 0.0
      %983 = vmatprep.subr.mxu0 0.0
      %984 = vmatpush2.msra.mxu0 0.0
      %985 = vmatprep.subr.mxu0 0.0
      %986 = vmatpush2.msra.mxu0 0.0
      %987 = vmatprep.subr.mxu0 0.0
      %988 = vmatpush2.msra.mxu0 0.0
      %989 = vmatprep.mubr.f32.mxu0 0.0
      %990 = vmatmul.mubr.f32.gmra.mxu0 %v923
      %v991 = vpop.f32.mrf.mxu0
      %v992 = vadd.f32 %v921, %v991
      %v993 = vpop.f32.mrf.mxu0
      %994 = vdwg.mxu0
      %v995 = vxor.u32 %v992, 2147483648
      %v996 = vmul.f32 %v995, 1.442695
      %v997 = vpow.pop %v996
      %v998 = vadd.f32 %v997, 1.0
      %v999 = vrcp.pop %v998
      %v1000 = vmul.f32 1.0, %v999
      %v1001 = vmul.f32 %v992, %v1000
      %v1002 = vld [vmem:[%s10] sm:$0xff]
      %v1003 = vld [vmem:[%s10 + $0x8] sm:$0xff]
      %v1004 = vld [vmem:[%s10 + $0x10] sm:$0xff]
      %v1005 = vld [vmem:[%s10 + $0x18] sm:$0xff]
      %v1006 = vld [vmem:[%s11] sm:$0x1]
      %v1008 = vsel %vm789, %v1001, 0
      %1010 = vmatprep.subr.mxu0 0.0
      %1011 = vmatpush1.msra.mxu0 0.0
      %1012 = vmatprep.subr.mxu0 0.0
      %1013 = vmatpush1.msra.mxu0 0.0
      %1014 = vmatprep.subr.mxu0 0.0
      %1015 = vmatpush1.msra.mxu0 0.0
      %1016 = vmatprep.subr.mxu0 0.0
      %1017 = vmatpush1.msra.mxu0 0.0
      %1018 = vmatprep.subr.mxu0 0.0
      %1019 = vmatpush1.msra.mxu0 0.0
      %1020 = vmatprep.subr.mxu0 0.0
      %1021 = vmatpush1.msra.mxu0 0.0
      %1022 = vmatprep.subr.mxu0 0.0
      %1023 = vmatpush1.msra.mxu0 0.0
      %1024 = vmatprep.subr.mxu0 0.0
      %1025 = vmatpush1.msra.mxu0 0.0
      %1026 = vmatprep.subr.mxu0 0.0
      %1027 = vmatpush1.msra.mxu0 0.0
      %1028 = vmatprep.subr.mxu0 0.0
      %1029 = vmatpush1.msra.mxu0 0.0
      %1030 = vmatprep.subr.mxu0 0.0
      %1031 = vmatpush1.msra.mxu0 0.0
      %1032 = vmatprep.subr.mxu0 0.0
      %1033 = vmatpush1.msra.mxu0 0.0
      %1034 = vmatprep.subr.mxu0 0.0
      %1035 = vmatpush1.msra.mxu0 %v1005
      %1036 = vmatprep.subr.mxu0 0.0
      %1037 = vmatpush1.msra.mxu0 %v1004
      %1038 = vmatprep.subr.mxu0 0.0
      %1039 = vmatpush1.msra.mxu0 %v1003
      %1040 = vmatprep.subr.mxu0 0.0
      %1041 = vmatpush1.msra.mxu0 %v1002
      %1042 = vmatprep.subr.mxu0 0.0
      %1043 = vmatpush2.msra.mxu0 0.0
      %1044 = vmatprep.subr.mxu0 0.0
      %1045 = vmatpush2.msra.mxu0 0.0
      %1046 = vmatprep.subr.mxu0 0.0
      %1047 = vmatpush2.msra.mxu0 0.0
      %1048 = vmatprep.subr.mxu0 0.0
      %1049 = vmatpush2.msra.mxu0 0.0
      %1050 = vmatprep.subr.mxu0 0.0
      %1051 = vmatpush2.msra.mxu0 0.0
      %1052 = vmatprep.subr.mxu0 0.0
      %1053 = vmatpush2.msra.mxu0 0.0
      %1054 = vmatprep.subr.mxu0 0.0
      %1055 = vmatpush2.msra.mxu0 0.0
      %1056 = vmatprep.subr.mxu0 0.0
      %1057 = vmatpush2.msra.mxu0 0.0
      %1058 = vmatprep.subr.mxu0 0.0
      %1059 = vmatpush2.msra.mxu0 0.0
      %1060 = vmatprep.subr.mxu0 0.0
      %1061 = vmatpush2.msra.mxu0 0.0
      %1062 = vmatprep.subr.mxu0 0.0
      %1063 = vmatpush2.msra.mxu0 0.0
      %1064 = vmatprep.subr.mxu0 0.0
      %1065 = vmatpush2.msra.mxu0 0.0
      %1066 = vmatprep.subr.mxu0 0.0
      %1067 = vmatpush2.msra.mxu0 0.0
      %1068 = vmatprep.subr.mxu0 0.0
      %1069 = vmatpush2.msra.mxu0 0.0
      %1070 = vmatprep.subr.mxu0 0.0
      %1071 = vmatpush2.msra.mxu0 0.0
      %1072 = vmatprep.subr.mxu0 0.0
      %1073 = vmatpush2.msra.mxu0 0.0
      %1074 = vmatprep.mubr.f32.mxu0 0.0
      %1075 = vmatmul.mubr.f32.gmra.mxu0 %v1008
      %v1076 = vpop.f32.mrf.mxu0
      %v1077 = vadd.f32 %v1006, %v1076
      %v1078 = vpop.f32.mrf.mxu0
      %1079 = vdwg.mxu0
      %v1080 = vld [vmem:[%s767] sm:$0xff]
      %v1081 = vld [vmem:[%s767 + $0x8] sm:$0xff]
      %v1082 = vld [vmem:[%s767 + $0x10] sm:$0xff]
      %v1083 = vld [vmem:[%s767 + $0x18] sm:$0xff]
      %v1084 = vld [vmem:[%s767 + $0x20] sm:$0xff]
      %v1085 = vld [vmem:[%s767 + $0x28] sm:$0xff]
      %v1086 = vld [vmem:[%s767 + $0x30] sm:$0xff]
      %v1087 = vld [vmem:[%s767 + $0x38] sm:$0xff]
      %v1088 = vld [vmem:[%s767 + $0x40] sm:$0xff]
      %v1089 = vld [vmem:[%s767 + $0x48] sm:$0xff]
      %v1090 = vld [vmem:[%s767 + $0x50] sm:$0xff]
      %v1091 = vld [vmem:[%s767 + $0x58] sm:$0xff]
      %v1092 = vld [vmem:[%s767 + $0x60] sm:$0xff]
      %v1093 = vld [vmem:[%s767 + $0x68] sm:$0xff]
      %v1094 = vld [vmem:[%s767 + $0x70] sm:$0xff]
      %v1095 = vld [vmem:[%s767 + $0x78] sm:$0xff]
      %v1096 = vld [vmem:[%s767 + $0x80] sm:$0xff]
      %v1097 = vld [vmem:[%s767 + $0x88] sm:$0xff]
      %v1098 = vld [vmem:[%s767 + $0x90] sm:$0xff]
      %v1099 = vld [vmem:[%s767 + $0x98] sm:$0xff]
      %v1100 = vld [vmem:[%s767 + $0xa0] sm:$0xff]
      %v1101 = vld [vmem:[%s767 + $0xa8] sm:$0xff]
      %v1102 = vld [vmem:[%s767 + $0xb0] sm:$0xff]
      %v1103 = vld [vmem:[%s767 + $0xb8] sm:$0xff]
      %v1104 = vld [vmem:[%s767 + $0xc0] sm:$0xff]
      %v1105 = vld [vmem:[%s767 + $0xc8] sm:$0xff]
      %v1106 = vld [vmem:[%s767 + $0xd0] sm:$0xff]
      %v1107 = vld [vmem:[%s767 + $0xd8] sm:$0xff]
      %v1108 = vld [vmem:[%s767 + $0xe0] sm:$0xff]
      %v1109 = vld [vmem:[%s767 + $0xe8] sm:$0xff]
      %v1110 = vld [vmem:[%s767 + $0xf0] sm:$0xff]
      %v1111 = vld [vmem:[%s767 + $0xf8] sm:$0xff]
      %v1112 = vld [vmem:[%s12] sm:$0xf]
      %v1113 = vld [vmem:[%s13] sm:$0x1]
      %v1115 = vlaneseq
      %v1116 = vshrl.u32 %v1115, 7
      %v1117 = vsub.s32 0, %v1116
      %v1118 = vrot.slane %v1113, %v1117
      %vm1120 = vcmask 31744
      %v1122 = vsel %vm1120, %v1080, 0
      %v1125 = vsel %vm1120, %v1081, 0
      %v1128 = vsel %vm1120, %v1082, 0
      %v1131 = vsel %vm1120, %v1083, 0
      %v1134 = vsel %vm1120, %v1084, 0
      %v1137 = vsel %vm1120, %v1085, 0
      %v1140 = vsel %vm1120, %v1086, 0
      %v1143 = vsel %vm1120, %v1087, 0
      %v1146 = vsel %vm1120, %v1088, 0
      %v1149 = vsel %vm1120, %v1089, 0
      %v1152 = vsel %vm1120, %v1090, 0
      %v1155 = vsel %vm1120, %v1091, 0
      %v1158 = vsel %vm1120, %v1092, 0
      %v1161 = vsel %vm1120, %v1093, 0
      %v1164 = vsel %vm1120, %v1094, 0
      %v1167 = vsel %vm1120, %v1095, 0
      %v1170 = vsel %vm1120, %v1096, 0
      %v1173 = vsel %vm1120, %v1097, 0
      %v1176 = vsel %vm1120, %v1098, 0
      %v1179 = vsel %vm1120, %v1099, 0
      %v1182 = vsel %vm1120, %v1100, 0
      %v1185 = vsel %vm1120, %v1101, 0
      %v1188 = vsel %vm1120, %v1102, 0
      %v1191 = vsel %vm1120, %v1103, 0
      %v1194 = vsel %vm1120, %v1104, 0
      %v1197 = vsel %vm1120, %v1105, 0
      %v1200 = vsel %vm1120, %v1106, 0
      %v1203 = vsel %vm1120, %v1107, 0
      %v1206 = vsel %vm1120, %v1108, 0
      %v1209 = vsel %vm1120, %v1109, 0
      %v1212 = vsel %vm1120, %v1110, 0
      %v1215 = vsel %vm1120, %v1111, 0
      %v1218 = vsel %vm914, %v1112, 0
      %1220 = vmatprep.subr.mxu0 0.0
      %1221 = vmatpush1.msra.mxu0 0.0
      %1222 = vmatprep.subr.mxu0 0.0
      %1223 = vmatpush1.msra.mxu0 0.0
      %1224 = vmatprep.subr.mxu0 0.0
      %1225 = vmatpush1.msra.mxu0 0.0
      %1226 = vmatprep.subr.mxu0 0.0
      %1227 = vmatpush1.msra.mxu0 0.0
      %1228 = vmatprep.subr.mxu0 0.0
      %1229 = vmatpush1.msra.mxu0 0.0
      %1230 = vmatprep.subr.mxu0 0.0
      %1231 = vmatpush1.msra.mxu0 0.0
      %1232 = vmatprep.subr.mxu0 0.0
      %1233 = vmatpush1.msra.mxu0 0.0
      %1234 = vmatprep.subr.mxu0 0.0
      %1235 = vmatpush1.msra.mxu0 0.0
      %1236 = vmatprep.subr.mxu0 0.0
      %1237 = vmatpush1.msra.mxu0 0.0
      %1238 = vmatprep.subr.mxu0 0.0
      %1239 = vmatpush1.msra.mxu0 0.0
      %1240 = vmatprep.subr.mxu0 0.0
      %1241 = vmatpush1.msra.mxu0 0.0
      %1242 = vmatprep.subr.mxu0 0.0
      %1243 = vmatpush1.msra.mxu0 0.0
      %1244 = vmatprep.subr.mxu0 0.0
      %1245 = vmatpush1.msra.mxu0 0.0
      %1246 = vmatprep.subr.mxu0 0.0
      %1247 = vmatpush1.msra.mxu0 0.0
      %1248 = vmatprep.subr.mxu0 0.0
      %1249 = vmatpush1.msra.mxu0 0.0
      %1250 = vmatprep.subr.mxu0 0.0
      %1251 = vmatpush1.msra.mxu0 %v1218
      %1252 = vmatprep.subr.mxu0 0.0
      %1253 = vmatpush2.msra.mxu0 0.0
      %1254 = vmatprep.subr.mxu0 0.0
      %1255 = vmatpush2.msra.mxu0 0.0
      %1256 = vmatprep.subr.mxu0 0.0
      %1257 = vmatpush2.msra.mxu0 0.0
      %1258 = vmatprep.subr.mxu0 0.0
      %1259 = vmatpush2.msra.mxu0 0.0
      %1260 = vmatprep.subr.mxu0 0.0
      %1261 = vmatpush2.msra.mxu0 0.0
      %1262 = vmatprep.subr.mxu0 0.0
      %1263 = vmatpush2.msra.mxu0 0.0
      %1264 = vmatprep.subr.mxu0 0.0
      %1265 = vmatpush2.msra.mxu0 0.0
      %1266 = vmatprep.subr.mxu0 0.0
      %1267 = vmatpush2.msra.mxu0 0.0
      %1268 = vmatprep.subr.mxu0 0.0
      %1269 = vmatpush2.msra.mxu0 0.0
      %1270 = vmatprep.subr.mxu0 0.0
      %1271 = vmatpush2.msra.mxu0 0.0
      %1272 = vmatprep.subr.mxu0 0.0
      %1273 = vmatpush2.msra.mxu0 0.0
      %1274 = vmatprep.subr.mxu0 0.0
      %1275 = vmatpush2.msra.mxu0 0.0
      %1276 = vmatprep.subr.mxu0 0.0
      %1277 = vmatpush2.msra.mxu0 0.0
      %1278 = vmatprep.subr.mxu0 0.0
      %1279 = vmatpush2.msra.mxu0 0.0
      %1280 = vmatprep.subr.mxu0 0.0
      %1281 = vmatpush2.msra.mxu0 0.0
      %1282 = vmatprep.subr.mxu0 0.0
      %1283 = vmatpush2.msra.mxu0 0.0
      %1284 = vmatprep.mubr.f32.mxu0 0.0
      %1285 = vmatmul.mubr.f32.gmra.mxu0 %v1122
      %v1286 = vpop.f32.mrf.mxu0
      %v1287 = vadd.f32 %v1118, %v1286
      %v1288 = vpop.f32.mrf.mxu0
      %1289 = vmatprep.mubr.f32.mxu0 0.0
      %1290 = vmatmul.mubr.f32.gmra.mxu0 %v1125
      %v1291 = vpop.f32.mrf.mxu0
      %v1292 = vadd.f32 %v1118, %v1291
      %v1293 = vpop.f32.mrf.mxu0
      %1294 = vmatprep.mubr.f32.mxu0 0.0
      %1295 = vmatmul.mubr.f32.gmra.mxu0 %v1128
      %v1296 = vpop.f32.mrf.mxu0
      %v1297 = vadd.f32 %v1118, %v1296
      %v1298 = vpop.f32.mrf.mxu0
      %1299 = vmatprep.mubr.f32.mxu0 0.0
      %1300 = vmatmul.mubr.f32.gmra.mxu0 %v1131
      %v1301 = vpop.f32.mrf.mxu0
      %v1302 = vadd.f32 %v1118, %v1301
      %v1303 = vpop.f32.mrf.mxu0
      %1304 = vmatprep.mubr.f32.mxu0 0.0
      %1305 = vmatmul.mubr.f32.gmra.mxu0 %v1134
      %v1306 = vpop.f32.mrf.mxu0
      %v1307 = vadd.f32 %v1118, %v1306
      %v1308 = vpop.f32.mrf.mxu0
      %1309 = vmatprep.mubr.f32.mxu0 0.0
      %1310 = vmatmul.mubr.f32.gmra.mxu0 %v1137
      %v1311 = vpop.f32.mrf.mxu0
      %v1312 = vadd.f32 %v1118, %v1311
      %v1313 = vpop.f32.mrf.mxu0
      %1314 = vmatprep.mubr.f32.mxu0 0.0
      %1315 = vmatmul.mubr.f32.gmra.mxu0 %v1140
      %v1316 = vpop.f32.mrf.mxu0
      %v1317 = vadd.f32 %v1118, %v1316
      %v1318 = vpop.f32.mrf.mxu0
      %1319 = vmatprep.mubr.f32.mxu0 0.0
      %1320 = vmatmul.mubr.f32.gmra.mxu0 %v1143
      %v1321 = vpop.f32.mrf.mxu0
      %v1322 = vadd.f32 %v1118, %v1321
      %v1323 = vpop.f32.mrf.mxu0
      %1324 = vmatprep.mubr.f32.mxu0 0.0
      %1325 = vmatmul.mubr.f32.gmra.mxu0 %v1146
      %v1326 = vpop.f32.mrf.mxu0
      %v1327 = vadd.f32 %v1118, %v1326
      %v1328 = vpop.f32.mrf.mxu0
      %1329 = vmatprep.mubr.f32.mxu0 0.0
      %1330 = vmatmul.mubr.f32.gmra.mxu0 %v1149
      %v1331 = vpop.f32.mrf.mxu0
      %v1332 = vadd.f32 %v1118, %v1331
      %v1333 = vpop.f32.mrf.mxu0
      %1334 = vmatprep.mubr.f32.mxu0 0.0
      %1335 = vmatmul.mubr.f32.gmra.mxu0 %v1152
      %v1336 = vpop.f32.mrf.mxu0
      %v1337 = vadd.f32 %v1118, %v1336
      %v1338 = vpop.f32.mrf.mxu0
      %1339 = vmatprep.mubr.f32.mxu0 0.0
      %1340 = vmatmul.mubr.f32.gmra.mxu0 %v1155
      %v1341 = vpop.f32.mrf.mxu0
      %v1342 = vadd.f32 %v1118, %v1341
      %v1343 = vpop.f32.mrf.mxu0
      %1344 = vmatprep.mubr.f32.mxu0 0.0
      %1345 = vmatmul.mubr.f32.gmra.mxu0 %v1158
      %v1346 = vpop.f32.mrf.mxu0
      %v1347 = vadd.f32 %v1118, %v1346
      %v1348 = vpop.f32.mrf.mxu0
      %1349 = vmatprep.mubr.f32.mxu0 0.0
      %1350 = vmatmul.mubr.f32.gmra.mxu0 %v1161
      %v1351 = vpop.f32.mrf.mxu0
      %v1352 = vadd.f32 %v1118, %v1351
      %v1353 = vpop.f32.mrf.mxu0
      %1354 = vmatprep.mubr.f32.mxu0 0.0
      %1355 = vmatmul.mubr.f32.gmra.mxu0 %v1164
      %v1356 = vpop.f32.mrf.mxu0
      %v1357 = vadd.f32 %v1118, %v1356
      %v1358 = vpop.f32.mrf.mxu0
      %1359 = vmatprep.mubr.f32.mxu0 0.0
      %1360 = vmatmul.mubr.f32.gmra.mxu0 %v1167
      %v1361 = vpop.f32.mrf.mxu0
      %v1362 = vadd.f32 %v1118, %v1361
      %v1363 = vpop.f32.mrf.mxu0
      %1364 = vmatprep.mubr.f32.mxu0 0.0
      %1365 = vmatmul.mubr.f32.gmra.mxu0 %v1170
      %v1366 = vpop.f32.mrf.mxu0
      %v1367 = vadd.f32 %v1118, %v1366
      %v1368 = vpop.f32.mrf.mxu0
      %1369 = vmatprep.mubr.f32.mxu0 0.0
      %1370 = vmatmul.mubr.f32.gmra.mxu0 %v1173
      %v1371 = vpop.f32.mrf.mxu0
      %v1372 = vadd.f32 %v1118, %v1371
      %v1373 = vpop.f32.mrf.mxu0
      %1374 = vmatprep.mubr.f32.mxu0 0.0
      %1375 = vmatmul.mubr.f32.gmra.mxu0 %v1176
      %v1376 = vpop.f32.mrf.mxu0
      %v1377 = vadd.f32 %v1118, %v1376
      %v1378 = vpop.f32.mrf.mxu0
      %1379 = vmatprep.mubr.f32.mxu0 0.0
      %1380 = vmatmul.mubr.f32.gmra.mxu0 %v1179
      %v1381 = vpop.f32.mrf.mxu0
      %v1382 = vadd.f32 %v1118, %v1381
      %v1383 = vpop.f32.mrf.mxu0
      %1384 = vmatprep.mubr.f32.mxu0 0.0
      %1385 = vmatmul.mubr.f32.gmra.mxu0 %v1182
      %v1386 = vpop.f32.mrf.mxu0
      %v1387 = vadd.f32 %v1118, %v1386
      %v1388 = vpop.f32.mrf.mxu0
      %1389 = vmatprep.mubr.f32.mxu0 0.0
      %1390 = vmatmul.mubr.f32.gmra.mxu0 %v1185
      %v1391 = vpop.f32.mrf.mxu0
      %v1392 = vadd.f32 %v1118, %v1391
      %v1393 = vpop.f32.mrf.mxu0
      %1394 = vmatprep.mubr.f32.mxu0 0.0
      %1395 = vmatmul.mubr.f32.gmra.mxu0 %v1188
      %v1396 = vpop.f32.mrf.mxu0
      %v1397 = vadd.f32 %v1118, %v1396
      %v1398 = vpop.f32.mrf.mxu0
      %1399 = vmatprep.mubr.f32.mxu0 0.0
      %1400 = vmatmul.mubr.f32.gmra.mxu0 %v1191
      %v1401 = vpop.f32.mrf.mxu0
      %v1402 = vadd.f32 %v1118, %v1401
      %v1403 = vpop.f32.mrf.mxu0
      %1404 = vmatprep.mubr.f32.mxu0 0.0
      %1405 = vmatmul.mubr.f32.gmra.mxu0 %v1194
      %v1406 = vpop.f32.mrf.mxu0
      %v1407 = vadd.f32 %v1118, %v1406
      %v1408 = vpop.f32.mrf.mxu0
      %1409 = vmatprep.mubr.f32.mxu0 0.0
      %1410 = vmatmul.mubr.f32.gmra.mxu0 %v1197
      %v1411 = vpop.f32.mrf.mxu0
      %v1412 = vadd.f32 %v1118, %v1411
      %v1413 = vpop.f32.mrf.mxu0
      %1414 = vmatprep.mubr.f32.mxu0 0.0
      %1415 = vmatmul.mubr.f32.gmra.mxu0 %v1200
      %v1416 = vpop.f32.mrf.mxu0
      %v1417 = vadd.f32 %v1118, %v1416
      %v1418 = vpop.f32.mrf.mxu0
      %1419 = vmatprep.mubr.f32.mxu0 0.0
      %1420 = vmatmul.mubr.f32.gmra.mxu0 %v1203
      %v1421 = vpop.f32.mrf.mxu0
      %v1422 = vadd.f32 %v1118, %v1421
      %v1423 = vpop.f32.mrf.mxu0
      %1424 = vmatprep.mubr.f32.mxu0 0.0
      %1425 = vmatmul.mubr.f32.gmra.mxu0 %v1206
      %v1426 = vpop.f32.mrf.mxu0
      %v1427 = vadd.f32 %v1118, %v1426
      %v1428 = vpop.f32.mrf.mxu0
      %1429 = vmatprep.mubr.f32.mxu0 0.0
      %1430 = vmatmul.mubr.f32.gmra.mxu0 %v1209
      %v1431 = vpop.f32.mrf.mxu0
      %v1432 = vadd.f32 %v1118, %v1431
      %v1433 = vpop.f32.mrf.mxu0
      %1434 = vmatprep.mubr.f32.mxu0 0.0
      %1435 = vmatmul.mubr.f32.gmra.mxu0 %v1212
      %v1436 = vpop.f32.mrf.mxu0
      %v1437 = vadd.f32 %v1118, %v1436
      %v1438 = vpop.f32.mrf.mxu0
      %1439 = vmatprep.mubr.f32.mxu0 0.0
      %1440 = vmatmul.mubr.f32.gmra.mxu0 %v1215
      %v1441 = vpop.f32.mrf.mxu0
      %v1442 = vadd.f32 %v1118, %v1441
      %v1443 = vpop.f32.mrf.mxu0
      %1444 = vdwg.mxu0
      %v1445 = vlaneseq
      %v1446 = vshrl.u32 %v1445, 7
      %v1447 = vsub.s32 0, %v1446
      %v1448 = vrot.slane %v1077, %v1447
      %v1449 = vadd.f32 %v1287, %v1448
      %v1450 = vadd.f32 %v1292, %v1448
      %v1451 = vadd.f32 %v1297, %v1448
      %v1452 = vadd.f32 %v1302, %v1448
      %v1453 = vadd.f32 %v1307, %v1448
      %v1454 = vadd.f32 %v1312, %v1448
      %v1455 = vadd.f32 %v1317, %v1448
      %v1456 = vadd.f32 %v1322, %v1448
      %v1457 = vadd.f32 %v1327, %v1448
      %v1458 = vadd.f32 %v1332, %v1448
      %v1459 = vadd.f32 %v1337, %v1448
      %v1460 = vadd.f32 %v1342, %v1448
      %v1461 = vadd.f32 %v1347, %v1448
      %v1462 = vadd.f32 %v1352, %v1448
      %v1463 = vadd.f32 %v1357, %v1448
      %v1464 = vadd.f32 %v1362, %v1448
      %v1465 = vadd.f32 %v1367, %v1448
      %v1466 = vadd.f32 %v1372, %v1448
      %v1467 = vadd.f32 %v1377, %v1448
      %v1468 = vadd.f32 %v1382, %v1448
      %v1469 = vadd.f32 %v1387, %v1448
      %v1470 = vadd.f32 %v1392, %v1448
      %v1471 = vadd.f32 %v1397, %v1448
      %v1472 = vadd.f32 %v1402, %v1448
      %v1473 = vadd.f32 %v1407, %v1448
      %v1474 = vadd.f32 %v1412, %v1448
      %v1475 = vadd.f32 %v1417, %v1448
      %v1476 = vadd.f32 %v1422, %v1448
      %v1477 = vadd.f32 %v1427, %v1448
      %v1478 = vadd.f32 %v1432, %v1448
      %v1479 = vadd.f32 %v1437, %v1448
      %v1480 = vadd.f32 %v1442, %v1448
      %v1481 = vld [vmem:[%s14] sm:$0x1]
      %v1482 = vld [vmem:[%s15] sm:$0x1]
      %v1483 = vsel %vm789, %v1449, 0.0
      %1484 = vadd.xlane.f32.xlu0 %v1483
      %v1485 = vpop.xlane.xlu0 %1484
      %v1486 = vsel %vm789, %v1450, 0.0
      %1487 = vadd.xlane.f32.xlu0 %v1486
      %v1488 = vpop.xlane.xlu0 %1487
      %v1489 = vsel %vm789, %v1451, 0.0
      %1490 = vadd.xlane.f32.xlu0 %v1489
      %v1491 = vpop.xlane.xlu0 %1490
      %v1492 = vsel %vm789, %v1452, 0.0
      %1493 = vadd.xlane.f32.xlu0 %v1492
      %v1494 = vpop.xlane.xlu0 %1493
      %v1495 = vsel %vm789, %v1453, 0.0
      %1496 = vadd.xlane.f32.xlu0 %v1495
      %v1497 = vpop.xlane.xlu0 %1496
      %v1498 = vsel %vm789, %v1454, 0.0
      %1499 = vadd.xlane.f32.xlu0 %v1498
      %v1500 = vpop.xlane.xlu0 %1499
      %v1501 = vsel %vm789, %v1455, 0.0
      %1502 = vadd.xlane.f32.xlu0 %v1501
      %v1503 = vpop.xlane.xlu0 %1502
      %v1504 = vsel %vm789, %v1456, 0.0
      %1505 = vadd.xlane.f32.xlu0 %v1504
      %v1506 = vpop.xlane.xlu0 %1505
      %v1507 = vsel %vm789, %v1457, 0.0
      %1508 = vadd.xlane.f32.xlu0 %v1507
      %v1509 = vpop.xlane.xlu0 %1508
      %v1510 = vsel %vm789, %v1458, 0.0
      %1511 = vadd.xlane.f32.xlu0 %v1510
      %v1512 = vpop.xlane.xlu0 %1511
      %v1513 = vsel %vm789, %v1459, 0.0
      %1514 = vadd.xlane.f32.xlu0 %v1513
      %v1515 = vpop.xlane.xlu0 %1514
      %v1516 = vsel %vm789, %v1460, 0.0
      %1517 = vadd.xlane.f32.xlu0 %v1516
      %v1518 = vpop.xlane.xlu0 %1517
      %v1519 = vsel %vm789, %v1461, 0.0
      %1520 = vadd.xlane.f32.xlu0 %v1519
      %v1521 = vpop.xlane.xlu0 %1520
      %v1522 = vsel %vm789, %v1462, 0.0
      %1523 = vadd.xlane.f32.xlu0 %v1522
      %v1524 = vpop.xlane.xlu0 %1523
      %v1525 = vsel %vm789, %v1463, 0.0
      %1526 = vadd.xlane.f32.xlu0 %v1525
      %v1527 = vpop.xlane.xlu0 %1526
      %v1528 = vsel %vm789, %v1464, 0.0
      %1529 = vadd.xlane.f32.xlu0 %v1528
      %v1530 = vpop.xlane.xlu0 %1529
      %v1531 = vsel %vm789, %v1465, 0.0
      %1532 = vadd.xlane.f32.xlu0 %v1531
      %v1533 = vpop.xlane.xlu0 %1532
      %v1534 = vsel %vm789, %v1466, 0.0
      %1535 = vadd.xlane.f32.xlu0 %v1534
      %v1536 = vpop.xlane.xlu0 %1535
      %v1537 = vsel %vm789, %v1467, 0.0
      %1538 = vadd.xlane.f32.xlu0 %v1537
      %v1539 = vpop.xlane.xlu0 %1538
      %v1540 = vsel %vm789, %v1468, 0.0
      %1541 = vadd.xlane.f32.xlu0 %v1540
      %v1542 = vpop.xlane.xlu0 %1541
      %v1543 = vsel %vm789, %v1469, 0.0
      %1544 = vadd.xlane.f32.xlu0 %v1543
      %v1545 = vpop.xlane.xlu0 %1544
      %v1546 = vsel %vm789, %v1470, 0.0
      %1547 = vadd.xlane.f32.xlu0 %v1546
      %v1548 = vpop.xlane.xlu0 %1547
      %v1549 = vsel %vm789, %v1471, 0.0
      %1550 = vadd.xlane.f32.xlu0 %v1549
      %v1551 = vpop.xlane.xlu0 %1550
      %v1552 = vsel %vm789, %v1472, 0.0
      %1553 = vadd.xlane.f32.xlu0 %v1552
      %v1554 = vpop.xlane.xlu0 %1553
      %v1555 = vsel %vm789, %v1473, 0.0
      %1556 = vadd.xlane.f32.xlu0 %v1555
      %v1557 = vpop.xlane.xlu0 %1556
      %v1558 = vsel %vm789, %v1474, 0.0
      %1559 = vadd.xlane.f32.xlu0 %v1558
      %v1560 = vpop.xlane.xlu0 %1559
      %v1561 = vsel %vm789, %v1475, 0.0
      %1562 = vadd.xlane.f32.xlu0 %v1561
      %v1563 = vpop.xlane.xlu0 %1562
      %v1564 = vsel %vm789, %v1476, 0.0
      %1565 = vadd.xlane.f32.xlu0 %v1564
      %v1566 = vpop.xlane.xlu0 %1565
      %v1567 = vsel %vm789, %v1477, 0.0
      %1568 = vadd.xlane.f32.xlu0 %v1567
      %v1569 = vpop.xlane.xlu0 %1568
      %v1570 = vsel %vm789, %v1478, 0.0
      %1571 = vadd.xlane.f32.xlu0 %v1570
      %v1572 = vpop.xlane.xlu0 %1571
      %v1573 = vsel %vm789, %v1479, 0.0
      %1574 = vadd.xlane.f32.xlu0 %v1573
      %v1575 = vpop.xlane.xlu0 %1574
      %v1576 = vsel %vm789, %v1480, 0.0
      %1577 = vadd.xlane.f32.xlu0 %v1576
      %v1578 = vpop.xlane.xlu0 %1577
      %v1579 = vmul.f32 %v1485, %v888
      %v1580 = vmul.f32 %v1488, %v888
      %v1581 = vmul.f32 %v1491, %v888
      %v1582 = vmul.f32 %v1494, %v888
      %v1583 = vmul.f32 %v1497, %v888
      %v1584 = vmul.f32 %v1500, %v888
      %v1585 = vmul.f32 %v1503, %v888
      %v1586 = vmul.f32 %v1506, %v888
      %v1587 = vmul.f32 %v1509, %v888
      %v1588 = vmul.f32 %v1512, %v888
      %v1589 = vmul.f32 %v1515, %v888
      %v1590 = vmul.f32 %v1518, %v888
      %v1591 = vmul.f32 %v1521, %v888
      %v1592 = vmul.f32 %v1524, %v888
      %v1593 = vmul.f32 %v1527, %v888
      %v1594 = vmul.f32 %v1530, %v888
      %v1595 = vmul.f32 %v1533, %v888
      %v1596 = vmul.f32 %v1536, %v888
      %v1597 = vmul.f32 %v1539, %v888
      %v1598 = vmul.f32 %v1542, %v888
      %v1599 = vmul.f32 %v1545, %v888
      %v1600 = vmul.f32 %v1548, %v888
      %v1601 = vmul.f32 %v1551, %v888
      %v1602 = vmul.f32 %v1554, %v888
      %v1603 = vmul.f32 %v1557, %v888
      %v1604 = vmul.f32 %v1560, %v888
      %v1605 = vmul.f32 %v1563, %v888
      %v1606 = vmul.f32 %v1566, %v888
      %v1607 = vmul.f32 %v1569, %v888
      %v1608 = vmul.f32 %v1572, %v888
      %v1609 = vmul.f32 %v1575, %v888
      %v1610 = vmul.f32 %v1578, %v888
      %v1611 = vsub.f32 %v1449, %v1579
      %v1612 = vsub.f32 %v1450, %v1580
      %v1613 = vsub.f32 %v1451, %v1581
      %v1614 = vsub.f32 %v1452, %v1582
      %v1615 = vsub.f32 %v1453, %v1583
      %v1616 = vsub.f32 %v1454, %v1584
      %v1617 = vsub.f32 %v1455, %v1585
      %v1618 = vsub.f32 %v1456, %v1586
      %v1619 = vsub.f32 %v1457, %v1587
      %v1620 = vsub.f32 %v1458, %v1588
      %v1621 = vsub.f32 %v1459, %v1589
      %v1622 = vsub.f32 %v1460, %v1590
      %v1623 = vsub.f32 %v1461, %v1591
      %v1624 = vsub.f32 %v1462, %v1592
      %v1625 = vsub.f32 %v1463, %v1593
      %v1626 = vsub.f32 %v1464, %v1594
      %v1627 = vsub.f32 %v1465, %v1595
      %v1628 = vsub.f32 %v1466, %v1596
      %v1629 = vsub.f32 %v1467, %v1597
      %v1630 = vsub.f32 %v1468, %v1598
      %v1631 = vsub.f32 %v1469, %v1599
      %v1632 = vsub.f32 %v1470, %v1600
      %v1633 = vsub.f32 %v1471, %v1601
      %v1634 = vsub.f32 %v1472, %v1602
      %v1635 = vsub.f32 %v1473, %v1603
      %v1636 = vsub.f32 %v1474, %v1604
      %v1637 = vsub.f32 %v1475, %v1605
      %v1638 = vsub.f32 %v1476, %v1606
      %v1639 = vsub.f32 %v1477, %v1607
      %v1640 = vsub.f32 %v1478, %v1608
      %v1641 = vsub.f32 %v1479, %v1609
      %v1642 = vsub.f32 %v1480, %v1610
      %v1643 = vmul.f32 %v1611, %v1611
      %v1644 = vmul.f32 %v1612, %v1612
      %v1645 = vmul.f32 %v1613, %v1613
      %v1646 = vmul.f32 %v1614, %v1614
      %v1647 = vmul.f32 %v1615, %v1615
      %v1648 = vmul.f32 %v1616, %v1616
      %v1649 = vmul.f32 %v1617, %v1617
      %v1650 = vmul.f32 %v1618, %v1618
      %v1651 = vmul.f32 %v1619, %v1619
      %v1652 = vmul.f32 %v1620, %v1620
      %v1653 = vmul.f32 %v1621, %v1621
      %v1654 = vmul.f32 %v1622, %v1622
      %v1655 = vmul.f32 %v1623, %v1623
      %v1656 = vmul.f32 %v1624, %v1624
      %v1657 = vmul.f32 %v1625, %v1625
      %v1658 = vmul.f32 %v1626, %v1626
      %v1659 = vmul.f32 %v1627, %v1627
      %v1660 = vmul.f32 %v1628, %v1628
      %v1661 = vmul.f32 %v1629, %v1629
      %v1662 = vmul.f32 %v1630, %v1630
      %v1663 = vmul.f32 %v1631, %v1631
      %v1664 = vmul.f32 %v1632, %v1632
      %v1665 = vmul.f32 %v1633, %v1633
      %v1666 = vmul.f32 %v1634, %v1634
      %v1667 = vmul.f32 %v1635, %v1635
      %v1668 = vmul.f32 %v1636, %v1636
      %v1669 = vmul.f32 %v1637, %v1637
      %v1670 = vmul.f32 %v1638, %v1638
      %v1671 = vmul.f32 %v1639, %v1639
      %v1672 = vmul.f32 %v1640, %v1640
      %v1673 = vmul.f32 %v1641, %v1641
      %v1674 = vmul.f32 %v1642, %v1642
      %v1675 = vsel %vm789, %v1643, 0.0
      %1676 = vadd.xlane.f32.xlu0 %v1675
      %v1677 = vpop.xlane.xlu0 %1676
      %v1678 = vsel %vm789, %v1644, 0.0
      %1679 = vadd.xlane.f32.xlu0 %v1678
      %v1680 = vpop.xlane.xlu0 %1679
      %v1681 = vsel %vm789, %v1645, 0.0
      %1682 = vadd.xlane.f32.xlu0 %v1681
      %v1683 = vpop.xlane.xlu0 %1682
      %v1684 = vsel %vm789, %v1646, 0.0
      %1685 = vadd.xlane.f32.xlu0 %v1684
      %v1686 = vpop.xlane.xlu0 %1685
      %v1687 = vsel %vm789, %v1647, 0.0
      %1688 = vadd.xlane.f32.xlu0 %v1687
      %v1689 = vpop.xlane.xlu0 %1688
      %v1690 = vsel %vm789, %v1648, 0.0
      %1691 = vadd.xlane.f32.xlu0 %v1690
      %v1692 = vpop.xlane.xlu0 %1691
      %v1693 = vsel %vm789, %v1649, 0.0
      %1694 = vadd.xlane.f32.xlu0 %v1693
      %v1695 = vpop.xlane.xlu0 %1694
      %v1696 = vsel %vm789, %v1650, 0.0
      %1697 = vadd.xlane.f32.xlu0 %v1696
      %v1698 = vpop.xlane.xlu0 %1697
      %v1699 = vsel %vm789, %v1651, 0.0
      %1700 = vadd.xlane.f32.xlu0 %v1699
      %v1701 = vpop.xlane.xlu0 %1700
      %v1702 = vsel %vm789, %v1652, 0.0
      %1703 = vadd.xlane.f32.xlu0 %v1702
      %v1704 = vpop.xlane.xlu0 %1703
      %v1705 = vsel %vm789, %v1653, 0.0
      %1706 = vadd.xlane.f32.xlu0 %v1705
      %v1707 = vpop.xlane.xlu0 %1706
      %v1708 = vsel %vm789, %v1654, 0.0
      %1709 = vadd.xlane.f32.xlu0 %v1708
      %v1710 = vpop.xlane.xlu0 %1709
      %v1711 = vsel %vm789, %v1655, 0.0
      %1712 = vadd.xlane.f32.xlu0 %v1711
      %v1713 = vpop.xlane.xlu0 %1712
      %v1714 = vsel %vm789, %v1656, 0.0
      %1715 = vadd.xlane.f32.xlu0 %v1714
      %v1716 = vpop.xlane.xlu0 %1715
      %v1717 = vsel %vm789, %v1657, 0.0
      %1718 = vadd.xlane.f32.xlu0 %v1717
      %v1719 = vpop.xlane.xlu0 %1718
      %v1720 = vsel %vm789, %v1658, 0.0
      %1721 = vadd.xlane.f32.xlu0 %v1720
      %v1722 = vpop.xlane.xlu0 %1721
      %v1723 = vsel %vm789, %v1659, 0.0
      %1724 = vadd.xlane.f32.xlu0 %v1723
      %v1725 = vpop.xlane.xlu0 %1724
      %v1726 = vsel %vm789, %v1660, 0.0
      %1727 = vadd.xlane.f32.xlu0 %v1726
      %v1728 = vpop.xlane.xlu0 %1727
      %v1729 = vsel %vm789, %v1661, 0.0
      %1730 = vadd.xlane.f32.xlu0 %v1729
      %v1731 = vpop.xlane.xlu0 %1730
      %v1732 = vsel %vm789, %v1662, 0.0
      %1733 = vadd.xlane.f32.xlu0 %v1732
      %v1734 = vpop.xlane.xlu0 %1733
      %v1735 = vsel %vm789, %v1663, 0.0
      %1736 = vadd.xlane.f32.xlu0 %v1735
      %v1737 = vpop.xlane.xlu0 %1736
      %v1738 = vsel %vm789, %v1664, 0.0
      %1739 = vadd.xlane.f32.xlu0 %v1738
      %v1740 = vpop.xlane.xlu0 %1739
      %v1741 = vsel %vm789, %v1665, 0.0
      %1742 = vadd.xlane.f32.xlu0 %v1741
      %v1743 = vpop.xlane.xlu0 %1742
      %v1744 = vsel %vm789, %v1666, 0.0
      %1745 = vadd.xlane.f32.xlu0 %v1744
      %v1746 = vpop.xlane.xlu0 %1745
      %v1747 = vsel %vm789, %v1667, 0.0
      %1748 = vadd.xlane.f32.xlu0 %v1747
      %v1749 = vpop.xlane.xlu0 %1748
      %v1750 = vsel %vm789, %v1668, 0.0
      %1751 = vadd.xlane.f32.xlu0 %v1750
      %v1752 = vpop.xlane.xlu0 %1751
      %v1753 = vsel %vm789, %v1669, 0.0
      %1754 = vadd.xlane.f32.xlu0 %v1753
      %v1755 = vpop.xlane.xlu0 %1754
      %v1756 = vsel %vm789, %v1670, 0.0
      %1757 = vadd.xlane.f32.xlu0 %v1756
      %v1758 = vpop.xlane.xlu0 %1757
      %v1759 = vsel %vm789, %v1671, 0.0
      %1760 = vadd.xlane.f32.xlu0 %v1759
      %v1761 = vpop.xlane.xlu0 %1760
      %v1762 = vsel %vm789, %v1672, 0.0
      %1763 = vadd.xlane.f32.xlu0 %v1762
      %v1764 = vpop.xlane.xlu0 %1763
      %v1765 = vsel %vm789, %v1673, 0.0
      %1766 = vadd.xlane.f32.xlu0 %v1765
      %v1767 = vpop.xlane.xlu0 %1766
      %v1768 = vsel %vm789, %v1674, 0.0
      %1769 = vadd.xlane.f32.xlu0 %v1768
      %v1770 = vpop.xlane.xlu0 %1769
      %v1771 = vmul.f32 %v1677, %v888
      %v1772 = vmul.f32 %v1680, %v888
      %v1773 = vmul.f32 %v1683, %v888
      %v1774 = vmul.f32 %v1686, %v888
      %v1775 = vmul.f32 %v1689, %v888
      %v1776 = vmul.f32 %v1692, %v888
      %v1777 = vmul.f32 %v1695, %v888
      %v1778 = vmul.f32 %v1698, %v888
      %v1779 = vmul.f32 %v1701, %v888
      %v1780 = vmul.f32 %v1704, %v888
      %v1781 = vmul.f32 %v1707, %v888
      %v1782 = vmul.f32 %v1710, %v888
      %v1783 = vmul.f32 %v1713, %v888
      %v1784 = vmul.f32 %v1716, %v888
      %v1785 = vmul.f32 %v1719, %v888
      %v1786 = vmul.f32 %v1722, %v888
      %v1787 = vmul.f32 %v1725, %v888
      %v1788 = vmul.f32 %v1728, %v888
      %v1789 = vmul.f32 %v1731, %v888
      %v1790 = vmul.f32 %v1734, %v888
      %v1791 = vmul.f32 %v1737, %v888
      %v1792 = vmul.f32 %v1740, %v888
      %v1793 = vmul.f32 %v1743, %v888
      %v1794 = vmul.f32 %v1746, %v888
      %v1795 = vmul.f32 %v1749, %v888
      %v1796 = vmul.f32 %v1752, %v888
      %v1797 = vmul.f32 %v1755, %v888
      %v1798 = vmul.f32 %v1758, %v888
      %v1799 = vmul.f32 %v1761, %v888
      %v1800 = vmul.f32 %v1764, %v888
      %v1801 = vmul.f32 %v1767, %v888
      %v1802 = vmul.f32 %v1770, %v888
      %v1803 = vadd.f32 %v1771, 1e-05
      %v1804 = vadd.f32 %v1772, 1e-05
      %v1805 = vadd.f32 %v1773, 1e-05
      %v1806 = vadd.f32 %v1774, 1e-05
      %v1807 = vadd.f32 %v1775, 1e-05
      %v1808 = vadd.f32 %v1776, 1e-05
      %v1809 = vadd.f32 %v1777, 1e-05
      %v1810 = vadd.f32 %v1778, 1e-05
      %v1811 = vadd.f32 %v1779, 1e-05
      %v1812 = vadd.f32 %v1780, 1e-05
      %v1813 = vadd.f32 %v1781, 1e-05
      %v1814 = vadd.f32 %v1782, 1e-05
      %v1815 = vadd.f32 %v1783, 1e-05
      %v1816 = vadd.f32 %v1784, 1e-05
      %v1817 = vadd.f32 %v1785, 1e-05
      %v1818 = vadd.f32 %v1786, 1e-05
      %v1819 = vadd.f32 %v1787, 1e-05
      %v1820 = vadd.f32 %v1788, 1e-05
      %v1821 = vadd.f32 %v1789, 1e-05
      %v1822 = vadd.f32 %v1790, 1e-05
      %v1823 = vadd.f32 %v1791, 1e-05
      %v1824 = vadd.f32 %v1792, 1e-05
      %v1825 = vadd.f32 %v1793, 1e-05
      %v1826 = vadd.f32 %v1794, 1e-05
      %v1827 = vadd.f32 %v1795, 1e-05
      %v1828 = vadd.f32 %v1796, 1e-05
      %v1829 = vadd.f32 %v1797, 1e-05
      %v1830 = vadd.f32 %v1798, 1e-05
      %v1831 = vadd.f32 %v1799, 1e-05
      %v1832 = vadd.f32 %v1800, 1e-05
      %v1833 = vadd.f32 %v1801, 1e-05
      %v1834 = vadd.f32 %v1802, 1e-05
      %v1835 = vrsqrt.pop %v1803
      %v1836 = vrsqrt.pop %v1804
      %v1837 = vrsqrt.pop %v1805
      %v1838 = vrsqrt.pop %v1806
      %v1839 = vrsqrt.pop %v1807
      %v1840 = vrsqrt.pop %v1808
      %v1841 = vrsqrt.pop %v1809
      %v1842 = vrsqrt.pop %v1810
      %v1843 = vrsqrt.pop %v1811
      %v1844 = vrsqrt.pop %v1812
      %v1845 = vrsqrt.pop %v1813
      %v1846 = vrsqrt.pop %v1814
      %v1847 = vrsqrt.pop %v1815
      %v1848 = vrsqrt.pop %v1816
      %v1849 = vrsqrt.pop %v1817
      %v1850 = vrsqrt.pop %v1818
      %v1851 = vrsqrt.pop %v1819
      %v1852 = vrsqrt.pop %v1820
      %v1853 = vrsqrt.pop %v1821
      %v1854 = vrsqrt.pop %v1822
      %v1855 = vrsqrt.pop %v1823
      %v1856 = vrsqrt.pop %v1824
      %v1857 = vrsqrt.pop %v1825
      %v1858 = vrsqrt.pop %v1826
      %v1859 = vrsqrt.pop %v1827
      %v1860 = vrsqrt.pop %v1828
      %v1861 = vrsqrt.pop %v1829
      %v1862 = vrsqrt.pop %v1830
      %v1863 = vrsqrt.pop %v1831
      %v1864 = vrsqrt.pop %v1832
      %v1865 = vrsqrt.pop %v1833
      %v1866 = vrsqrt.pop %v1834
      %v1867 = vmul.f32 %v1611, %v1835
      %v1868 = vmul.f32 %v1612, %v1836
      %v1869 = vmul.f32 %v1613, %v1837
      %v1870 = vmul.f32 %v1614, %v1838
      %v1871 = vmul.f32 %v1615, %v1839
      %v1872 = vmul.f32 %v1616, %v1840
      %v1873 = vmul.f32 %v1617, %v1841
      %v1874 = vmul.f32 %v1618, %v1842
      %v1875 = vmul.f32 %v1619, %v1843
      %v1876 = vmul.f32 %v1620, %v1844
      %v1877 = vmul.f32 %v1621, %v1845
      %v1878 = vmul.f32 %v1622, %v1846
      %v1879 = vmul.f32 %v1623, %v1847
      %v1880 = vmul.f32 %v1624, %v1848
      %v1881 = vmul.f32 %v1625, %v1849
      %v1882 = vmul.f32 %v1626, %v1850
      %v1883 = vmul.f32 %v1627, %v1851
      %v1884 = vmul.f32 %v1628, %v1852
      %v1885 = vmul.f32 %v1629, %v1853
      %v1886 = vmul.f32 %v1630, %v1854
      %v1887 = vmul.f32 %v1631, %v1855
      %v1888 = vmul.f32 %v1632, %v1856
      %v1889 = vmul.f32 %v1633, %v1857
      %v1890 = vmul.f32 %v1634, %v1858
      %v1891 = vmul.f32 %v1635, %v1859
      %v1892 = vmul.f32 %v1636, %v1860
      %v1893 = vmul.f32 %v1637, %v1861
      %v1894 = vmul.f32 %v1638, %v1862
      %v1895 = vmul.f32 %v1639, %v1863
      %v1896 = vmul.f32 %v1640, %v1864
      %v1897 = vmul.f32 %v1641, %v1865
      %v1898 = vmul.f32 %v1642, %v1866
      %v1900 = vlaneseq
      %v1901 = vshrl.u32 %v1900, 7
      %v1902 = vsub.s32 0, %v1901
      %v1903 = vrot.slane %v1481, %v1902
      %v1905 = vmul.f32 %v1867, %v1903
      %v1906 = vmul.f32 %v1868, %v1903
      %v1907 = vmul.f32 %v1869, %v1903
      %v1908 = vmul.f32 %v1870, %v1903
      %v1909 = vmul.f32 %v1871, %v1903
      %v1910 = vmul.f32 %v1872, %v1903
      %v1911 = vmul.f32 %v1873, %v1903
      %v1912 = vmul.f32 %v1874, %v1903
      %v1913 = vmul.f32 %v1875, %v1903
      %v1914 = vmul.f32 %v1876, %v1903
      %v1915 = vmul.f32 %v1877, %v1903
      %v1916 = vmul.f32 %v1878, %v1903
      %v1917 = vmul.f32 %v1879, %v1903
      %v1918 = vmul.f32 %v1880, %v1903
      %v1919 = vmul.f32 %v1881, %v1903
      %v1920 = vmul.f32 %v1882, %v1903
      %v1921 = vmul.f32 %v1883, %v1903
      %v1922 = vmul.f32 %v1884, %v1903
      %v1923 = vmul.f32 %v1885, %v1903
      %v1924 = vmul.f32 %v1886, %v1903
      %v1925 = vmul.f32 %v1887, %v1903
      %v1926 = vmul.f32 %v1888, %v1903
      %v1927 = vmul.f32 %v1889, %v1903
      %v1928 = vmul.f32 %v1890, %v1903
      %v1929 = vmul.f32 %v1891, %v1903
      %v1930 = vmul.f32 %v1892, %v1903
      %v1931 = vmul.f32 %v1893, %v1903
      %v1932 = vmul.f32 %v1894, %v1903
      %v1933 = vmul.f32 %v1895, %v1903
      %v1934 = vmul.f32 %v1896, %v1903
      %v1935 = vmul.f32 %v1897, %v1903
      %v1936 = vmul.f32 %v1898, %v1903
      %v1938 = vlaneseq
      %v1939 = vshrl.u32 %v1938, 7
      %v1940 = vsub.s32 0, %v1939
      %v1941 = vrot.slane %v1482, %v1940
      %v1943 = vadd.f32 %v1905, %v1941
      %v1944 = vadd.f32 %v1906, %v1941
      %v1945 = vadd.f32 %v1907, %v1941
      %v1946 = vadd.f32 %v1908, %v1941
      %v1947 = vadd.f32 %v1909, %v1941
      %v1948 = vadd.f32 %v1910, %v1941
      %v1949 = vadd.f32 %v1911, %v1941
      %v1950 = vadd.f32 %v1912, %v1941
      %v1951 = vadd.f32 %v1913, %v1941
      %v1952 = vadd.f32 %v1914, %v1941
      %v1953 = vadd.f32 %v1915, %v1941
      %v1954 = vadd.f32 %v1916, %v1941
      %v1955 = vadd.f32 %v1917, %v1941
      %v1956 = vadd.f32 %v1918, %v1941
      %v1957 = vadd.f32 %v1919, %v1941
      %v1958 = vadd.f32 %v1920, %v1941
      %v1959 = vadd.f32 %v1921, %v1941
      %v1960 = vadd.f32 %v1922, %v1941
      %v1961 = vadd.f32 %v1923, %v1941
      %v1962 = vadd.f32 %v1924, %v1941
      %v1963 = vadd.f32 %v1925, %v1941
      %v1964 = vadd.f32 %v1926, %v1941
      %v1965 = vadd.f32 %v1927, %v1941
      %v1966 = vadd.f32 %v1928, %v1941
      %v1967 = vadd.f32 %v1929, %v1941
      %v1968 = vadd.f32 %v1930, %v1941
      %v1969 = vadd.f32 %v1931, %v1941
      %v1970 = vadd.f32 %v1932, %v1941
      %v1971 = vadd.f32 %v1933, %v1941
      %v1972 = vadd.f32 %v1934, %v1941
      %v1973 = vadd.f32 %v1935, %v1941
      %v1974 = vadd.f32 %v1936, %v1941
      %v1975 = vld [vmem:[%s16] sm:$0xff]
      %v1976 = vld [vmem:[%s16 + $0x8] sm:$0xff]
      %v1977 = vld [vmem:[%s16 + $0x10] sm:$0xff]
      %v1978 = vld [vmem:[%s16 + $0x18] sm:$0xff]
      %v1979 = vld [vmem:[%s17] sm:$0x1]
      %v1981 = vlaneseq
      %v1982 = vshrl.u32 %v1981, 7
      %v1983 = vsub.s32 0, %v1982
      %v1984 = vrot.slane %v1979, %v1983
      %v1987 = vsel %vm789, %v1943, 0
      %v1990 = vsel %vm789, %v1944, 0
      %v1993 = vsel %vm789, %v1945, 0
      %v1996 = vsel %vm789, %v1946, 0
      %v1999 = vsel %vm789, %v1947, 0
      %v2002 = vsel %vm789, %v1948, 0
      %v2005 = vsel %vm789, %v1949, 0
      %v2008 = vsel %vm789, %v1950, 0
      %v2011 = vsel %vm789, %v1951, 0
      %v2014 = vsel %vm789, %v1952, 0
      %v2017 = vsel %vm789, %v1953, 0
      %v2020 = vsel %vm789, %v1954, 0
      %v2023 = vsel %vm789, %v1955, 0
      %v2026 = vsel %vm789, %v1956, 0
      %v2029 = vsel %vm789, %v1957, 0
      %v2032 = vsel %vm789, %v1958, 0
      %v2035 = vsel %vm789, %v1959, 0
      %v2038 = vsel %vm789, %v1960, 0
      %v2041 = vsel %vm789, %v1961, 0
      %v2044 = vsel %vm789, %v1962, 0
      %v2047 = vsel %vm789, %v1963, 0
      %v2050 = vsel %vm789, %v1964, 0
      %v2053 = vsel %vm789, %v1965, 0
      %v2056 = vsel %vm789, %v1966, 0
      %v2059 = vsel %vm789, %v1967, 0
      %v2062 = vsel %vm789, %v1968, 0
      %v2065 = vsel %vm789, %v1969, 0
      %v2068 = vsel %vm789, %v1970, 0
      %v2071 = vsel %vm789, %v1971, 0
      %v2074 = vsel %vm789, %v1972, 0
      %v2077 = vsel %vm789, %v1973, 0
      %v2080 = vsel %vm789, %v1974, 0
      %2082 = vmatprep.subr.mxu0 0.0
      %2083 = vmatpush1.msra.mxu0 0.0
      %2084 = vmatprep.subr.mxu0 0.0
      %2085 = vmatpush1.msra.mxu0 0.0
      %2086 = vmatprep.subr.mxu0 0.0
      %2087 = vmatpush1.msra.mxu0 0.0
      %2088 = vmatprep.subr.mxu0 0.0
      %2089 = vmatpush1.msra.mxu0 0.0
      %2090 = vmatprep.subr.mxu0 0.0
      %2091 = vmatpush1.msra.mxu0 0.0
      %2092 = vmatprep.subr.mxu0 0.0
      %2093 = vmatpush1.msra.mxu0 0.0
      %2094 = vmatprep.subr.mxu0 0.0
      %2095 = vmatpush1.msra.mxu0 0.0
      %2096 = vmatprep.subr.mxu0 0.0
      %2097 = vmatpush1.msra.mxu0 0.0
      %2098 = vmatprep.subr.mxu0 0.0
      %2099 = vmatpush1.msra.mxu0 0.0
      %2100 = vmatprep.subr.mxu0 0.0
      %2101 = vmatpush1.msra.mxu0 0.0
      %2102 = vmatprep.subr.mxu0 0.0
      %2103 = vmatpush1.msra.mxu0 0.0
      %2104 = vmatprep.subr.mxu0 0.0
      %2105 = vmatpush1.msra.mxu0 0.0
      %2106 = vmatprep.subr.mxu0 0.0
      %2107 = vmatpush1.msra.mxu0 %v1978
      %2108 = vmatprep.subr.mxu0 0.0
      %2109 = vmatpush1.msra.mxu0 %v1977
      %2110 = vmatprep.subr.mxu0 0.0
      %2111 = vmatpush1.msra.mxu0 %v1976
      %2112 = vmatprep.subr.mxu0 0.0
      %2113 = vmatpush1.msra.mxu0 %v1975
      %2114 = vmatprep.subr.mxu0 0.0
      %2115 = vmatpush2.msra.mxu0 0.0
      %2116 = vmatprep.subr.mxu0 0.0
      %2117 = vmatpush2.msra.mxu0 0.0
      %2118 = vmatprep.subr.mxu0 0.0
      %2119 = vmatpush2.msra.mxu0 0.0
      %2120 = vmatprep.subr.mxu0 0.0
      %2121 = vmatpush2.msra.mxu0 0.0
      %2122 = vmatprep.subr.mxu0 0.0
      %2123 = vmatpush2.msra.mxu0 0.0
      %2124 = vmatprep.subr.mxu0 0.0
      %2125 = vmatpush2.msra.mxu0 0.0
      %2126 = vmatprep.subr.mxu0 0.0
      %2127 = vmatpush2.msra.mxu0 0.0
      %2128 = vmatprep.subr.mxu0 0.0
      %2129 = vmatpush2.msra.mxu0 0.0
      %2130 = vmatprep.subr.mxu0 0.0
      %2131 = vmatpush2.msra.mxu0 0.0
      %2132 = vmatprep.subr.mxu0 0.0
      %2133 = vmatpush2.msra.mxu0 0.0
      %2134 = vmatprep.subr.mxu0 0.0
      %2135 = vmatpush2.msra.mxu0 0.0
      %2136 = vmatprep.subr.mxu0 0.0
      %2137 = vmatpush2.msra.mxu0 0.0
      %2138 = vmatprep.subr.mxu0 0.0
      %2139 = vmatpush2.msra.mxu0 0.0
      %2140 = vmatprep.subr.mxu0 0.0
      %2141 = vmatpush2.msra.mxu0 0.0
      %2142 = vmatprep.subr.mxu0 0.0
      %2143 = vmatpush2.msra.mxu0 0.0
      %2144 = vmatprep.subr.mxu0 0.0
      %2145 = vmatpush2.msra.mxu0 0.0
      %2146 = vmatprep.mubr.f32.mxu0 0.0
      %2147 = vmatmul.mubr.f32.gmra.mxu0 %v1987
      %v2148 = vpop.f32.mrf.mxu0
      %v2149 = vadd.f32 %v1984, %v2148
      %v2150 = vpop.f32.mrf.mxu0
      %2151 = vmatprep.mubr.f32.mxu0 0.0
      %2152 = vmatmul.mubr.f32.gmra.mxu0 %v1990
      %v2153 = vpop.f32.mrf.mxu0
      %v2154 = vadd.f32 %v1984, %v2153
      %v2155 = vpop.f32.mrf.mxu0
      %2156 = vmatprep.mubr.f32.mxu0 0.0
      %2157 = vmatmul.mubr.f32.gmra.mxu0 %v1993
      %v2158 = vpop.f32.mrf.mxu0
      %v2159 = vadd.f32 %v1984, %v2158
      %v2160 = vpop.f32.mrf.mxu0
      %2161 = vmatprep.mubr.f32.mxu0 0.0
      %2162 = vmatmul.mubr.f32.gmra.mxu0 %v1996
      %v2163 = vpop.f32.mrf.mxu0
      %v2164 = vadd.f32 %v1984, %v2163
      %v2165 = vpop.f32.mrf.mxu0
      %2166 = vmatprep.mubr.f32.mxu0 0.0
      %2167 = vmatmul.mubr.f32.gmra.mxu0 %v1999
      %v2168 = vpop.f32.mrf.mxu0
      %v2169 = vadd.f32 %v1984, %v2168
      %v2170 = vpop.f32.mrf.mxu0
      %2171 = vmatprep.mubr.f32.mxu0 0.0
      %2172 = vmatmul.mubr.f32.gmra.mxu0 %v2002
      %v2173 = vpop.f32.mrf.mxu0
      %v2174 = vadd.f32 %v1984, %v2173
      %v2175 = vpop.f32.mrf.mxu0
      %2176 = vmatprep.mubr.f32.mxu0 0.0
      %2177 = vmatmul.mubr.f32.gmra.mxu0 %v2005
      %v2178 = vpop.f32.mrf.mxu0
      %v2179 = vadd.f32 %v1984, %v2178
      %v2180 = vpop.f32.mrf.mxu0
      %2181 = vmatprep.mubr.f32.mxu0 0.0
      %2182 = vmatmul.mubr.f32.gmra.mxu0 %v2008
      %v2183 = vpop.f32.mrf.mxu0
      %v2184 = vadd.f32 %v1984, %v2183
      %v2185 = vpop.f32.mrf.mxu0
      %2186 = vmatprep.mubr.f32.mxu0 0.0
      %2187 = vmatmul.mubr.f32.gmra.mxu0 %v2011
      %v2188 = vpop.f32.mrf.mxu0
      %v2189 = vadd.f32 %v1984, %v2188
      %v2190 = vpop.f32.mrf.mxu0
      %2191 = vmatprep.mubr.f32.mxu0 0.0
      %2192 = vmatmul.mubr.f32.gmra.mxu0 %v2014
      %v2193 = vpop.f32.mrf.mxu0
      %v2194 = vadd.f32 %v1984, %v2193
      %v2195 = vpop.f32.mrf.mxu0
      %2196 = vmatprep.mubr.f32.mxu0 0.0
      %2197 = vmatmul.mubr.f32.gmra.mxu0 %v2017
      %v2198 = vpop.f32.mrf.mxu0
      %v2199 = vadd.f32 %v1984, %v2198
      %v2200 = vpop.f32.mrf.mxu0
      %2201 = vmatprep.mubr.f32.mxu0 0.0
      %2202 = vmatmul.mubr.f32.gmra.mxu0 %v2020
      %v2203 = vpop.f32.mrf.mxu0
      %v2204 = vadd.f32 %v1984, %v2203
      %v2205 = vpop.f32.mrf.mxu0
      %2206 = vmatprep.mubr.f32.mxu0 0.0
      %2207 = vmatmul.mubr.f32.gmra.mxu0 %v2023
      %v2208 = vpop.f32.mrf.mxu0
      %v2209 = vadd.f32 %v1984, %v2208
      %v2210 = vpop.f32.mrf.mxu0
      %2211 = vmatprep.mubr.f32.mxu0 0.0
      %2212 = vmatmul.mubr.f32.gmra.mxu0 %v2026
      %v2213 = vpop.f32.mrf.mxu0
      %v2214 = vadd.f32 %v1984, %v2213
      %v2215 = vpop.f32.mrf.mxu0
      %2216 = vmatprep.mubr.f32.mxu0 0.0
      %2217 = vmatmul.mubr.f32.gmra.mxu0 %v2029
      %v2218 = vpop.f32.mrf.mxu0
      %v2219 = vadd.f32 %v1984, %v2218
      %v2220 = vpop.f32.mrf.mxu0
      %2221 = vmatprep.mubr.f32.mxu0 0.0
      %2222 = vmatmul.mubr.f32.gmra.mxu0 %v2032
      %v2223 = vpop.f32.mrf.mxu0
      %v2224 = vadd.f32 %v1984, %v2223
      %v2225 = vpop.f32.mrf.mxu0
      %2226 = vmatprep.mubr.f32.mxu0 0.0
      %2227 = vmatmul.mubr.f32.gmra.mxu0 %v2035
      %v2228 = vpop.f32.mrf.mxu0
      %v2229 = vadd.f32 %v1984, %v2228
      %v2230 = vpop.f32.mrf.mxu0
      %2231 = vmatprep.mubr.f32.mxu0 0.0
      %2232 = vmatmul.mubr.f32.gmra.mxu0 %v2038
      %v2233 = vpop.f32.mrf.mxu0
      %v2234 = vadd.f32 %v1984, %v2233
      %v2235 = vpop.f32.mrf.mxu0
      %2236 = vmatprep.mubr.f32.mxu0 0.0
      %2237 = vmatmul.mubr.f32.gmra.mxu0 %v2041
      %v2238 = vpop.f32.mrf.mxu0
      %v2239 = vadd.f32 %v1984, %v2238
      %v2240 = vpop.f32.mrf.mxu0
      %2241 = vmatprep.mubr.f32.mxu0 0.0
      %2242 = vmatmul.mubr.f32.gmra.mxu0 %v2044
      %v2243 = vpop.f32.mrf.mxu0
      %v2244 = vadd.f32 %v1984, %v2243
      %v2245 = vpop.f32.mrf.mxu0
      %2246 = vmatprep.mubr.f32.mxu0 0.0
      %2247 = vmatmul.mubr.f32.gmra.mxu0 %v2047
      %v2248 = vpop.f32.mrf.mxu0
      %v2249 = vadd.f32 %v1984, %v2248
      %v2250 = vpop.f32.mrf.mxu0
      %2251 = vmatprep.mubr.f32.mxu0 0.0
      %2252 = vmatmul.mubr.f32.gmra.mxu0 %v2050
      %v2253 = vpop.f32.mrf.mxu0
      %v2254 = vadd.f32 %v1984, %v2253
      %v2255 = vpop.f32.mrf.mxu0
      %2256 = vmatprep.mubr.f32.mxu0 0.0
      %2257 = vmatmul.mubr.f32.gmra.mxu0 %v2053
      %v2258 = vpop.f32.mrf.mxu0
      %v2259 = vadd.f32 %v1984, %v2258
      %v2260 = vpop.f32.mrf.mxu0
      %2261 = vmatprep.mubr.f32.mxu0 0.0
      %2262 = vmatmul.mubr.f32.gmra.mxu0 %v2056
      %v2263 = vpop.f32.mrf.mxu0
      %v2264 = vadd.f32 %v1984, %v2263
      %v2265 = vpop.f32.mrf.mxu0
      %2266 = vmatprep.mubr.f32.mxu0 0.0
      %2267 = vmatmul.mubr.f32.gmra.mxu0 %v2059
      %v2268 = vpop.f32.mrf.mxu0
      %v2269 = vadd.f32 %v1984, %v2268
      %v2270 = vpop.f32.mrf.mxu0
      %2271 = vmatprep.mubr.f32.mxu0 0.0
      %2272 = vmatmul.mubr.f32.gmra.mxu0 %v2062
      %v2273 = vpop.f32.mrf.mxu0
      %v2274 = vadd.f32 %v1984, %v2273
      %v2275 = vpop.f32.mrf.mxu0
      %2276 = vmatprep.mubr.f32.mxu0 0.0
      %2277 = vmatmul.mubr.f32.gmra.mxu0 %v2065
      %v2278 = vpop.f32.mrf.mxu0
      %v2279 = vadd.f32 %v1984, %v2278
      %v2280 = vpop.f32.mrf.mxu0
      %2281 = vmatprep.mubr.f32.mxu0 0.0
      %2282 = vmatmul.mubr.f32.gmra.mxu0 %v2068
      %v2283 = vpop.f32.mrf.mxu0
      %v2284 = vadd.f32 %v1984, %v2283
      %v2285 = vpop.f32.mrf.mxu0
      %2286 = vmatprep.mubr.f32.mxu0 0.0
      %2287 = vmatmul.mubr.f32.gmra.mxu0 %v2071
      %v2288 = vpop.f32.mrf.mxu0
      %v2289 = vadd.f32 %v1984, %v2288
      %v2290 = vpop.f32.mrf.mxu0
      %2291 = vmatprep.mubr.f32.mxu0 0.0
      %2292 = vmatmul.mubr.f32.gmra.mxu0 %v2074
      %v2293 = vpop.f32.mrf.mxu0
      %v2294 = vadd.f32 %v1984, %v2293
      %v2295 = vpop.f32.mrf.mxu0
      %2296 = vmatprep.mubr.f32.mxu0 0.0
      %2297 = vmatmul.mubr.f32.gmra.mxu0 %v2077
      %v2298 = vpop.f32.mrf.mxu0
      %v2299 = vadd.f32 %v1984, %v2298
      %v2300 = vpop.f32.mrf.mxu0
      %2301 = vmatprep.mubr.f32.mxu0 0.0
      %2302 = vmatmul.mubr.f32.gmra.mxu0 %v2080
      %v2303 = vpop.f32.mrf.mxu0
      %v2304 = vadd.f32 %v1984, %v2303
      %v2305 = vpop.f32.mrf.mxu0
      %2306 = vdwg.mxu0
      %v2307 = vld [vmem:[%s18] sm:$0xff]
      %v2308 = vld [vmem:[%s18 + $0x8] sm:$0xff]
      %v2309 = vld [vmem:[%s18 + $0x10] sm:$0xff]
      %v2310 = vld [vmem:[%s18 + $0x18] sm:$0xff]
      %v2311 = vld [vmem:[%s19] sm:$0x1]
      %v2313 = vlaneseq
      %v2314 = vshrl.u32 %v2313, 7
      %v2315 = vsub.s32 0, %v2314
      %v2316 = vrot.slane %v2311, %v2315
      %v2319 = vsel %vm789, %v913, 0
      %v2322 = vsel %vm789, %v915, 0
      %2324 = vmatprep.subr.mxu0 0.0
      %2325 = vmatpush1.msra.mxu0 0.0
      %2326 = vmatprep.subr.mxu0 0.0
      %2327 = vmatpush1.msra.mxu0 0.0
      %2328 = vmatprep.subr.mxu0 0.0
      %2329 = vmatpush1.msra.mxu0 0.0
      %2330 = vmatprep.subr.mxu0 0.0
      %2331 = vmatpush1.msra.mxu0 0.0
      %2332 = vmatprep.subr.mxu0 0.0
      %2333 = vmatpush1.msra.mxu0 0.0
      %2334 = vmatprep.subr.mxu0 0.0
      %2335 = vmatpush1.msra.mxu0 0.0
      %2336 = vmatprep.subr.mxu0 0.0
      %2337 = vmatpush1.msra.mxu0 0.0
      %2338 = vmatprep.subr.mxu0 0.0
      %2339 = vmatpush1.msra.mxu0 0.0
      %2340 = vmatprep.subr.mxu0 0.0
      %2341 = vmatpush1.msra.mxu0 0.0
      %2342 = vmatprep.subr.mxu0 0.0
      %2343 = vmatpush1.msra.mxu0 0.0
      %2344 = vmatprep.subr.mxu0 0.0
      %2345 = vmatpush1.msra.mxu0 0.0
      %2346 = vmatprep.subr.mxu0 0.0
      %2347 = vmatpush1.msra.mxu0 0.0
      %2348 = vmatprep.subr.mxu0 0.0
      %2349 = vmatpush1.msra.mxu0 %v2310
      %2350 = vmatprep.subr.mxu0 0.0
      %2351 = vmatpush1.msra.mxu0 %v2309
      %2352 = vmatprep.subr.mxu0 0.0
      %2353 = vmatpush1.msra.mxu0 %v2308
      %2354 = vmatprep.subr.mxu0 0.0
      %2355 = vmatpush1.msra.mxu0 %v2307
      %2356 = vmatprep.subr.mxu0 0.0
      %2357 = vmatpush2.msra.mxu0 0.0
      %2358 = vmatprep.subr.mxu0 0.0
      %2359 = vmatpush2.msra.mxu0 0.0
      %2360 = vmatprep.subr.mxu0 0.0
      %2361 = vmatpush2.msra.mxu0 0.0
      %2362 = vmatprep.subr.mxu0 0.0
      %2363 = vmatpush2.msra.mxu0 0.0
      %2364 = vmatprep.subr.mxu0 0.0
      %2365 = vmatpush2.msra.mxu0 0.0
      %2366 = vmatprep.subr.mxu0 0.0
      %2367 = vmatpush2.msra.mxu0 0.0
      %2368 = vmatprep.subr.mxu0 0.0
      %2369 = vmatpush2.msra.mxu0 0.0
      %2370 = vmatprep.subr.mxu0 0.0
      %2371 = vmatpush2.msra.mxu0 0.0
      %2372 = vmatprep.subr.mxu0 0.0
      %2373 = vmatpush2.msra.mxu0 0.0
      %2374 = vmatprep.subr.mxu0 0.0
      %2375 = vmatpush2.msra.mxu0 0.0
      %2376 = vmatprep.subr.mxu0 0.0
      %2377 = vmatpush2.msra.mxu0 0.0
      %2378 = vmatprep.subr.mxu0 0.0
      %2379 = vmatpush2.msra.mxu0 0.0
      %2380 = vmatprep.subr.mxu0 0.0
      %2381 = vmatpush2.msra.mxu0 0.0
      %2382 = vmatprep.subr.mxu0 0.0
      %2383 = vmatpush2.msra.mxu0 0.0
      %2384 = vmatprep.subr.mxu0 0.0
      %2385 = vmatpush2.msra.mxu0 0.0
      %2386 = vmatprep.subr.mxu0 0.0
      %2387 = vmatpush2.msra.mxu0 0.0
      %2388 = vmatprep.mubr.f32.mxu0 0.0
      %2389 = vmatmul.mubr.f32.gmra.mxu0 %v2319
      %v2390 = vpop.f32.mrf.mxu0
      %v2391 = vadd.f32 %v2316, %v2390
      %v2392 = vpop.f32.mrf.mxu0
      %2393 = vmatprep.mubr.f32.mxu0 0.0
      %2394 = vmatmul.mubr.f32.gmra.mxu0 %v2322
      %v2395 = vpop.f32.mrf.mxu0
      %v2396 = vadd.f32 %v2316, %v2395
      %v2397 = vpop.f32.mrf.mxu0
      %2398 = vdwg.mxu0
      %v2400 = vsel %vm789, %v2149, 0
      %v2403 = vsel %vm789, %v2154, 0
      %v2406 = vsel %vm789, %v2159, 0
      %v2409 = vsel %vm789, %v2164, 0
      %v2412 = vsel %vm789, %v2169, 0
      %v2415 = vsel %vm789, %v2174, 0
      %v2418 = vsel %vm789, %v2179, 0
      %v2421 = vsel %vm789, %v2184, 0
      %v2424 = vsel %vm789, %v2189, 0
      %v2427 = vsel %vm789, %v2194, 0
      %v2430 = vsel %vm789, %v2199, 0
      %v2433 = vsel %vm789, %v2204, 0
      %v2436 = vsel %vm789, %v2209, 0
      %v2439 = vsel %vm789, %v2214, 0
      %v2442 = vsel %vm789, %v2219, 0
      %v2445 = vsel %vm789, %v2224, 0
      %v2448 = vsel %vm789, %v2229, 0
      %v2451 = vsel %vm789, %v2234, 0
      %v2454 = vsel %vm789, %v2239, 0
      %v2457 = vsel %vm789, %v2244, 0
      %v2460 = vsel %vm789, %v2249, 0
      %v2463 = vsel %vm789, %v2254, 0
      %v2466 = vsel %vm789, %v2259, 0
      %v2469 = vsel %vm789, %v2264, 0
      %v2472 = vsel %vm789, %v2269, 0
      %v2475 = vsel %vm789, %v2274, 0
      %v2478 = vsel %vm789, %v2279, 0
      %v2481 = vsel %vm789, %v2284, 0
      %v2484 = vsel %vm789, %v2289, 0
      %v2487 = vsel %vm789, %v2294, 0
      %v2490 = vsel %vm789, %v2299, 0
      %v2493 = vsel %vm789, %v2304, 0
      %v2496 = vsel %vm789, %v2391, 0
      %v2499 = vsel %vm789, %v2396, 0
      %2501 = vmatprep.subr.mxu0 0.0
      %2502 = vmatpush1.xpose.msra.mxu0 0.0
      %2503 = vmatprep.subr.mxu0 0.0
      %2504 = vmatpush1.xpose.msra.mxu0 0.0
      %2505 = vmatprep.subr.mxu0 0.0
      %2506 = vmatpush1.xpose.msra.mxu0 0.0
      %2507 = vmatprep.subr.mxu0 0.0
      %2508 = vmatpush1.xpose.msra.mxu0 0.0
      %2509 = vmatprep.subr.mxu0 0.0
      %2510 = vmatpush1.xpose.msra.mxu0 0.0
      %2511 = vmatprep.subr.mxu0 0.0
      %2512 = vmatpush1.xpose.msra.mxu0 0.0
      %2513 = vmatprep.subr.mxu0 0.0
      %2514 = vmatpush1.xpose.msra.mxu0 0.0
      %2515 = vmatprep.subr.mxu0 0.0
      %2516 = vmatpush1.xpose.msra.mxu0 0.0
      %2517 = vmatprep.subr.mxu0 0.0
      %2518 = vmatpush1.xpose.msra.mxu0 0.0
      %2519 = vmatprep.subr.mxu0 0.0
      %2520 = vmatpush1.xpose.msra.mxu0 0.0
      %2521 = vmatprep.subr.mxu0 0.0
      %2522 = vmatpush1.xpose.msra.mxu0 0.0
      %2523 = vmatprep.subr.mxu0 0.0
      %2524 = vmatpush1.xpose.msra.mxu0 0.0
      %2525 = vmatprep.subr.mxu0 0.0
      %2526 = vmatpush1.xpose.msra.mxu0 0.0
      %2527 = vmatprep.subr.mxu0 0.0
      %2528 = vmatpush1.xpose.msra.mxu0 0.0
      %2529 = vmatprep.subr.mxu0 0.0
      %2530 = vmatpush1.xpose.msra.mxu0 %v2499
      %2531 = vmatprep.subr.mxu0 0.0
      %2532 = vmatpush1.xpose.msra.mxu0 %v2496
      %2533 = vmatprep.subr.mxu0 0.0
      %2534 = vmatpush2.xpose.msra.mxu0 0.0
      %2535 = vmatprep.subr.mxu0 0.0
      %2536 = vmatpush2.xpose.msra.mxu0 0.0
      %2537 = vmatprep.subr.mxu0 0.0
      %2538 = vmatpush2.xpose.msra.mxu0 0.0
      %2539 = vmatprep.subr.mxu0 0.0
      %2540 = vmatpush2.xpose.msra.mxu0 0.0
      %2541 = vmatprep.subr.mxu0 0.0
      %2542 = vmatpush2.xpose.msra.mxu0 0.0
      %2543 = vmatprep.subr.mxu0 0.0
      %2544 = vmatpush2.xpose.msra.mxu0 0.0
      %2545 = vmatprep.subr.mxu0 0.0
      %2546 = vmatpush2.xpose.msra.mxu0 0.0
      %2547 = vmatprep.subr.mxu0 0.0
      %2548 = vmatpush2.xpose.msra.mxu0 0.0
      %2549 = vmatprep.subr.mxu0 0.0
      %2550 = vmatpush2.xpose.msra.mxu0 0.0
      %2551 = vmatprep.subr.mxu0 0.0
      %2552 = vmatpush2.xpose.msra.mxu0 0.0
      %2553 = vmatprep.subr.mxu0 0.0
      %2554 = vmatpush2.xpose.msra.mxu0 0.0
      %2555 = vmatprep.subr.mxu0 0.0
      %2556 = vmatpush2.xpose.msra.mxu0 0.0
      %2557 = vmatprep.subr.mxu0 0.0
      %2558 = vmatpush2.xpose.msra.mxu0 0.0
      %2559 = vmatprep.subr.mxu0 0.0
      %2560 = vmatpush2.xpose.msra.mxu0 0.0
      %2561 = vmatprep.subr.mxu0 0.0
      %2562 = vmatpush2.xpose.msra.mxu0 0.0
      %2563 = vmatprep.subr.mxu0 0.0
      %2564 = vmatpush2.xpose.msra.mxu0 0.0
      %2565 = vmatprep.mubr.f32.mxu0 0.0
      %2566 = vmatmul.mubr.f32.gmra.mxu0 %v2400
      %v2567 = vpop.f32.mrf.mxu0
      %v2568 = vadd.f32 0.0, %v2567
      %v2569 = vpop.f32.mrf.mxu0
      %2570 = vmatprep.mubr.f32.mxu0 0.0
      %2571 = vmatmul.mubr.f32.gmra.mxu0 %v2403
      %v2572 = vpop.f32.mrf.mxu0
      %v2573 = vadd.f32 0.0, %v2572
      %v2574 = vpop.f32.mrf.mxu0
      %2575 = vmatprep.mubr.f32.mxu0 0.0
      %2576 = vmatmul.mubr.f32.gmra.mxu0 %v2406
      %v2577 = vpop.f32.mrf.mxu0
      %v2578 = vadd.f32 0.0, %v2577
      %v2579 = vpop.f32.mrf.mxu0
      %2580 = vmatprep.mubr.f32.mxu0 0.0
      %2581 = vmatmul.mubr.f32.gmra.mxu0 %v2409
      %v2582 = vpop.f32.mrf.mxu0
      %v2583 = vadd.f32 0.0, %v2582
      %v2584 = vpop.f32.mrf.mxu0
      %2585 = vmatprep.mubr.f32.mxu0 0.0
      %2586 = vmatmul.mubr.f32.gmra.mxu0 %v2412
      %v2587 = vpop.f32.mrf.mxu0
      %v2588 = vadd.f32 0.0, %v2587
      %v2589 = vpop.f32.mrf.mxu0
      %2590 = vmatprep.mubr.f32.mxu0 0.0
      %2591 = vmatmul.mubr.f32.gmra.mxu0 %v2415
      %v2592 = vpop.f32.mrf.mxu0
      %v2593 = vadd.f32 0.0, %v2592
      %v2594 = vpop.f32.mrf.mxu0
      %2595 = vmatprep.mubr.f32.mxu0 0.0
      %2596 = vmatmul.mubr.f32.gmra.mxu0 %v2418
      %v2597 = vpop.f32.mrf.mxu0
      %v2598 = vadd.f32 0.0, %v2597
      %v2599 = vpop.f32.mrf.mxu0
      %2600 = vmatprep.mubr.f32.mxu0 0.0
      %2601 = vmatmul.mubr.f32.gmra.mxu0 %v2421
      %v2602 = vpop.f32.mrf.mxu0
      %v2603 = vadd.f32 0.0, %v2602
      %v2604 = vpop.f32.mrf.mxu0
      %2605 = vmatprep.mubr.f32.mxu0 0.0
      %2606 = vmatmul.mubr.f32.gmra.mxu0 %v2424
      %v2607 = vpop.f32.mrf.mxu0
      %v2608 = vadd.f32 0.0, %v2607
      %v2609 = vpop.f32.mrf.mxu0
      %2610 = vmatprep.mubr.f32.mxu0 0.0
      %2611 = vmatmul.mubr.f32.gmra.mxu0 %v2427
      %v2612 = vpop.f32.mrf.mxu0
      %v2613 = vadd.f32 0.0, %v2612
      %v2614 = vpop.f32.mrf.mxu0
      %2615 = vmatprep.mubr.f32.mxu0 0.0
      %2616 = vmatmul.mubr.f32.gmra.mxu0 %v2430
      %v2617 = vpop.f32.mrf.mxu0
      %v2618 = vadd.f32 0.0, %v2617
      %v2619 = vpop.f32.mrf.mxu0
      %2620 = vmatprep.mubr.f32.mxu0 0.0
      %2621 = vmatmul.mubr.f32.gmra.mxu0 %v2433
      %v2622 = vpop.f32.mrf.mxu0
      %v2623 = vadd.f32 0.0, %v2622
      %v2624 = vpop.f32.mrf.mxu0
      %2625 = vmatprep.mubr.f32.mxu0 0.0
      %2626 = vmatmul.mubr.f32.gmra.mxu0 %v2436
      %v2627 = vpop.f32.mrf.mxu0
      %v2628 = vadd.f32 0.0, %v2627
      %v2629 = vpop.f32.mrf.mxu0
      %2630 = vmatprep.mubr.f32.mxu0 0.0
      %2631 = vmatmul.mubr.f32.gmra.mxu0 %v2439
      %v2632 = vpop.f32.mrf.mxu0
      %v2633 = vadd.f32 0.0, %v2632
      %v2634 = vpop.f32.mrf.mxu0
      %2635 = vmatprep.mubr.f32.mxu0 0.0
      %2636 = vmatmul.mubr.f32.gmra.mxu0 %v2442
      %v2637 = vpop.f32.mrf.mxu0
      %v2638 = vadd.f32 0.0, %v2637
      %v2639 = vpop.f32.mrf.mxu0
      %2640 = vmatprep.mubr.f32.mxu0 0.0
      %2641 = vmatmul.mubr.f32.gmra.mxu0 %v2445
      %v2642 = vpop.f32.mrf.mxu0
      %v2643 = vadd.f32 0.0, %v2642
      %v2644 = vpop.f32.mrf.mxu0
      %2645 = vmatprep.mubr.f32.mxu0 0.0
      %2646 = vmatmul.mubr.f32.gmra.mxu0 %v2448
      %v2647 = vpop.f32.mrf.mxu0
      %v2648 = vadd.f32 0.0, %v2647
      %v2649 = vpop.f32.mrf.mxu0
      %2650 = vmatprep.mubr.f32.mxu0 0.0
      %2651 = vmatmul.mubr.f32.gmra.mxu0 %v2451
      %v2652 = vpop.f32.mrf.mxu0
      %v2653 = vadd.f32 0.0, %v2652
      %v2654 = vpop.f32.mrf.mxu0
      %2655 = vmatprep.mubr.f32.mxu0 0.0
      %2656 = vmatmul.mubr.f32.gmra.mxu0 %v2454
      %v2657 = vpop.f32.mrf.mxu0
      %v2658 = vadd.f32 0.0, %v2657
      %v2659 = vpop.f32.mrf.mxu0
      %2660 = vmatprep.mubr.f32.mxu0 0.0
      %2661 = vmatmul.mubr.f32.gmra.mxu0 %v2457
      %v2662 = vpop.f32.mrf.mxu0
      %v2663 = vadd.f32 0.0, %v2662
      %v2664 = vpop.f32.mrf.mxu0
      %2665 = vmatprep.mubr.f32.mxu0 0.0
      %2666 = vmatmul.mubr.f32.gmra.mxu0 %v2460
      %v2667 = vpop.f32.mrf.mxu0
      %v2668 = vadd.f32 0.0, %v2667
      %v2669 = vpop.f32.mrf.mxu0
      %2670 = vmatprep.mubr.f32.mxu0 0.0
      %2671 = vmatmul.mubr.f32.gmra.mxu0 %v2463
      %v2672 = vpop.f32.mrf.mxu0
      %v2673 = vadd.f32 0.0, %v2672
      %v2674 = vpop.f32.mrf.mxu0
      %2675 = vmatprep.mubr.f32.mxu0 0.0
      %2676 = vmatmul.mubr.f32.gmra.mxu0 %v2466
      %v2677 = vpop.f32.mrf.mxu0
      %v2678 = vadd.f32 0.0, %v2677
      %v2679 = vpop.f32.mrf.mxu0
      %2680 = vmatprep.mubr.f32.mxu0 0.0
      %2681 = vmatmul.mubr.f32.gmra.mxu0 %v2469
      %v2682 = vpop.f32.mrf.mxu0
      %v2683 = vadd.f32 0.0, %v2682
      %v2684 = vpop.f32.mrf.mxu0
      %2685 = vmatprep.mubr.f32.mxu0 0.0
      %2686 = vmatmul.mubr.f32.gmra.mxu0 %v2472
      %v2687 = vpop.f32.mrf.mxu0
      %v2688 = vadd.f32 0.0, %v2687
      %v2689 = vpop.f32.mrf.mxu0
      %2690 = vmatprep.mubr.f32.mxu0 0.0
      %2691 = vmatmul.mubr.f32.gmra.mxu0 %v2475
      %v2692 = vpop.f32.mrf.mxu0
      %v2693 = vadd.f32 0.0, %v2692
      %v2694 = vpop.f32.mrf.mxu0
      %2695 = vmatprep.mubr.f32.mxu0 0.0
      %2696 = vmatmul.mubr.f32.gmra.mxu0 %v2478
      %v2697 = vpop.f32.mrf.mxu0
      %v2698 = vadd.f32 0.0, %v2697
      %v2699 = vpop.f32.mrf.mxu0
      %2700 = vmatprep.mubr.f32.mxu0 0.0
      %2701 = vmatmul.mubr.f32.gmra.mxu0 %v2481
      %v2702 = vpop.f32.mrf.mxu0
      %v2703 = vadd.f32 0.0, %v2702
      %v2704 = vpop.f32.mrf.mxu0
      %2705 = vmatprep.mubr.f32.mxu0 0.0
      %2706 = vmatmul.mubr.f32.gmra.mxu0 %v2484
      %v2707 = vpop.f32.mrf.mxu0
      %v2708 = vadd.f32 0.0, %v2707
      %v2709 = vpop.f32.mrf.mxu0
      %2710 = vmatprep.mubr.f32.mxu0 0.0
      %2711 = vmatmul.mubr.f32.gmra.mxu0 %v2487
      %v2712 = vpop.f32.mrf.mxu0
      %v2713 = vadd.f32 0.0, %v2712
      %v2714 = vpop.f32.mrf.mxu0
      %2715 = vmatprep.mubr.f32.mxu0 0.0
      %2716 = vmatmul.mubr.f32.gmra.mxu0 %v2490
      %v2717 = vpop.f32.mrf.mxu0
      %v2718 = vadd.f32 0.0, %v2717
      %v2719 = vpop.f32.mrf.mxu0
      %2720 = vmatprep.mubr.f32.mxu0 0.0
      %2721 = vmatmul.mubr.f32.gmra.mxu0 %v2493
      %v2722 = vpop.f32.mrf.mxu0
      %v2723 = vadd.f32 0.0, %v2722
      %v2724 = vpop.f32.mrf.mxu0
      %2725 = vdwg.mxu0
      %v2726 = vmul.f32 %v2568, 0.17677669
      %v2727 = vmul.f32 %v2573, 0.17677669
      %v2728 = vmul.f32 %v2578, 0.17677669
      %v2729 = vmul.f32 %v2583, 0.17677669
      %v2730 = vmul.f32 %v2588, 0.17677669
      %v2731 = vmul.f32 %v2593, 0.17677669
      %v2732 = vmul.f32 %v2598, 0.17677669
      %v2733 = vmul.f32 %v2603, 0.17677669
      %v2734 = vmul.f32 %v2608, 0.17677669
      %v2735 = vmul.f32 %v2613, 0.17677669
      %v2736 = vmul.f32 %v2618, 0.17677669
      %v2737 = vmul.f32 %v2623, 0.17677669
      %v2738 = vmul.f32 %v2628, 0.17677669
      %v2739 = vmul.f32 %v2633, 0.17677669
      %v2740 = vmul.f32 %v2638, 0.17677669
      %v2741 = vmul.f32 %v2643, 0.17677669
      %v2742 = vmul.f32 %v2648, 0.17677669
      %v2743 = vmul.f32 %v2653, 0.17677669
      %v2744 = vmul.f32 %v2658, 0.17677669
      %v2745 = vmul.f32 %v2663, 0.17677669
      %v2746 = vmul.f32 %v2668, 0.17677669
      %v2747 = vmul.f32 %v2673, 0.17677669
      %v2748 = vmul.f32 %v2678, 0.17677669
      %v2749 = vmul.f32 %v2683, 0.17677669
      %v2750 = vmul.f32 %v2688, 0.17677669
      %v2751 = vmul.f32 %v2693, 0.17677669
      %v2752 = vmul.f32 %v2698, 0.17677669
      %v2753 = vmul.f32 %v2703, 0.17677669
      %v2754 = vmul.f32 %v2708, 0.17677669
      %v2755 = vmul.f32 %v2713, 0.17677669
      %v2756 = vmul.f32 %v2718, 0.17677669
      %v2757 = vmul.f32 %v2723, 0.17677669
      %v2758 = vlaneseq
      %v2759 = vand.u32 %v2758, 127
      %vm2760 = vcmp.lt.s32.totalorder %v2759, 12
      %v2761 = vsel %vm2760, %v2726, -1e+30
      %v2762 = vsel %vm2760, %v2727, -1e+30
      %v2763 = vsel %vm2760, %v2728, -1e+30
      %v2764 = vsel %vm2760, %v2729, -1e+30
      %v2765 = vsel %vm2760, %v2730, -1e+30
      %v2766 = vsel %vm2760, %v2731, -1e+30
      %v2767 = vsel %vm2760, %v2732, -1e+30
      %v2768 = vsel %vm2760, %v2733, -1e+30
      %v2769 = vsel %vm2760, %v2734, -1e+30
      %v2770 = vsel %vm2760, %v2735, -1e+30
      %v2771 = vsel %vm2760, %v2736, -1e+30
      %v2772 = vsel %vm2760, %v2737, -1e+30
      %v2773 = vsel %vm2760, %v2738, -1e+30
      %v2774 = vsel %vm2760, %v2739, -1e+30
      %v2775 = vsel %vm2760, %v2740, -1e+30
      %v2776 = vsel %vm2760, %v2741, -1e+30
      %v2777 = vsel %vm2760, %v2742, -1e+30
      %v2778 = vsel %vm2760, %v2743, -1e+30
      %v2779 = vsel %vm2760, %v2744, -1e+30
      %v2780 = vsel %vm2760, %v2745, -1e+30
      %v2781 = vsel %vm2760, %v2746, -1e+30
      %v2782 = vsel %vm2760, %v2747, -1e+30
      %v2783 = vsel %vm2760, %v2748, -1e+30
      %v2784 = vsel %vm2760, %v2749, -1e+30
      %v2785 = vsel %vm2760, %v2750, -1e+30
      %v2786 = vsel %vm2760, %v2751, -1e+30
      %v2787 = vsel %vm2760, %v2752, -1e+30
      %v2788 = vsel %vm2760, %v2753, -1e+30
      %v2789 = vsel %vm2760, %v2754, -1e+30
      %v2790 = vsel %vm2760, %v2755, -1e+30
      %v2791 = vsel %vm2760, %v2756, -1e+30
      %v2792 = vsel %vm2760, %v2757, -1e+30
      %vm2793 = vcmask 130048
      %v2794 = vsel %vm2793, %v2761, -inf
      %2795 = vmax.xlane.f32.xlu0 %v2794
      %v2796 = vpop.xlane.xlu0 %2795
      %v2797 = vsel %vm2793, %v2762, -inf
      %2798 = vmax.xlane.f32.xlu0 %v2797
      %v2799 = vpop.xlane.xlu0 %2798
      %v2800 = vsel %vm2793, %v2763, -inf
      %2801 = vmax.xlane.f32.xlu0 %v2800
      %v2802 = vpop.xlane.xlu0 %2801
      %v2803 = vsel %vm2793, %v2764, -inf
      %2804 = vmax.xlane.f32.xlu0 %v2803
      %v2805 = vpop.xlane.xlu0 %2804
      %v2806 = vsel %vm2793, %v2765, -inf
      %2807 = vmax.xlane.f32.xlu0 %v2806
      %v2808 = vpop.xlane.xlu0 %2807
      %v2809 = vsel %vm2793, %v2766, -inf
      %2810 = vmax.xlane.f32.xlu0 %v2809
      %v2811 = vpop.xlane.xlu0 %2810
      %v2812 = vsel %vm2793, %v2767, -inf
      %2813 = vmax.xlane.f32.xlu0 %v2812
      %v2814 = vpop.xlane.xlu0 %2813
      %v2815 = vsel %vm2793, %v2768, -inf
      %2816 = vmax.xlane.f32.xlu0 %v2815
      %v2817 = vpop.xlane.xlu0 %2816
      %v2818 = vsel %vm2793, %v2769, -inf
      %2819 = vmax.xlane.f32.xlu0 %v2818
      %v2820 = vpop.xlane.xlu0 %2819
      %v2821 = vsel %vm2793, %v2770, -inf
      %2822 = vmax.xlane.f32.xlu0 %v2821
      %v2823 = vpop.xlane.xlu0 %2822
      %v2824 = vsel %vm2793, %v2771, -inf
      %2825 = vmax.xlane.f32.xlu0 %v2824
      %v2826 = vpop.xlane.xlu0 %2825
      %v2827 = vsel %vm2793, %v2772, -inf
      %2828 = vmax.xlane.f32.xlu0 %v2827
      %v2829 = vpop.xlane.xlu0 %2828
      %v2830 = vsel %vm2793, %v2773, -inf
      %2831 = vmax.xlane.f32.xlu0 %v2830
      %v2832 = vpop.xlane.xlu0 %2831
      %v2833 = vsel %vm2793, %v2774, -inf
      %2834 = vmax.xlane.f32.xlu0 %v2833
      %v2835 = vpop.xlane.xlu0 %2834
      %v2836 = vsel %vm2793, %v2775, -inf
      %2837 = vmax.xlane.f32.xlu0 %v2836
      %v2838 = vpop.xlane.xlu0 %2837
      %v2839 = vsel %vm2793, %v2776, -inf
      %2840 = vmax.xlane.f32.xlu0 %v2839
      %v2841 = vpop.xlane.xlu0 %2840
      %v2842 = vsel %vm2793, %v2777, -inf
      %2843 = vmax.xlane.f32.xlu0 %v2842
      %v2844 = vpop.xlane.xlu0 %2843
      %v2845 = vsel %vm2793, %v2778, -inf
      %2846 = vmax.xlane.f32.xlu0 %v2845
      %v2847 = vpop.xlane.xlu0 %2846
      %v2848 = vsel %vm2793, %v2779, -inf
      %2849 = vmax.xlane.f32.xlu0 %v2848
      %v2850 = vpop.xlane.xlu0 %2849
      %v2851 = vsel %vm2793, %v2780, -inf
      %2852 = vmax.xlane.f32.xlu0 %v2851
      %v2853 = vpop.xlane.xlu0 %2852
      %v2854 = vsel %vm2793, %v2781, -inf
      %2855 = vmax.xlane.f32.xlu0 %v2854
      %v2856 = vpop.xlane.xlu0 %2855
      %v2857 = vsel %vm2793, %v2782, -inf
      %2858 = vmax.xlane.f32.xlu0 %v2857
      %v2859 = vpop.xlane.xlu0 %2858
      %v2860 = vsel %vm2793, %v2783, -inf
      %2861 = vmax.xlane.f32.xlu0 %v2860
      %v2862 = vpop.xlane.xlu0 %2861
      %v2863 = vsel %vm2793, %v2784, -inf
      %2864 = vmax.xlane.f32.xlu0 %v2863
      %v2865 = vpop.xlane.xlu0 %2864
      %v2866 = vsel %vm2793, %v2785, -inf
      %2867 = vmax.xlane.f32.xlu0 %v2866
      %v2868 = vpop.xlane.xlu0 %2867
      %v2869 = vsel %vm2793, %v2786, -inf
      %2870 = vmax.xlane.f32.xlu0 %v2869
      %v2871 = vpop.xlane.xlu0 %2870
      %v2872 = vsel %vm2793, %v2787, -inf
      %2873 = vmax.xlane.f32.xlu0 %v2872
      %v2874 = vpop.xlane.xlu0 %2873
      %v2875 = vsel %vm2793, %v2788, -inf
      %2876 = vmax.xlane.f32.xlu0 %v2875
      %v2877 = vpop.xlane.xlu0 %2876
      %v2878 = vsel %vm2793, %v2789, -inf
      %2879 = vmax.xlane.f32.xlu0 %v2878
      %v2880 = vpop.xlane.xlu0 %2879
      %v2881 = vsel %vm2793, %v2790, -inf
      %2882 = vmax.xlane.f32.xlu0 %v2881
      %v2883 = vpop.xlane.xlu0 %2882
      %v2884 = vsel %vm2793, %v2791, -inf
      %2885 = vmax.xlane.f32.xlu0 %v2884
      %v2886 = vpop.xlane.xlu0 %2885
      %v2887 = vsel %vm2793, %v2792, -inf
      %2888 = vmax.xlane.f32.xlu0 %v2887
      %v2889 = vpop.xlane.xlu0 %2888
      %v2890 = vsub.f32 %v2761, %v2796
      %v2891 = vsub.f32 %v2762, %v2799
      %v2892 = vsub.f32 %v2763, %v2802
      %v2893 = vsub.f32 %v2764, %v2805
      %v2894 = vsub.f32 %v2765, %v2808
      %v2895 = vsub.f32 %v2766, %v2811
      %v2896 = vsub.f32 %v2767, %v2814
      %v2897 = vsub.f32 %v2768, %v2817
      %v2898 = vsub.f32 %v2769, %v2820
      %v2899 = vsub.f32 %v2770, %v2823
      %v2900 = vsub.f32 %v2771, %v2826
      %v2901 = vsub.f32 %v2772, %v2829
      %v2902 = vsub.f32 %v2773, %v2832
      %v2903 = vsub.f32 %v2774, %v2835
      %v2904 = vsub.f32 %v2775, %v2838
      %v2905 = vsub.f32 %v2776, %v2841
      %v2906 = vsub.f32 %v2777, %v2844
      %v2907 = vsub.f32 %v2778, %v2847
      %v2908 = vsub.f32 %v2779, %v2850
      %v2909 = vsub.f32 %v2780, %v2853
      %v2910 = vsub.f32 %v2781, %v2856
      %v2911 = vsub.f32 %v2782, %v2859
      %v2912 = vsub.f32 %v2783, %v2862
      %v2913 = vsub.f32 %v2784, %v2865
      %v2914 = vsub.f32 %v2785, %v2868
      %v2915 = vsub.f32 %v2786, %v2871
      %v2916 = vsub.f32 %v2787, %v2874
      %v2917 = vsub.f32 %v2788, %v2877
      %v2918 = vsub.f32 %v2789, %v2880
      %v2919 = vsub.f32 %v2790, %v2883
      %v2920 = vsub.f32 %v2791, %v2886
      %v2921 = vsub.f32 %v2792, %v2889
      %v2922 = vmul.f32 %v2890, 1.442695
      %v2923 = vpow.pop %v2922
      %v2924 = vmul.f32 %v2891, 1.442695
      %v2925 = vpow.pop %v2924
      %v2926 = vmul.f32 %v2892, 1.442695
      %v2927 = vpow.pop %v2926
      %v2928 = vmul.f32 %v2893, 1.442695
      %v2929 = vpow.pop %v2928
      %v2930 = vmul.f32 %v2894, 1.442695
      %v2931 = vpow.pop %v2930
      %v2932 = vmul.f32 %v2895, 1.442695
      %v2933 = vpow.pop %v2932
      %v2934 = vmul.f32 %v2896, 1.442695
      %v2935 = vpow.pop %v2934
      %v2936 = vmul.f32 %v2897, 1.442695
      %v2937 = vpow.pop %v2936
      %v2938 = vmul.f32 %v2898, 1.442695
      %v2939 = vpow.pop %v2938
      %v2940 = vmul.f32 %v2899, 1.442695
      %v2941 = vpow.pop %v2940
      %v2942 = vmul.f32 %v2900, 1.442695
      %v2943 = vpow.pop %v2942
      %v2944 = vmul.f32 %v2901, 1.442695
      %v2945 = vpow.pop %v2944
      %v2946 = vmul.f32 %v2902, 1.442695
      %v2947 = vpow.pop %v2946
      %v2948 = vmul.f32 %v2903, 1.442695
      %v2949 = vpow.pop %v2948
      %v2950 = vmul.f32 %v2904, 1.442695
      %v2951 = vpow.pop %v2950
      %v2952 = vmul.f32 %v2905, 1.442695
      %v2953 = vpow.pop %v2952
      %v2954 = vmul.f32 %v2906, 1.442695
      %v2955 = vpow.pop %v2954
      %v2956 = vmul.f32 %v2907, 1.442695
      %v2957 = vpow.pop %v2956
      %v2958 = vmul.f32 %v2908, 1.442695
      %v2959 = vpow.pop %v2958
      %v2960 = vmul.f32 %v2909, 1.442695
      %v2961 = vpow.pop %v2960
      %v2962 = vmul.f32 %v2910, 1.442695
      %v2963 = vpow.pop %v2962
      %v2964 = vmul.f32 %v2911, 1.442695
      %v2965 = vpow.pop %v2964
      %v2966 = vmul.f32 %v2912, 1.442695
      %v2967 = vpow.pop %v2966
      %v2968 = vmul.f32 %v2913, 1.442695
      %v2969 = vpow.pop %v2968
      %v2970 = vmul.f32 %v2914, 1.442695
      %v2971 = vpow.pop %v2970
      %v2972 = vmul.f32 %v2915, 1.442695
      %v2973 = vpow.pop %v2972
      %v2974 = vmul.f32 %v2916, 1.442695
      %v2975 = vpow.pop %v2974
      %v2976 = vmul.f32 %v2917, 1.442695
      %v2977 = vpow.pop %v2976
      %v2978 = vmul.f32 %v2918, 1.442695
      %v2979 = vpow.pop %v2978
      %v2980 = vmul.f32 %v2919, 1.442695
      %v2981 = vpow.pop %v2980
      %v2982 = vmul.f32 %v2920, 1.442695
      %v2983 = vpow.pop %v2982
      %v2984 = vmul.f32 %v2921, 1.442695
      %v2985 = vpow.pop %v2984
      %v2986 = vsel %vm2793, %v2923, 0.0
      %2987 = vadd.xlane.f32.xlu0 %v2986
      %v2988 = vpop.xlane.xlu0 %2987
      %v2989 = vsel %vm2793, %v2925, 0.0
      %2990 = vadd.xlane.f32.xlu0 %v2989
      %v2991 = vpop.xlane.xlu0 %2990
      %v2992 = vsel %vm2793, %v2927, 0.0
      %2993 = vadd.xlane.f32.xlu0 %v2992
      %v2994 = vpop.xlane.xlu0 %2993
      %v2995 = vsel %vm2793, %v2929, 0.0
      %2996 = vadd.xlane.f32.xlu0 %v2995
      %v2997 = vpop.xlane.xlu0 %2996
      %v2998 = vsel %vm2793, %v2931, 0.0
      %2999 = vadd.xlane.f32.xlu0 %v2998
      %v3000 = vpop.xlane.xlu0 %2999
      %v3001 = vsel %vm2793, %v2933, 0.0
      %3002 = vadd.xlane.f32.xlu0 %v3001
      %v3003 = vpop.xlane.xlu0 %3002
      %v3004 = vsel %vm2793, %v2935, 0.0
      %3005 = vadd.xlane.f32.xlu0 %v3004
      %v3006 = vpop.xlane.xlu0 %3005
      %v3007 = vsel %vm2793, %v2937, 0.0
      %3008 = vadd.xlane.f32.xlu0 %v3007
      %v3009 = vpop.xlane.xlu0 %3008
      %v3010 = vsel %vm2793, %v2939, 0.0
      %3011 = vadd.xlane.f32.xlu0 %v3010
      %v3012 = vpop.xlane.xlu0 %3011
      %v3013 = vsel %vm2793, %v2941, 0.0
      %3014 = vadd.xlane.f32.xlu0 %v3013
      %v3015 = vpop.xlane.xlu0 %3014
      %v3016 = vsel %vm2793, %v2943, 0.0
      %3017 = vadd.xlane.f32.xlu0 %v3016
      %v3018 = vpop.xlane.xlu0 %3017
      %v3019 = vsel %vm2793, %v2945, 0.0
      %3020 = vadd.xlane.f32.xlu0 %v3019
      %v3021 = vpop.xlane.xlu0 %3020
      %v3022 = vsel %vm2793, %v2947, 0.0
      %3023 = vadd.xlane.f32.xlu0 %v3022
      %v3024 = vpop.xlane.xlu0 %3023
      %v3025 = vsel %vm2793, %v2949, 0.0
      %3026 = vadd.xlane.f32.xlu0 %v3025
      %v3027 = vpop.xlane.xlu0 %3026
      %v3028 = vsel %vm2793, %v2951, 0.0
      %3029 = vadd.xlane.f32.xlu0 %v3028
      %v3030 = vpop.xlane.xlu0 %3029
      %v3031 = vsel %vm2793, %v2953, 0.0
      %3032 = vadd.xlane.f32.xlu0 %v3031
      %v3033 = vpop.xlane.xlu0 %3032
      %v3034 = vsel %vm2793, %v2955, 0.0
      %3035 = vadd.xlane.f32.xlu0 %v3034
      %v3036 = vpop.xlane.xlu0 %3035
      %v3037 = vsel %vm2793, %v2957, 0.0
      %3038 = vadd.xlane.f32.xlu0 %v3037
      %v3039 = vpop.xlane.xlu0 %3038
      %v3040 = vsel %vm2793, %v2959, 0.0
      %3041 = vadd.xlane.f32.xlu0 %v3040
      %v3042 = vpop.xlane.xlu0 %3041
      %v3043 = vsel %vm2793, %v2961, 0.0
      %3044 = vadd.xlane.f32.xlu0 %v3043
      %v3045 = vpop.xlane.xlu0 %3044
      %v3046 = vsel %vm2793, %v2963, 0.0
      %3047 = vadd.xlane.f32.xlu0 %v3046
      %v3048 = vpop.xlane.xlu0 %3047
      %v3049 = vsel %vm2793, %v2965, 0.0
      %3050 = vadd.xlane.f32.xlu0 %v3049
      %v3051 = vpop.xlane.xlu0 %3050
      %v3052 = vsel %vm2793, %v2967, 0.0
      %3053 = vadd.xlane.f32.xlu0 %v3052
      %v3054 = vpop.xlane.xlu0 %3053
      %v3055 = vsel %vm2793, %v2969, 0.0
      %3056 = vadd.xlane.f32.xlu0 %v3055
      %v3057 = vpop.xlane.xlu0 %3056
      %v3058 = vsel %vm2793, %v2971, 0.0
      %3059 = vadd.xlane.f32.xlu0 %v3058
      %v3060 = vpop.xlane.xlu0 %3059
      %v3061 = vsel %vm2793, %v2973, 0.0
      %3062 = vadd.xlane.f32.xlu0 %v3061
      %v3063 = vpop.xlane.xlu0 %3062
      %v3064 = vsel %vm2793, %v2975, 0.0
      %3065 = vadd.xlane.f32.xlu0 %v3064
      %v3066 = vpop.xlane.xlu0 %3065
      %v3067 = vsel %vm2793, %v2977, 0.0
      %3068 = vadd.xlane.f32.xlu0 %v3067
      %v3069 = vpop.xlane.xlu0 %3068
      %v3070 = vsel %vm2793, %v2979, 0.0
      %3071 = vadd.xlane.f32.xlu0 %v3070
      %v3072 = vpop.xlane.xlu0 %3071
      %v3073 = vsel %vm2793, %v2981, 0.0
      %3074 = vadd.xlane.f32.xlu0 %v3073
      %v3075 = vpop.xlane.xlu0 %3074
      %v3076 = vsel %vm2793, %v2983, 0.0
      %3077 = vadd.xlane.f32.xlu0 %v3076
      %v3078 = vpop.xlane.xlu0 %3077
      %v3079 = vsel %vm2793, %v2985, 0.0
      %3080 = vadd.xlane.f32.xlu0 %v3079
      %v3081 = vpop.xlane.xlu0 %3080
      %v3082 = vrcp.pop %v2988
      %v3083 = vrcp.pop %v2991
      %v3084 = vrcp.pop %v2994
      %v3085 = vrcp.pop %v2997
      %v3086 = vrcp.pop %v3000
      %v3087 = vrcp.pop %v3003
      %v3088 = vrcp.pop %v3006
      %v3089 = vrcp.pop %v3009
      %v3090 = vrcp.pop %v3012
      %v3091 = vrcp.pop %v3015
      %v3092 = vrcp.pop %v3018
      %v3093 = vrcp.pop %v3021
      %v3094 = vrcp.pop %v3024
      %v3095 = vrcp.pop %v3027
      %v3096 = vrcp.pop %v3030
      %v3097 = vrcp.pop %v3033
      %v3098 = vrcp.pop %v3036
      %v3099 = vrcp.pop %v3039
      %v3100 = vrcp.pop %v3042
      %v3101 = vrcp.pop %v3045
      %v3102 = vrcp.pop %v3048
      %v3103 = vrcp.pop %v3051
      %v3104 = vrcp.pop %v3054
      %v3105 = vrcp.pop %v3057
      %v3106 = vrcp.pop %v3060
      %v3107 = vrcp.pop %v3063
      %v3108 = vrcp.pop %v3066
      %v3109 = vrcp.pop %v3069
      %v3110 = vrcp.pop %v3072
      %v3111 = vrcp.pop %v3075
      %v3112 = vrcp.pop %v3078
      %v3113 = vrcp.pop %v3081
      %v3114 = vmul.f32 %v2923, %v3082
      %v3115 = vmul.f32 %v2925, %v3083
      %v3116 = vmul.f32 %v2927, %v3084
      %v3117 = vmul.f32 %v2929, %v3085
      %v3118 = vmul.f32 %v2931, %v3086
      %v3119 = vmul.f32 %v2933, %v3087
      %v3120 = vmul.f32 %v2935, %v3088
      %v3121 = vmul.f32 %v2937, %v3089
      %v3122 = vmul.f32 %v2939, %v3090
      %v3123 = vmul.f32 %v2941, %v3091
      %v3124 = vmul.f32 %v2943, %v3092
      %v3125 = vmul.f32 %v2945, %v3093
      %v3126 = vmul.f32 %v2947, %v3094
      %v3127 = vmul.f32 %v2949, %v3095
      %v3128 = vmul.f32 %v2951, %v3096
      %v3129 = vmul.f32 %v2953, %v3097
      %v3130 = vmul.f32 %v2955, %v3098
      %v3131 = vmul.f32 %v2957, %v3099
      %v3132 = vmul.f32 %v2959, %v3100
      %v3133 = vmul.f32 %v2961, %v3101
      %v3134 = vmul.f32 %v2963, %v3102
      %v3135 = vmul.f32 %v2965, %v3103
      %v3136 = vmul.f32 %v2967, %v3104
      %v3137 = vmul.f32 %v2969, %v3105
      %v3138 = vmul.f32 %v2971, %v3106
      %v3139 = vmul.f32 %v2973, %v3107
      %v3140 = vmul.f32 %v2975, %v3108
      %v3141 = vmul.f32 %v2977, %v3109
      %v3142 = vmul.f32 %v2979, %v3110
      %v3143 = vmul.f32 %v2981, %v3111
      %v3144 = vmul.f32 %v2983, %v3112
      %v3145 = vmul.f32 %v2985, %v3113
      %3146 = vrot.lane.b32.xlu0 %v2391, 96
      %v3147 = vpop.permute.xlu0 %3146
      %3148 = vrot.lane.b32.xlu0 %v2396, 96
      %v3149 = vpop.permute.xlu0 %3148
      %v3153 = vsel %vm2793, %v3114, 0
      %v3156 = vsel %vm2793, %v3115, 0
      %v3159 = vsel %vm2793, %v3116, 0
      %v3162 = vsel %vm2793, %v3117, 0
      %v3165 = vsel %vm2793, %v3118, 0
      %v3168 = vsel %vm2793, %v3119, 0
      %v3171 = vsel %vm2793, %v3120, 0
      %v3174 = vsel %vm2793, %v3121, 0
      %v3177 = vsel %vm2793, %v3122, 0
      %v3180 = vsel %vm2793, %v3123, 0
      %v3183 = vsel %vm2793, %v3124, 0
      %v3186 = vsel %vm2793, %v3125, 0
      %v3189 = vsel %vm2793, %v3126, 0
      %v3192 = vsel %vm2793, %v3127, 0
      %v3195 = vsel %vm2793, %v3128, 0
      %v3198 = vsel %vm2793, %v3129, 0
      %v3201 = vsel %vm2793, %v3130, 0
      %v3204 = vsel %vm2793, %v3131, 0
      %v3207 = vsel %vm2793, %v3132, 0
      %v3210 = vsel %vm2793, %v3133, 0
      %v3213 = vsel %vm2793, %v3134, 0
      %v3216 = vsel %vm2793, %v3135, 0
      %v3219 = vsel %vm2793, %v3136, 0
      %v3222 = vsel %vm2793, %v3137, 0
      %v3225 = vsel %vm2793, %v3138, 0
      %v3228 = vsel %vm2793, %v3139, 0
      %v3231 = vsel %vm2793, %v3140, 0
      %v3234 = vsel %vm2793, %v3141, 0
      %v3237 = vsel %vm2793, %v3142, 0
      %v3240 = vsel %vm2793, %v3143, 0
      %v3243 = vsel %vm2793, %v3144, 0
      %v3246 = vsel %vm2793, %v3145, 0
      %3248 = vmatprep.subr.mxu0 0.0
      %3249 = vmatpush1.msra.mxu0 0.0
      %3250 = vmatprep.subr.mxu0 0.0
      %3251 = vmatpush1.msra.mxu0 0.0
      %3252 = vmatprep.subr.mxu0 0.0
      %3253 = vmatpush1.msra.mxu0 0.0
      %3254 = vmatprep.subr.mxu0 0.0
      %3255 = vmatpush1.msra.mxu0 0.0
      %3256 = vmatprep.subr.mxu0 0.0
      %3257 = vmatpush1.msra.mxu0 0.0
      %3258 = vmatprep.subr.mxu0 0.0
      %3259 = vmatpush1.msra.mxu0 0.0
      %3260 = vmatprep.subr.mxu0 0.0
      %3261 = vmatpush1.msra.mxu0 0.0
      %3262 = vmatprep.subr.mxu0 0.0
      %3263 = vmatpush1.msra.mxu0 0.0
      %3264 = vmatprep.subr.mxu0 0.0
      %3265 = vmatpush1.msra.mxu0 0.0
      %3266 = vmatprep.subr.mxu0 0.0
      %3267 = vmatpush1.msra.mxu0 0.0
      %3268 = vmatprep.subr.mxu0 0.0
      %3269 = vmatpush1.msra.mxu0 0.0
      %3270 = vmatprep.subr.mxu0 0.0
      %3271 = vmatpush1.msra.mxu0 0.0
      %3272 = vmatprep.subr.mxu0 0.0
      %3273 = vmatpush1.msra.mxu0 0.0
      %3274 = vmatprep.subr.mxu0 0.0
      %3275 = vmatpush1.msra.mxu0 0.0
      %3276 = vmatprep.subr.mxu0 0.0
      %3277 = vmatpush1.msra.mxu0 %v3149
      %3278 = vmatprep.subr.mxu0 0.0
      %3279 = vmatpush1.msra.mxu0 %v3147
      %3280 = vmatprep.subr.mxu0 0.0
      %3281 = vmatpush2.msra.mxu0 0.0
      %3282 = vmatprep.subr.mxu0 0.0
      %3283 = vmatpush2.msra.mxu0 0.0
      %3284 = vmatprep.subr.mxu0 0.0
      %3285 = vmatpush2.msra.mxu0 0.0
      %3286 = vmatprep.subr.mxu0 0.0
      %3287 = vmatpush2.msra.mxu0 0.0
      %3288 = vmatprep.subr.mxu0 0.0
      %3289 = vmatpush2.msra.mxu0 0.0
      %3290 = vmatprep.subr.mxu0 0.0
      %3291 = vmatpush2.msra.mxu0 0.0
      %3292 = vmatprep.subr.mxu0 0.0
      %3293 = vmatpush2.msra.mxu0 0.0
      %3294 = vmatprep.subr.mxu0 0.0
      %3295 = vmatpush2.msra.mxu0 0.0
      %3296 = vmatprep.subr.mxu0 0.0
      %3297 = vmatpush2.msra.mxu0 0.0
      %3298 = vmatprep.subr.mxu0 0.0
      %3299 = vmatpush2.msra.mxu0 0.0
      %3300 = vmatprep.subr.mxu0 0.0
      %3301 = vmatpush2.msra.mxu0 0.0
      %3302 = vmatprep.subr.mxu0 0.0
      %3303 = vmatpush2.msra.mxu0 0.0
      %3304 = vmatprep.subr.mxu0 0.0
      %3305 = vmatpush2.msra.mxu0 0.0
      %3306 = vmatprep.subr.mxu0 0.0
      %3307 = vmatpush2.msra.mxu0 0.0
      %3308 = vmatprep.subr.mxu0 0.0
      %3309 = vmatpush2.msra.mxu0 0.0
      %3310 = vmatprep.subr.mxu0 0.0
      %3311 = vmatpush2.msra.mxu0 0.0
      %3312 = vmatprep.mubr.f32.mxu0 0.0
      %3313 = vmatmul.mubr.f32.gmra.mxu0 %v3153
      %v3314 = vpop.f32.mrf.mxu0
      %v3315 = vadd.f32 0.0, %v3314
      %v3316 = vpop.f32.mrf.mxu0
      %3317 = vmatprep.mubr.f32.mxu0 0.0
      %3318 = vmatmul.mubr.f32.gmra.mxu0 %v3156
      %v3319 = vpop.f32.mrf.mxu0
      %v3320 = vadd.f32 0.0, %v3319
      %v3321 = vpop.f32.mrf.mxu0
      %3322 = vmatprep.mubr.f32.mxu0 0.0
      %3323 = vmatmul.mubr.f32.gmra.mxu0 %v3159
      %v3324 = vpop.f32.mrf.mxu0
      %v3325 = vadd.f32 0.0, %v3324
      %v3326 = vpop.f32.mrf.mxu0
      %3327 = vmatprep.mubr.f32.mxu0 0.0
      %3328 = vmatmul.mubr.f32.gmra.mxu0 %v3162
      %v3329 = vpop.f32.mrf.mxu0
      %v3330 = vadd.f32 0.0, %v3329
      %v3331 = vpop.f32.mrf.mxu0
      %3332 = vmatprep.mubr.f32.mxu0 0.0
      %3333 = vmatmul.mubr.f32.gmra.mxu0 %v3165
      %v3334 = vpop.f32.mrf.mxu0
      %v3335 = vadd.f32 0.0, %v3334
      %v3336 = vpop.f32.mrf.mxu0
      %3337 = vmatprep.mubr.f32.mxu0 0.0
      %3338 = vmatmul.mubr.f32.gmra.mxu0 %v3168
      %v3339 = vpop.f32.mrf.mxu0
      %v3340 = vadd.f32 0.0, %v3339
      %v3341 = vpop.f32.mrf.mxu0
      %3342 = vmatprep.mubr.f32.mxu0 0.0
      %3343 = vmatmul.mubr.f32.gmra.mxu0 %v3171
      %v3344 = vpop.f32.mrf.mxu0
      %v3345 = vadd.f32 0.0, %v3344
      %v3346 = vpop.f32.mrf.mxu0
      %3347 = vmatprep.mubr.f32.mxu0 0.0
      %3348 = vmatmul.mubr.f32.gmra.mxu0 %v3174
      %v3349 = vpop.f32.mrf.mxu0
      %v3350 = vadd.f32 0.0, %v3349
      %v3351 = vpop.f32.mrf.mxu0
      %3352 = vmatprep.mubr.f32.mxu0 0.0
      %3353 = vmatmul.mubr.f32.gmra.mxu0 %v3177
      %v3354 = vpop.f32.mrf.mxu0
      %v3355 = vadd.f32 0.0, %v3354
      %v3356 = vpop.f32.mrf.mxu0
      %3357 = vmatprep.mubr.f32.mxu0 0.0
      %3358 = vmatmul.mubr.f32.gmra.mxu0 %v3180
      %v3359 = vpop.f32.mrf.mxu0
      %v3360 = vadd.f32 0.0, %v3359
      %v3361 = vpop.f32.mrf.mxu0
      %3362 = vmatprep.mubr.f32.mxu0 0.0
      %3363 = vmatmul.mubr.f32.gmra.mxu0 %v3183
      %v3364 = vpop.f32.mrf.mxu0
      %v3365 = vadd.f32 0.0, %v3364
      %v3366 = vpop.f32.mrf.mxu0
      %3367 = vmatprep.mubr.f32.mxu0 0.0
      %3368 = vmatmul.mubr.f32.gmra.mxu0 %v3186
      %v3369 = vpop.f32.mrf.mxu0
      %v3370 = vadd.f32 0.0, %v3369
      %v3371 = vpop.f32.mrf.mxu0
      %3372 = vmatprep.mubr.f32.mxu0 0.0
      %3373 = vmatmul.mubr.f32.gmra.mxu0 %v3189
      %v3374 = vpop.f32.mrf.mxu0
      %v3375 = vadd.f32 0.0, %v3374
      %v3376 = vpop.f32.mrf.mxu0
      %3377 = vmatprep.mubr.f32.mxu0 0.0
      %3378 = vmatmul.mubr.f32.gmra.mxu0 %v3192
      %v3379 = vpop.f32.mrf.mxu0
      %v3380 = vadd.f32 0.0, %v3379
      %v3381 = vpop.f32.mrf.mxu0
      %3382 = vmatprep.mubr.f32.mxu0 0.0
      %3383 = vmatmul.mubr.f32.gmra.mxu0 %v3195
      %v3384 = vpop.f32.mrf.mxu0
      %v3385 = vadd.f32 0.0, %v3384
      %v3386 = vpop.f32.mrf.mxu0
      %3387 = vmatprep.mubr.f32.mxu0 0.0
      %3388 = vmatmul.mubr.f32.gmra.mxu0 %v3198
      %v3389 = vpop.f32.mrf.mxu0
      %v3390 = vadd.f32 0.0, %v3389
      %v3391 = vpop.f32.mrf.mxu0
      %3392 = vmatprep.mubr.f32.mxu0 0.0
      %3393 = vmatmul.mubr.f32.gmra.mxu0 %v3201
      %v3394 = vpop.f32.mrf.mxu0
      %v3395 = vadd.f32 0.0, %v3394
      %v3396 = vpop.f32.mrf.mxu0
      %3397 = vmatprep.mubr.f32.mxu0 0.0
      %3398 = vmatmul.mubr.f32.gmra.mxu0 %v3204
      %v3399 = vpop.f32.mrf.mxu0
      %v3400 = vadd.f32 0.0, %v3399
      %v3401 = vpop.f32.mrf.mxu0
      %3402 = vmatprep.mubr.f32.mxu0 0.0
      %3403 = vmatmul.mubr.f32.gmra.mxu0 %v3207
      %v3404 = vpop.f32.mrf.mxu0
      %v3405 = vadd.f32 0.0, %v3404
      %v3406 = vpop.f32.mrf.mxu0
      %3407 = vmatprep.mubr.f32.mxu0 0.0
      %3408 = vmatmul.mubr.f32.gmra.mxu0 %v3210
      %v3409 = vpop.f32.mrf.mxu0
      %v3410 = vadd.f32 0.0, %v3409
      %v3411 = vpop.f32.mrf.mxu0
      %3412 = vmatprep.mubr.f32.mxu0 0.0
      %3413 = vmatmul.mubr.f32.gmra.mxu0 %v3213
      %v3414 = vpop.f32.mrf.mxu0
      %v3415 = vadd.f32 0.0, %v3414
      %v3416 = vpop.f32.mrf.mxu0
      %3417 = vmatprep.mubr.f32.mxu0 0.0
      %3418 = vmatmul.mubr.f32.gmra.mxu0 %v3216
      %v3419 = vpop.f32.mrf.mxu0
      %v3420 = vadd.f32 0.0, %v3419
      %v3421 = vpop.f32.mrf.mxu0
      %3422 = vmatprep.mubr.f32.mxu0 0.0
      %3423 = vmatmul.mubr.f32.gmra.mxu0 %v3219
      %v3424 = vpop.f32.mrf.mxu0
      %v3425 = vadd.f32 0.0, %v3424
      %v3426 = vpop.f32.mrf.mxu0
      %3427 = vmatprep.mubr.f32.mxu0 0.0
      %3428 = vmatmul.mubr.f32.gmra.mxu0 %v3222
      %v3429 = vpop.f32.mrf.mxu0
      %v3430 = vadd.f32 0.0, %v3429
      %v3431 = vpop.f32.mrf.mxu0
      %3432 = vmatprep.mubr.f32.mxu0 0.0
      %3433 = vmatmul.mubr.f32.gmra.mxu0 %v3225
      %v3434 = vpop.f32.mrf.mxu0
      %v3435 = vadd.f32 0.0, %v3434
      %v3436 = vpop.f32.mrf.mxu0
      %3437 = vmatprep.mubr.f32.mxu0 0.0
      %3438 = vmatmul.mubr.f32.gmra.mxu0 %v3228
      %v3439 = vpop.f32.mrf.mxu0
      %v3440 = vadd.f32 0.0, %v3439
      %v3441 = vpop.f32.mrf.mxu0
      %3442 = vmatprep.mubr.f32.mxu0 0.0
      %3443 = vmatmul.mubr.f32.gmra.mxu0 %v3231
      %v3444 = vpop.f32.mrf.mxu0
      %v3445 = vadd.f32 0.0, %v3444
      %v3446 = vpop.f32.mrf.mxu0
      %3447 = vmatprep.mubr.f32.mxu0 0.0
      %3448 = vmatmul.mubr.f32.gmra.mxu0 %v3234
      %v3449 = vpop.f32.mrf.mxu0
      %v3450 = vadd.f32 0.0, %v3449
      %v3451 = vpop.f32.mrf.mxu0
      %3452 = vmatprep.mubr.f32.mxu0 0.0
      %3453 = vmatmul.mubr.f32.gmra.mxu0 %v3237
      %v3454 = vpop.f32.mrf.mxu0
      %v3455 = vadd.f32 0.0, %v3454
      %v3456 = vpop.f32.mrf.mxu0
      %3457 = vmatprep.mubr.f32.mxu0 0.0
      %3458 = vmatmul.mubr.f32.gmra.mxu0 %v3240
      %v3459 = vpop.f32.mrf.mxu0
      %v3460 = vadd.f32 0.0, %v3459
      %v3461 = vpop.f32.mrf.mxu0
      %3462 = vmatprep.mubr.f32.mxu0 0.0
      %3463 = vmatmul.mubr.f32.gmra.mxu0 %v3243
      %v3464 = vpop.f32.mrf.mxu0
      %v3465 = vadd.f32 0.0, %v3464
      %v3466 = vpop.f32.mrf.mxu0
      %3467 = vmatprep.mubr.f32.mxu0 0.0
      %3468 = vmatmul.mubr.f32.gmra.mxu0 %v3246
      %v3469 = vpop.f32.mrf.mxu0
      %v3470 = vadd.f32 0.0, %v3469
      %v3471 = vpop.f32.mrf.mxu0
      %3472 = vdwg.mxu0
      %v3473 = vld [vmem:[%s20] sm:$0xff]
      %v3474 = vld [vmem:[%s20 + $0x8] sm:$0xff]
      %v3475 = vld [vmem:[%s20 + $0x10] sm:$0xff]
      %v3476 = vld [vmem:[%s20 + $0x18] sm:$0xff]
      %v3477 = vld [vmem:[%s21] sm:$0x1]
      %v3479 = vlaneseq
      %v3480 = vshrl.u32 %v3479, 7
      %v3481 = vsub.s32 0, %v3480
      %v3482 = vrot.slane %v3477, %v3481
      %v3485 = vsel %vm789, %v3315, 0
      %v3488 = vsel %vm789, %v3320, 0
      %v3491 = vsel %vm789, %v3325, 0
      %v3494 = vsel %vm789, %v3330, 0
      %v3497 = vsel %vm789, %v3335, 0
      %v3500 = vsel %vm789, %v3340, 0
      %v3503 = vsel %vm789, %v3345, 0
      %v3506 = vsel %vm789, %v3350, 0
      %v3509 = vsel %vm789, %v3355, 0
      %v3512 = vsel %vm789, %v3360, 0
      %v3515 = vsel %vm789, %v3365, 0
      %v3518 = vsel %vm789, %v3370, 0
      %v3521 = vsel %vm789, %v3375, 0
      %v3524 = vsel %vm789, %v3380, 0
      %v3527 = vsel %vm789, %v3385, 0
      %v3530 = vsel %vm789, %v3390, 0
      %v3533 = vsel %vm789, %v3395, 0
      %v3536 = vsel %vm789, %v3400, 0
      %v3539 = vsel %vm789, %v3405, 0
      %v3542 = vsel %vm789, %v3410, 0
      %v3545 = vsel %vm789, %v3415, 0
      %v3548 = vsel %vm789, %v3420, 0
      %v3551 = vsel %vm789, %v3425, 0
      %v3554 = vsel %vm789, %v3430, 0
      %v3557 = vsel %vm789, %v3435, 0
      %v3560 = vsel %vm789, %v3440, 0
      %v3563 = vsel %vm789, %v3445, 0
      %v3566 = vsel %vm789, %v3450, 0
      %v3569 = vsel %vm789, %v3455, 0
      %v3572 = vsel %vm789, %v3460, 0
      %v3575 = vsel %vm789, %v3465, 0
      %v3578 = vsel %vm789, %v3470, 0
      %3580 = vmatprep.subr.mxu0 0.0
      %3581 = vmatpush1.msra.mxu0 0.0
      %3582 = vmatprep.subr.mxu0 0.0
      %3583 = vmatpush1.msra.mxu0 0.0
      %3584 = vmatprep.subr.mxu0 0.0
      %3585 = vmatpush1.msra.mxu0 0.0
      %3586 = vmatprep.subr.mxu0 0.0
      %3587 = vmatpush1.msra.mxu0 0.0
      %3588 = vmatprep.subr.mxu0 0.0
      %3589 = vmatpush1.msra.mxu0 0.0
      %3590 = vmatprep.subr.mxu0 0.0
      %3591 = vmatpush1.msra.mxu0 0.0
      %3592 = vmatprep.subr.mxu0 0.0
      %3593 = vmatpush1.msra.mxu0 0.0
      %3594 = vmatprep.subr.mxu0 0.0
      %3595 = vmatpush1.msra.mxu0 0.0
      %3596 = vmatprep.subr.mxu0 0.0
      %3597 = vmatpush1.msra.mxu0 0.0
      %3598 = vmatprep.subr.mxu0 0.0
      %3599 = vmatpush1.msra.mxu0 0.0
      %3600 = vmatprep.subr.mxu0 0.0
      %3601 = vmatpush1.msra.mxu0 0.0
      %3602 = vmatprep.subr.mxu0 0.0
      %3603 = vmatpush1.msra.mxu0 0.0
      %3604 = vmatprep.subr.mxu0 0.0
      %3605 = vmatpush1.msra.mxu0 %v3476
      %3606 = vmatprep.subr.mxu0 0.0
      %3607 = vmatpush1.msra.mxu0 %v3475
      %3608 = vmatprep.subr.mxu0 0.0
      %3609 = vmatpush1.msra.mxu0 %v3474
      %3610 = vmatprep.subr.mxu0 0.0
      %3611 = vmatpush1.msra.mxu0 %v3473
      %3612 = vmatprep.subr.mxu0 0.0
      %3613 = vmatpush2.msra.mxu0 0.0
      %3614 = vmatprep.subr.mxu0 0.0
      %3615 = vmatpush2.msra.mxu0 0.0
      %3616 = vmatprep.subr.mxu0 0.0
      %3617 = vmatpush2.msra.mxu0 0.0
      %3618 = vmatprep.subr.mxu0 0.0
      %3619 = vmatpush2.msra.mxu0 0.0
      %3620 = vmatprep.subr.mxu0 0.0
      %3621 = vmatpush2.msra.mxu0 0.0
      %3622 = vmatprep.subr.mxu0 0.0
      %3623 = vmatpush2.msra.mxu0 0.0
      %3624 = vmatprep.subr.mxu0 0.0
      %3625 = vmatpush2.msra.mxu0 0.0
      %3626 = vmatprep.subr.mxu0 0.0
      %3627 = vmatpush2.msra.mxu0 0.0
      %3628 = vmatprep.subr.mxu0 0.0
      %3629 = vmatpush2.msra.mxu0 0.0
      %3630 = vmatprep.subr.mxu0 0.0
      %3631 = vmatpush2.msra.mxu0 0.0
      %3632 = vmatprep.subr.mxu0 0.0
      %3633 = vmatpush2.msra.mxu0 0.0
      %3634 = vmatprep.subr.mxu0 0.0
      %3635 = vmatpush2.msra.mxu0 0.0
      %3636 = vmatprep.subr.mxu0 0.0
      %3637 = vmatpush2.msra.mxu0 0.0
      %3638 = vmatprep.subr.mxu0 0.0
      %3639 = vmatpush2.msra.mxu0 0.0
      %3640 = vmatprep.subr.mxu0 0.0
      %3641 = vmatpush2.msra.mxu0 0.0
      %3642 = vmatprep.subr.mxu0 0.0
      %3643 = vmatpush2.msra.mxu0 0.0
      %3644 = vmatprep.mubr.f32.mxu0 0.0
      %3645 = vmatmul.mubr.f32.gmra.mxu0 %v3485
      %v3646 = vpop.f32.mrf.mxu0
      %v3647 = vadd.f32 %v3482, %v3646
      %v3648 = vpop.f32.mrf.mxu0
      %3649 = vmatprep.mubr.f32.mxu0 0.0
      %3650 = vmatmul.mubr.f32.gmra.mxu0 %v3488
      %v3651 = vpop.f32.mrf.mxu0
      %v3652 = vadd.f32 %v3482, %v3651
      %v3653 = vpop.f32.mrf.mxu0
      %3654 = vmatprep.mubr.f32.mxu0 0.0
      %3655 = vmatmul.mubr.f32.gmra.mxu0 %v3491
      %v3656 = vpop.f32.mrf.mxu0
      %v3657 = vadd.f32 %v3482, %v3656
      %v3658 = vpop.f32.mrf.mxu0
      %3659 = vmatprep.mubr.f32.mxu0 0.0
      %3660 = vmatmul.mubr.f32.gmra.mxu0 %v3494
      %v3661 = vpop.f32.mrf.mxu0
      %v3662 = vadd.f32 %v3482, %v3661
      %v3663 = vpop.f32.mrf.mxu0
      %3664 = vmatprep.mubr.f32.mxu0 0.0
      %3665 = vmatmul.mubr.f32.gmra.mxu0 %v3497
      %v3666 = vpop.f32.mrf.mxu0
      %v3667 = vadd.f32 %v3482, %v3666
      %v3668 = vpop.f32.mrf.mxu0
      %3669 = vmatprep.mubr.f32.mxu0 0.0
      %3670 = vmatmul.mubr.f32.gmra.mxu0 %v3500
      %v3671 = vpop.f32.mrf.mxu0
      %v3672 = vadd.f32 %v3482, %v3671
      %v3673 = vpop.f32.mrf.mxu0
      %3674 = vmatprep.mubr.f32.mxu0 0.0
      %3675 = vmatmul.mubr.f32.gmra.mxu0 %v3503
      %v3676 = vpop.f32.mrf.mxu0
      %v3677 = vadd.f32 %v3482, %v3676
      %v3678 = vpop.f32.mrf.mxu0
      %3679 = vmatprep.mubr.f32.mxu0 0.0
      %3680 = vmatmul.mubr.f32.gmra.mxu0 %v3506
      %v3681 = vpop.f32.mrf.mxu0
      %v3682 = vadd.f32 %v3482, %v3681
      %v3683 = vpop.f32.mrf.mxu0
      %3684 = vmatprep.mubr.f32.mxu0 0.0
      %3685 = vmatmul.mubr.f32.gmra.mxu0 %v3509
      %v3686 = vpop.f32.mrf.mxu0
      %v3687 = vadd.f32 %v3482, %v3686
      %v3688 = vpop.f32.mrf.mxu0
      %3689 = vmatprep.mubr.f32.mxu0 0.0
      %3690 = vmatmul.mubr.f32.gmra.mxu0 %v3512
      %v3691 = vpop.f32.mrf.mxu0
      %v3692 = vadd.f32 %v3482, %v3691
      %v3693 = vpop.f32.mrf.mxu0
      %3694 = vmatprep.mubr.f32.mxu0 0.0
      %3695 = vmatmul.mubr.f32.gmra.mxu0 %v3515
      %v3696 = vpop.f32.mrf.mxu0
      %v3697 = vadd.f32 %v3482, %v3696
      %v3698 = vpop.f32.mrf.mxu0
      %3699 = vmatprep.mubr.f32.mxu0 0.0
      %3700 = vmatmul.mubr.f32.gmra.mxu0 %v3518
      %v3701 = vpop.f32.mrf.mxu0
      %v3702 = vadd.f32 %v3482, %v3701
      %v3703 = vpop.f32.mrf.mxu0
      %3704 = vmatprep.mubr.f32.mxu0 0.0
      %3705 = vmatmul.mubr.f32.gmra.mxu0 %v3521
      %v3706 = vpop.f32.mrf.mxu0
      %v3707 = vadd.f32 %v3482, %v3706
      %v3708 = vpop.f32.mrf.mxu0
      %3709 = vmatprep.mubr.f32.mxu0 0.0
      %3710 = vmatmul.mubr.f32.gmra.mxu0 %v3524
      %v3711 = vpop.f32.mrf.mxu0
      %v3712 = vadd.f32 %v3482, %v3711
      %v3713 = vpop.f32.mrf.mxu0
      %3714 = vmatprep.mubr.f32.mxu0 0.0
      %3715 = vmatmul.mubr.f32.gmra.mxu0 %v3527
      %v3716 = vpop.f32.mrf.mxu0
      %v3717 = vadd.f32 %v3482, %v3716
      %v3718 = vpop.f32.mrf.mxu0
      %3719 = vmatprep.mubr.f32.mxu0 0.0
      %3720 = vmatmul.mubr.f32.gmra.mxu0 %v3530
      %v3721 = vpop.f32.mrf.mxu0
      %v3722 = vadd.f32 %v3482, %v3721
      %v3723 = vpop.f32.mrf.mxu0
      %3724 = vmatprep.mubr.f32.mxu0 0.0
      %3725 = vmatmul.mubr.f32.gmra.mxu0 %v3533
      %v3726 = vpop.f32.mrf.mxu0
      %v3727 = vadd.f32 %v3482, %v3726
      %v3728 = vpop.f32.mrf.mxu0
      %3729 = vmatprep.mubr.f32.mxu0 0.0
      %3730 = vmatmul.mubr.f32.gmra.mxu0 %v3536
      %v3731 = vpop.f32.mrf.mxu0
      %v3732 = vadd.f32 %v3482, %v3731
      %v3733 = vpop.f32.mrf.mxu0
      %3734 = vmatprep.mubr.f32.mxu0 0.0
      %3735 = vmatmul.mubr.f32.gmra.mxu0 %v3539
      %v3736 = vpop.f32.mrf.mxu0
      %v3737 = vadd.f32 %v3482, %v3736
      %v3738 = vpop.f32.mrf.mxu0
      %3739 = vmatprep.mubr.f32.mxu0 0.0
      %3740 = vmatmul.mubr.f32.gmra.mxu0 %v3542
      %v3741 = vpop.f32.mrf.mxu0
      %v3742 = vadd.f32 %v3482, %v3741
      %v3743 = vpop.f32.mrf.mxu0
      %3744 = vmatprep.mubr.f32.mxu0 0.0
      %3745 = vmatmul.mubr.f32.gmra.mxu0 %v3545
      %v3746 = vpop.f32.mrf.mxu0
      %v3747 = vadd.f32 %v3482, %v3746
      %v3748 = vpop.f32.mrf.mxu0
      %3749 = vmatprep.mubr.f32.mxu0 0.0
      %3750 = vmatmul.mubr.f32.gmra.mxu0 %v3548
      %v3751 = vpop.f32.mrf.mxu0
      %v3752 = vadd.f32 %v3482, %v3751
      %v3753 = vpop.f32.mrf.mxu0
      %3754 = vmatprep.mubr.f32.mxu0 0.0
      %3755 = vmatmul.mubr.f32.gmra.mxu0 %v3551
      %v3756 = vpop.f32.mrf.mxu0
      %v3757 = vadd.f32 %v3482, %v3756
      %v3758 = vpop.f32.mrf.mxu0
      %3759 = vmatprep.mubr.f32.mxu0 0.0
      %3760 = vmatmul.mubr.f32.gmra.mxu0 %v3554
      %v3761 = vpop.f32.mrf.mxu0
      %v3762 = vadd.f32 %v3482, %v3761
      %v3763 = vpop.f32.mrf.mxu0
      %3764 = vmatprep.mubr.f32.mxu0 0.0
      %3765 = vmatmul.mubr.f32.gmra.mxu0 %v3557
      %v3766 = vpop.f32.mrf.mxu0
      %v3767 = vadd.f32 %v3482, %v3766
      %v3768 = vpop.f32.mrf.mxu0
      %3769 = vmatprep.mubr.f32.mxu0 0.0
      %3770 = vmatmul.mubr.f32.gmra.mxu0 %v3560
      %v3771 = vpop.f32.mrf.mxu0
      %v3772 = vadd.f32 %v3482, %v3771
      %v3773 = vpop.f32.mrf.mxu0
      %3774 = vmatprep.mubr.f32.mxu0 0.0
      %3775 = vmatmul.mubr.f32.gmra.mxu0 %v3563
      %v3776 = vpop.f32.mrf.mxu0
      %v3777 = vadd.f32 %v3482, %v3776
      %v3778 = vpop.f32.mrf.mxu0
      %3779 = vmatprep.mubr.f32.mxu0 0.0
      %3780 = vmatmul.mubr.f32.gmra.mxu0 %v3566
      %v3781 = vpop.f32.mrf.mxu0
      %v3782 = vadd.f32 %v3482, %v3781
      %v3783 = vpop.f32.mrf.mxu0
      %3784 = vmatprep.mubr.f32.mxu0 0.0
      %3785 = vmatmul.mubr.f32.gmra.mxu0 %v3569
      %v3786 = vpop.f32.mrf.mxu0
      %v3787 = vadd.f32 %v3482, %v3786
      %v3788 = vpop.f32.mrf.mxu0
      %3789 = vmatprep.mubr.f32.mxu0 0.0
      %3790 = vmatmul.mubr.f32.gmra.mxu0 %v3572
      %v3791 = vpop.f32.mrf.mxu0
      %v3792 = vadd.f32 %v3482, %v3791
      %v3793 = vpop.f32.mrf.mxu0
      %3794 = vmatprep.mubr.f32.mxu0 0.0
      %3795 = vmatmul.mubr.f32.gmra.mxu0 %v3575
      %v3796 = vpop.f32.mrf.mxu0
      %v3797 = vadd.f32 %v3482, %v3796
      %v3798 = vpop.f32.mrf.mxu0
      %3799 = vmatprep.mubr.f32.mxu0 0.0
      %3800 = vmatmul.mubr.f32.gmra.mxu0 %v3578
      %v3801 = vpop.f32.mrf.mxu0
      %v3802 = vadd.f32 %v3482, %v3801
      %v3803 = vpop.f32.mrf.mxu0
      %3804 = vdwg.mxu0
      %v3805 = vadd.f32 %v1449, %v3647
      %v3806 = vadd.f32 %v1450, %v3652
      %v3807 = vadd.f32 %v1451, %v3657
      %v3808 = vadd.f32 %v1452, %v3662
      %v3809 = vadd.f32 %v1453, %v3667
      %v3810 = vadd.f32 %v1454, %v3672
      %v3811 = vadd.f32 %v1455, %v3677
      %v3812 = vadd.f32 %v1456, %v3682
      %v3813 = vadd.f32 %v1457, %v3687
      %v3814 = vadd.f32 %v1458, %v3692
      %v3815 = vadd.f32 %v1459, %v3697
      %v3816 = vadd.f32 %v1460, %v3702
      %v3817 = vadd.f32 %v1461, %v3707
      %v3818 = vadd.f32 %v1462, %v3712
      %v3819 = vadd.f32 %v1463, %v3717
      %v3820 = vadd.f32 %v1464, %v3722
      %v3821 = vadd.f32 %v1465, %v3727
      %v3822 = vadd.f32 %v1466, %v3732
      %v3823 = vadd.f32 %v1467, %v3737
      %v3824 = vadd.f32 %v1468, %v3742
      %v3825 = vadd.f32 %v1469, %v3747
      %v3826 = vadd.f32 %v1470, %v3752
      %v3827 = vadd.f32 %v1471, %v3757
      %v3828 = vadd.f32 %v1472, %v3762
      %v3829 = vadd.f32 %v1473, %v3767
      %v3830 = vadd.f32 %v1474, %v3772
      %v3831 = vadd.f32 %v1475, %v3777
      %v3832 = vadd.f32 %v1476, %v3782
      %v3833 = vadd.f32 %v1477, %v3787
      %v3834 = vadd.f32 %v1478, %v3792
      %v3835 = vadd.f32 %v1479, %v3797
      %v3836 = vadd.f32 %v1480, %v3802
      %v3837 = vld [vmem:[%s22] sm:$0xf]
      %v3838 = vld [vmem:[%s23] sm:$0xf]
      %3840 = vset.pattern.permute.xlu0 0
      %3841 = vperm.xlu0 %3840, %v3838
      %v3842 = vpop.permute.xlu0 %3841
      %v3845 = vsel %vm789, %v3837, 0
      %v3848 = vsel %vm789, %v3805, 0
      %v3851 = vsel %vm789, %v3806, 0
      %v3854 = vsel %vm789, %v3807, 0
      %v3857 = vsel %vm789, %v3808, 0
      %v3860 = vsel %vm789, %v3809, 0
      %v3863 = vsel %vm789, %v3810, 0
      %v3866 = vsel %vm789, %v3811, 0
      %v3869 = vsel %vm789, %v3812, 0
      %v3872 = vsel %vm789, %v3813, 0
      %v3875 = vsel %vm789, %v3814, 0
      %v3878 = vsel %vm789, %v3815, 0
      %v3881 = vsel %vm789, %v3816, 0
      %v3884 = vsel %vm789, %v3817, 0
      %v3887 = vsel %vm789, %v3818, 0
      %v3890 = vsel %vm789, %v3819, 0
      %v3893 = vsel %vm789, %v3820, 0
      %v3896 = vsel %vm789, %v3821, 0
      %v3899 = vsel %vm789, %v3822, 0
      %v3902 = vsel %vm789, %v3823, 0
      %v3905 = vsel %vm789, %v3824, 0
      %v3908 = vsel %vm789, %v3825, 0
      %v3911 = vsel %vm789, %v3826, 0
      %v3914 = vsel %vm789, %v3827, 0
      %v3917 = vsel %vm789, %v3828, 0
      %v3920 = vsel %vm789, %v3829, 0
      %v3923 = vsel %vm789, %v3830, 0
      %v3926 = vsel %vm789, %v3831, 0
      %v3929 = vsel %vm789, %v3832, 0
      %v3932 = vsel %vm789, %v3833, 0
      %v3935 = vsel %vm789, %v3834, 0
      %v3938 = vsel %vm789, %v3835, 0
      %v3941 = vsel %vm789, %v3836, 0
      %3943 = vmatprep.subr.mxu0 0.0
      %3944 = vmatpush1.xpose.msra.mxu0 %v3893
      %3945 = vmatprep.subr.mxu0 0.0
      %3946 = vmatpush1.xpose.msra.mxu0 %v3890
      %3947 = vmatprep.subr.mxu0 0.0
      %3948 = vmatpush1.xpose.msra.mxu0 %v3887
      %3949 = vmatprep.subr.mxu0 0.0
      %3950 = vmatpush1.xpose.msra.mxu0 %v3884
      %3951 = vmatprep.subr.mxu0 0.0
      %3952 = vmatpush1.xpose.msra.mxu0 %v3881
      %3953 = vmatprep.subr.mxu0 0.0
      %3954 = vmatpush1.xpose.msra.mxu0 %v3878
      %3955 = vmatprep.subr.mxu0 0.0
      %3956 = vmatpush1.xpose.msra.mxu0 %v3875
      %3957 = vmatprep.subr.mxu0 0.0
      %3958 = vmatpush1.xpose.msra.mxu0 %v3872
      %3959 = vmatprep.subr.mxu0 0.0
      %3960 = vmatpush1.xpose.msra.mxu0 %v3869
      %3961 = vmatprep.subr.mxu0 0.0
      %3962 = vmatpush1.xpose.msra.mxu0 %v3866
      %3963 = vmatprep.subr.mxu0 0.0
      %3964 = vmatpush1.xpose.msra.mxu0 %v3863
      %3965 = vmatprep.subr.mxu0 0.0
      %3966 = vmatpush1.xpose.msra.mxu0 %v3860
      %3967 = vmatprep.subr.mxu0 0.0
      %3968 = vmatpush1.xpose.msra.mxu0 %v3857
      %3969 = vmatprep.subr.mxu0 0.0
      %3970 = vmatpush1.xpose.msra.mxu0 %v3854
      %3971 = vmatprep.subr.mxu0 0.0
      %3972 = vmatpush1.xpose.msra.mxu0 %v3851
      %3973 = vmatprep.subr.mxu0 0.0
      %3974 = vmatpush1.xpose.msra.mxu0 %v3848
      %3975 = vmatprep.subr.mxu0 0.0
      %3976 = vmatpush2.xpose.msra.mxu0 %v3941
      %3977 = vmatprep.subr.mxu0 0.0
      %3978 = vmatpush2.xpose.msra.mxu0 %v3938
      %3979 = vmatprep.subr.mxu0 0.0
      %3980 = vmatpush2.xpose.msra.mxu0 %v3935
      %3981 = vmatprep.subr.mxu0 0.0
      %3982 = vmatpush2.xpose.msra.mxu0 %v3932
      %3983 = vmatprep.subr.mxu0 0.0
      %3984 = vmatpush2.xpose.msra.mxu0 %v3929
      %3985 = vmatprep.subr.mxu0 0.0
      %3986 = vmatpush2.xpose.msra.mxu0 %v3926
      %3987 = vmatprep.subr.mxu0 0.0
      %3988 = vmatpush2.xpose.msra.mxu0 %v3923
      %3989 = vmatprep.subr.mxu0 0.0
      %3990 = vmatpush2.xpose.msra.mxu0 %v3920
      %3991 = vmatprep.subr.mxu0 0.0
      %3992 = vmatpush2.xpose.msra.mxu0 %v3917
      %3993 = vmatprep.subr.mxu0 0.0
      %3994 = vmatpush2.xpose.msra.mxu0 %v3914
      %3995 = vmatprep.subr.mxu0 0.0
      %3996 = vmatpush2.xpose.msra.mxu0 %v3911
      %3997 = vmatprep.subr.mxu0 0.0
      %3998 = vmatpush2.xpose.msra.mxu0 %v3908
      %3999 = vmatprep.subr.mxu0 0.0
      %4000 = vmatpush2.xpose.msra.mxu0 %v3905
      %4001 = vmatprep.subr.mxu0 0.0
      %4002 = vmatpush2.xpose.msra.mxu0 %v3902
      %4003 = vmatprep.subr.mxu0 0.0
      %4004 = vmatpush2.xpose.msra.mxu0 %v3899
      %4005 = vmatprep.subr.mxu0 0.0
      %4006 = vmatpush2.xpose.msra.mxu0 %v3896
      %4007 = vmatprep.mubr.f32.mxu0 0.0
      %4008 = vmatmul.mubr.f32.gmra.mxu0 %v3845
      %v4009 = vpop.f32.mrf.mxu0
      %v4010 = vadd.f32 %v3842, %v4009
      %v4011 = vpop.f32.mrf.mxu0
      %v4012 = vadd.f32 %v3842, %v4011
      %4013 = vdwg.mxu0
      %v4016 = vcombine.low %v4010, %v4012
      %4018 = vst [vmem:[%s782] sm:$0xff] %v4016
      %p4019 = scmp.lt.s32.totalorder %s35, 1
      %s4020 = scalar_select %p4019, %s35, 1
      %s4021 = smul.addr %s4020, 2
      %s4022 = smul.addr %s4021, 4
      %s4023 = scalar_lea.vmem %s24, %s4022
      // Predicated region
      $region117: #{ip_adapter_forward.1} parent=115 // pred_check
        %p4024 = pneg %p577
      $region118: #{ip_adapter_forward.1} parent=115 // pred_check_branch
        %4026 = sbr.rel (%p4024) target = $region120
      $region119: #{ip_adapter_forward.1} parent=115 // pred_region
        _
      $region120: #{ip_adapter_forward.1} parent=115 // pred_fallthru
        _
    $region116: #{ip_adapter_forward.1} parent=5 // pred_fallthru
      _
    %p4027 = scmp.le.s32.totalorder 2, %s30
    // Predicated region
    $region121: #{ip_adapter_forward.1} parent=5 // pred_check
      %p4028 = pneg %p4027
    $region122: #{ip_adapter_forward.1} parent=5 // pred_check_branch
      %4030 = sbr.rel (%p4028) target = $region124
    $region123: #{ip_adapter_forward.1} parent=5 // pred_region
      %s4031 = ssub.s32 %s30, 2
      // Predicated region
      $region125: #{ip_adapter_forward.1} parent=123 // pred_check
        %p4032 = pneg %p583
      $region126: #{ip_adapter_forward.1} parent=123 // pred_check_branch
        %4034 = sbr.rel (%p4032) target = $region128
      $region127: #{ip_adapter_forward.1} parent=123 // pred_region
        %p4035 = scmp.lt.s32.totalorder %s36, 1
        %s4036 = scalar_select %p4035, %s36, 1
        %s4037 = smul.addr %s4036, 2
        %s4038 = smul.addr %s4037, 4
        %s4039 = scalar_lea.vmem %s24, %s4038
      $region128: #{ip_adapter_forward.1} parent=123 // pred_fallthru
        _
    $region124: #{ip_adapter_forward.1} parent=5 // pred_fallthru
      _
  $region6: #{ip_adapter_forward.1} parent=0 // loop_footer
    %s34 = sadd.s32 1, %s30
  $region7: #{ip_adapter_forward.1} parent=0 // loop_footer_branch
    %29 = sbr.rel target = $region3
  $region8: #{ip_adapter_forward.1} parent=0 // loop_exit
    _

</llo_original>
